<compile_context>
chip_gen: v7x
topology: tpu7x:2x2x1
jax: 0.10.0
libtpu: 0.0.40
codegen_flags: <defaults>
</compile_context>

<pallas_src>
import jax
import jax.numpy as jnp
from jax.experimental import pallas as pl
from jax.experimental.pallas import tpu as pltpu


# Lane-padded layer widths.
_IN = 160          # input features per branch
_H1 = 256          # 200 -> 256
_H2 = 256          # 250 -> 256
_H3 = 384          # 300 -> 384
_HC = 640          # 600 -> 640  (fc1 output)
_OUT_PAD = 128     # 1   -> 128  (fc2 output lanes; only column 0 is real)

# Row offsets inside the packed weight buffers (multiples of 16 => aligned
# bf16 sublane tiles, so the in-kernel slices are zero-cost views).
_WA_ROWS = (0, 160, 416, 576, 832)   # wa1, wa2, wp1, wp2
_WC_ROWS = (0, 384, 640)             # w1[:300] (apt part), w1[300:] (pep part)

_TILE_B_MAX = 128


def _blosum_kernel(apt_ref, pep_ref, wA_ref, wB_ref, wC_ref, wD_ref, b_ref,
                   out_ref):
    """One batch tile of the BlosumLinearNet forward; all matmuls on the MXU."""
    f32, bf16 = jnp.float32, jnp.bfloat16

    apt = apt_ref[...].astype(bf16)                  # (TB, 160)
    pep = pep_ref[...].astype(bf16)                  # (TB, 160)

    # Packed bf16 weights, stored (in, out) (transpose of PyTorch), zero padded.
    wa1 = wA_ref[_WA_ROWS[0]:_WA_ROWS[1], :]         # (160, 256)
    wa2 = wA_ref[_WA_ROWS[1]:_WA_ROWS[2], :]         # (256, 256)
    wp1 = wA_ref[_WA_ROWS[2]:_WA_ROWS[3], :]         # (160, 256)
    wp2 = wA_ref[_WA_ROWS[3]:_WA_ROWS[4], :]         # (256, 256)
    wa3 = wB_ref[...]                                # (256, 384)
    w1a = wC_ref[_WC_ROWS[0]:_WC_ROWS[1], :]         # (384, 640)
    w1p = wC_ref[_WC_ROWS[1]:_WC_ROWS[2], :]         # (256, 640)
    w2 = wD_ref[...]                                 # (640, 128)

    # Packed f32 biases, one zero-padded row per layer.
    ba1 = b_ref[0:1, :_H1]
    ba2 = b_ref[1:2, :_H2]
    ba3 = b_ref[2:3, :_H3]
    bp1 = b_ref[3:4, :_H1]
    bp2 = b_ref[4:5, :_H2]
    b1 = b_ref[5:6, :_HC]
    b2 = b_ref[6:7, :1]

    # Aptamer branch: Linear(160,200) -> Linear(200,250) -> Linear(250,300).
    a = jnp.dot(apt, wa1, preferred_element_type=f32) + ba1
    a = jnp.dot(a.astype(bf16), wa2, preferred_element_type=f32) + ba2
    a = jnp.dot(a.astype(bf16), wa3, preferred_element_type=f32) + ba3   # (TB,384)

    # Peptide branch: Linear(160,200) -> Linear(200,250).
    p = jnp.dot(pep, wp1, preferred_element_type=f32) + bp1
    p = jnp.dot(p.astype(bf16), wp2, preferred_element_type=f32) + bp2   # (TB,256)

    # fc1 applied to cat((apt, pep), 1): split matmul, no explicit concat.
    h = (jnp.dot(a.astype(bf16), w1a, preferred_element_type=f32)
         + jnp.dot(p.astype(bf16), w1p, preferred_element_type=f32)
         + b1)                                                           # (TB,640)

    # fc2 (600 -> 1); output lanes padded to 128, only column 0 is real.
    logit = jnp.dot(h.astype(bf16), w2, preferred_element_type=f32)[:, :1] + b2
    out_ref[...] = jax.nn.sigmoid(logit)


def blosum_linear_net(apt, pep, packed_params):
    """BlosumLinearNet forward.

    apt / pep: anything reshapeable to (B, 160). B == 1 reproduces the
    PyTorch `view(-1, 1).T` single-sample semantics. Returns (B, 1) float32.
    """
    wA, wB, wC, wD, bias = packed_params
    apt = jnp.asarray(apt, jnp.float32).reshape(-1, _IN)
    pep = jnp.asarray(pep, jnp.float32).reshape(-1, _IN)
    batch = apt.shape[0]

    if batch <= _TILE_B_MAX:
        tile_b, padded_b = batch, batch
    else:
        tile_b = _TILE_B_MAX
        padded_b = tile_b * pl.cdiv(batch, tile_b)
        apt = jnp.pad(apt, ((0, padded_b - batch), (0, 0)))
        pep = jnp.pad(pep, ((0, padded_b - batch), (0, 0)))

    grid = (padded_b // tile_b,)

    def _resident(i):          # weights: same block every grid step -> no re-DMA
        return (0, 0)

    out = pl.pallas_call(
        _blosum_kernel,
        out_shape=jax.ShapeDtypeStruct((padded_b, 1), jnp.float32),
        grid=grid,
        in_specs=[
            pl.BlockSpec((tile_b, _IN), lambda i: (i, 0)),   # apt batch tile
            pl.BlockSpec((tile_b, _IN), lambda i: (i, 0)),   # pep batch tile
            pl.BlockSpec(wA.shape, _resident),
            pl.BlockSpec(wB.shape, _resident),
            pl.BlockSpec(wC.shape, _resident),
            pl.BlockSpec(wD.shape, _resident),
            pl.BlockSpec(bias.shape, _resident),
        ],
        out_specs=pl.BlockSpec((tile_b, 1), lambda i: (i, 0)),
        compiler_params=pltpu.CompilerParams(
            dimension_semantics=("parallel",)),
    )(apt, pep, wA, wB, wC, wD, bias)

    return out[:batch] if padded_b != batch else out


# --------------------------- parameters -------------------------------------

def _init_linear(key, fan_in, fan_out):
    """PyTorch nn.Linear default init: U(-1/sqrt(fan_in), 1/sqrt(fan_in)).
    Weight returned as (fan_in, fan_out); bias as (fan_out,)."""
    kw, kb = jax.random.split(key)
    bound = 1.0 / jnp.sqrt(jnp.float32(fan_in))
    w = jax.random.uniform(kw, (fan_in, fan_out), jnp.float32, -bound, bound)
    b = jax.random.uniform(kb, (fan_out,), jnp.float32, -bound, bound)
    return w, b


def init_params(key):
    keys = jax.random.split(key, 7)
    wa1, ba1 = _init_linear(keys[0], 160, 200)
    wa2, ba2 = _init_linear(keys[1], 200, 250)
    wa3, ba3 = _init_linear(keys[2], 250, 300)
    wp1, bp1 = _init_linear(keys[3], 160, 200)
    wp2, bp2 = _init_linear(keys[4], 200, 250)
    w1, b1 = _init_linear(keys[5], 550, 600)
    w2, b2 = _init_linear(keys[6], 600, 1)
    return (wa1, ba1, wa2, ba2, wa3, ba3, wp1, bp1, wp2, bp2, w1, b1, w2, b2)


def pack_params(raw_params):
    """One-time packing: pre-split fc1, zero-pad to lane multiples, pack into
    4 bf16 weight buffers + 1 f32 bias buffer."""
    (wa1, ba1, wa2, ba2, wa3, ba3,
     wp1, bp1, wp2, bp2, w1, b1, w2, b2) = raw_params

    def padw(w, rows, cols):
        r, c = w.shape
        return jnp.pad(w, ((0, rows - r), (0, cols - c)))

    def padb(b, cols=_HC):
        b = b.reshape(1, -1)
        return jnp.pad(b, ((0, 0), (0, cols - b.shape[1])))

    # fc1 split once: first 300 rows multiply the apt branch output, last 250
    # rows multiply the pep branch output (== torch.cat semantics).
    w1a, w1p = w1[:300, :], w1[300:, :]

    wA = jnp.concatenate(
        [padw(wa1, 160, _H1), padw(wa2, _H1, _H2),
         padw(wp1, 160, _H1), padw(wp2, _H1, _H2)],
        axis=0).astype(jnp.bfloat16)                                  # (832, 256)
    wB = padw(wa3, _H2, _H3).astype(jnp.bfloat16)                     # (256, 384)
    wC = jnp.concatenate(
        [padw(w1a, _H3, _HC), padw(w1p, _H2, _HC)],
        axis=0).astype(jnp.bfloat16)                                  # (640, 640)
    wD = padw(w2, _HC, _OUT_PAD).astype(jnp.bfloat16)                 # (640, 128)

    bias = jnp.concatenate(
        [padb(ba1), padb(ba2), padb(ba3), padb(bp1), padb(bp2),
         padb(b1), padb(b2), jnp.zeros((1, _HC), jnp.float32)],
        axis=0)                                                       # (8, 640) f32

    return (wA, wB, wC, wD, bias)


# --------------------------- references -------------------------------------

def _reference_f32(apt, pep, raw_params):
    """Plain-JAX f32 reference of the PyTorch forward."""
    (wa1, ba1, wa2, ba2, wa3, ba3,
     wp1, bp1, wp2, bp2, w1, b1, w2, b2) = raw_params
    a = jnp.asarray(apt, jnp.float32).reshape(-1, _IN)
    p = jnp.asarray(pep, jnp.float32).reshape(-1, _IN)
    a = a @ wa1 + ba1
    a = a @ wa2 + ba2
    a = a @ wa3 + ba3
    p = p @ wp1 + bp1
    p = p @ wp2 + bp2
    x = jnp.concatenate([a, p], axis=1)
    x = x @ w1 + b1
    x = x @ w2 + b2
    return jax.nn.sigmoid(x)


def _reference_bf16(apt, pep, raw_params):
    """Same math with the kernel's bf16-input / f32-accumulate quantization."""
    (wa1, ba1, wa2, ba2, wa3, ba3,
     wp1, bp1, wp2, bp2, w1, b1, w2, b2) = raw_params
    bf16, f32 = jnp.bfloat16, jnp.float32

    def dot(x, w):
        return jnp.dot(x.astype(bf16), w.astype(bf16), preferred_element_type=f32)

    a = jnp.asarray(apt, jnp.float32).reshape(-1, _IN)
    p = jnp.asarray(pep, jnp.float32).reshape(-1, _IN)
    a = dot(a, wa1) + ba1
    a = dot(a, wa2) + ba2
    a = dot(a, wa3) + ba3
    p = dot(p, wp1) + bp1
    p = dot(p, wp2) + bp2
    x = dot(a, w1[:300]) + dot(p, w1[300:]) + b1
    x = dot(x, w2) + b2
    return jax.nn.sigmoid(x)


if __name__ == "__main__":
    key = jax.random.PRNGKey(0)
    k_params, k_apt, k_pep, k_batch = jax.random.split(key, 4)

    raw = init_params(k_params)
    packed = pack_params(raw)   # one-time: split fc1, pad, pack, cast to bf16

    # Single-sample path (matches the PyTorch forward: view(-1, 1).T), e.g.
    # an (8, 20) BLOSUM-encoded sequence per branch.
    apt = jax.random.normal(k_apt, (8, 20), jnp.float32)
    pep = jax.random.normal(k_pep, (8, 20), jnp.float32)
    out1 = jax.block_until_ready(blosum_linear_net(apt, pep, packed))
    assert out1.shape == (1, 1)
    ref1_bf16 = _reference_bf16(apt, pep, raw)
    ref1_f32 = _reference_f32(apt, pep, raw)
    assert jnp.allclose(out1, ref1_bf16, atol=5e-3, rtol=5e-3), (out1, ref1_bf16)
    assert jnp.allclose(out1, ref1_f32, atol=2e-2, rtol=2e-2), (out1, ref1_f32)

    # Batched path: grid over 128-row tiles, weights VMEM-resident across the
    # grid, batch axis "parallel" (two v7x TensorCores split it).
    B = 300
    apt_b = jax.random.normal(k_batch, (B, _IN), jnp.float32)
    pep_b = jax.random.normal(jax.random.fold_in(k_batch, 1), (B, _IN), jnp.float32)
    out_b = jax.block_until_ready(blosum_linear_net(apt_b, pep_b, packed))
    assert out_b.shape == (B, 1)
    refb_bf16 = _reference_bf16(apt_b, pep_b, raw)
    refb_f32 = _reference_f32(apt_b, pep_b, raw)
    assert jnp.allclose(out_b, refb_bf16, atol=5e-3, rtol=5e-3)
    assert jnp.allclose(out_b, refb_f32, atol=2e-2, rtol=2e-2)

    print("KERNEL_OK")
</pallas_src>

<mosaic_0001>
module attributes {stable_mosaic.version = 11 : i64} {
  func.func @_blosum_kernel(%arg0: i32, %arg1: memref<1x160xf32, #tpu.memory_space<vmem>>, %arg2: memref<1x160xf32, #tpu.memory_space<vmem>>, %arg3: memref<832x256xbf16, #tpu.memory_space<vmem>>, %arg4: memref<256x384xbf16, #tpu.memory_space<vmem>>, %arg5: memref<640x640xbf16, #tpu.memory_space<vmem>>, %arg6: memref<640x128xbf16, #tpu.memory_space<vmem>>, %arg7: memref<8x640xf32, #tpu.memory_space<vmem>>, %arg8: memref<1x1xf32, #tpu.memory_space<vmem>>) attributes {dimension_semantics = [#tpu.dimension_semantics<parallel>], iteration_bounds = array<i64: 1>, scalar_prefetch = 0 : i64, scratch_operands = 0 : i64, tpu.core_type = #tpu.core_type<tc>, window_params = [{transform_indices = @transform_0, window_bounds = array<i64: 1, 160>}, {transform_indices = @transform_1, window_bounds = array<i64: 1, 160>}, {pipeline_mode = #tpu.pipeline_mode<synchronous>, transform_indices = @transform_2, window_bounds = array<i64: 832, 256>}, {pipeline_mode = #tpu.pipeline_mode<synchronous>, transform_indices = @transform_3, window_bounds = array<i64: 256, 384>}, {pipeline_mode = #tpu.pipeline_mode<synchronous>, transform_indices = @transform_4, window_bounds = array<i64: 640, 640>}, {pipeline_mode = #tpu.pipeline_mode<synchronous>, transform_indices = @transform_5, window_bounds = array<i64: 640, 128>}, {pipeline_mode = #tpu.pipeline_mode<synchronous>, transform_indices = @transform_6, window_bounds = array<i64: 8, 640>}, {transform_indices = @transform_7, window_bounds = array<i64: 1, 1>}]} {
    %c0 = arith.constant 0 : index
    %c0_0 = arith.constant 0 : index
    %0 = vector.load %arg1[%c0, %c0_0] : memref<1x160xf32, #tpu.memory_space<vmem>>, vector<1x160xf32>
    %1 = arith.truncf %0 : vector<1x160xf32> to vector<1x160xbf16>
    %c0_1 = arith.constant 0 : index
    %c0_2 = arith.constant 0 : index
    %2 = vector.load %arg2[%c0_1, %c0_2] : memref<1x160xf32, #tpu.memory_space<vmem>>, vector<1x160xf32>
    %3 = arith.truncf %2 : vector<1x160xf32> to vector<1x160xbf16>
    %c0_3 = arith.constant 0 : index
    %c0_4 = arith.constant 0 : index
    %4 = vector.load %arg3[%c0_3, %c0_4] : memref<832x256xbf16, #tpu.memory_space<vmem>>, vector<160x256xbf16>
    %c160 = arith.constant 160 : index
    %c0_5 = arith.constant 0 : index
    %5 = vector.load %arg3[%c160, %c0_5] : memref<832x256xbf16, #tpu.memory_space<vmem>>, vector<256x256xbf16>
    %c416 = arith.constant 416 : index
    %c0_6 = arith.constant 0 : index
    %6 = vector.load %arg3[%c416, %c0_6] : memref<832x256xbf16, #tpu.memory_space<vmem>>, vector<160x256xbf16>
    %c576 = arith.constant 576 : index
    %c0_7 = arith.constant 0 : index
    %7 = vector.load %arg3[%c576, %c0_7] : memref<832x256xbf16, #tpu.memory_space<vmem>>, vector<256x256xbf16>
    %c0_8 = arith.constant 0 : index
    %c0_9 = arith.constant 0 : index
    %8 = vector.load %arg4[%c0_8, %c0_9] : memref<256x384xbf16, #tpu.memory_space<vmem>>, vector<256x384xbf16>
    %c0_10 = arith.constant 0 : index
    %c0_11 = arith.constant 0 : index
    %9 = vector.load %arg5[%c0_10, %c0_11] : memref<640x640xbf16, #tpu.memory_space<vmem>>, vector<384x640xbf16>
    %c384 = arith.constant 384 : index
    %c0_12 = arith.constant 0 : index
    %10 = vector.load %arg5[%c384, %c0_12] : memref<640x640xbf16, #tpu.memory_space<vmem>>, vector<256x640xbf16>
    %c0_13 = arith.constant 0 : index
    %c0_14 = arith.constant 0 : index
    %11 = vector.load %arg6[%c0_13, %c0_14] : memref<640x128xbf16, #tpu.memory_space<vmem>>, vector<640x128xbf16>
    %c0_15 = arith.constant 0 : index
    %c0_16 = arith.constant 0 : index
    %12 = vector.load %arg7[%c0_15, %c0_16] : memref<8x640xf32, #tpu.memory_space<vmem>>, vector<1x256xf32>
    %c1 = arith.constant 1 : index
    %c0_17 = arith.constant 0 : index
    %13 = vector.load %arg7[%c1, %c0_17] : memref<8x640xf32, #tpu.memory_space<vmem>>, vector<1x256xf32>
    %c2 = arith.constant 2 : index
    %c0_18 = arith.constant 0 : index
    %14 = vector.load %arg7[%c2, %c0_18] : memref<8x640xf32, #tpu.memory_space<vmem>>, vector<1x384xf32>
    %c3 = arith.constant 3 : index
    %c0_19 = arith.constant 0 : index
    %15 = vector.load %arg7[%c3, %c0_19] : memref<8x640xf32, #tpu.memory_space<vmem>>, vector<1x256xf32>
    %c4 = arith.constant 4 : index
    %c0_20 = arith.constant 0 : index
    %16 = vector.load %arg7[%c4, %c0_20] : memref<8x640xf32, #tpu.memory_space<vmem>>, vector<1x256xf32>
    %c5 = arith.constant 5 : index
    %c0_21 = arith.constant 0 : index
    %17 = vector.load %arg7[%c5, %c0_21] : memref<8x640xf32, #tpu.memory_space<vmem>>, vector<1x640xf32>
    %c6 = arith.constant 6 : index
    %c0_22 = arith.constant 0 : index
    %18 = vector.load %arg7[%c6, %c0_22] : memref<8x640xf32, #tpu.memory_space<vmem>>, vector<1x1xf32>
    %cst = arith.constant dense<0.000000e+00> : vector<1x256xf32>
    %19 = tpu.matmul %1, %4, %cst {dimension_numbers = #tpu.dot_dimension_numbers<[1], [0], [0], [1], [0, 0, 1, 1], [], []>} : vector<1x160xbf16>, vector<160x256xbf16>, vector<1x256xf32> -> vector<1x256xf32>
    %20 = arith.addf %19, %12 : vector<1x256xf32>
    %21 = arith.truncf %20 : vector<1x256xf32> to vector<1x256xbf16>
    %cst_23 = arith.constant dense<0.000000e+00> : vector<1x256xf32>
    %22 = tpu.matmul %21, %5, %cst_23 {dimension_numbers = #tpu.dot_dimension_numbers<[1], [0], [0], [1], [0, 0, 1, 1], [], []>} : vector<1x256xbf16>, vector<256x256xbf16>, vector<1x256xf32> -> vector<1x256xf32>
    %23 = arith.addf %22, %13 : vector<1x256xf32>
    %24 = arith.truncf %23 : vector<1x256xf32> to vector<1x256xbf16>
    %cst_24 = arith.constant dense<0.000000e+00> : vector<1x384xf32>
    %25 = tpu.matmul %24, %8, %cst_24 {dimension_numbers = #tpu.dot_dimension_numbers<[1], [0], [0], [1], [0, 0, 1, 1], [], []>} : vector<1x256xbf16>, vector<256x384xbf16>, vector<1x384xf32> -> vector<1x384xf32>
    %26 = arith.addf %25, %14 : vector<1x384xf32>
    %cst_25 = arith.constant dense<0.000000e+00> : vector<1x256xf32>
    %27 = tpu.matmul %3, %6, %cst_25 {dimension_numbers = #tpu.dot_dimension_numbers<[1], [0], [0], [1], [0, 0, 1, 1], [], []>} : vector<1x160xbf16>, vector<160x256xbf16>, vector<1x256xf32> -> vector<1x256xf32>
    %28 = arith.addf %27, %15 : vector<1x256xf32>
    %29 = arith.truncf %28 : vector<1x256xf32> to vector<1x256xbf16>
    %cst_26 = arith.constant dense<0.000000e+00> : vector<1x256xf32>
    %30 = tpu.matmul %29, %7, %cst_26 {dimension_numbers = #tpu.dot_dimension_numbers<[1], [0], [0], [1], [0, 0, 1, 1], [], []>} : vector<1x256xbf16>, vector<256x256xbf16>, vector<1x256xf32> -> vector<1x256xf32>
    %31 = arith.addf %30, %16 : vector<1x256xf32>
    %32 = arith.truncf %26 : vector<1x384xf32> to vector<1x384xbf16>
    %cst_27 = arith.constant dense<0.000000e+00> : vector<1x640xf32>
    %33 = tpu.matmul %32, %9, %cst_27 {dimension_numbers = #tpu.dot_dimension_numbers<[1], [0], [0], [1], [0, 0, 1, 1], [], []>} : vector<1x384xbf16>, vector<384x640xbf16>, vector<1x640xf32> -> vector<1x640xf32>
    %34 = arith.truncf %31 : vector<1x256xf32> to vector<1x256xbf16>
    %cst_28 = arith.constant dense<0.000000e+00> : vector<1x640xf32>
    %35 = tpu.matmul %34, %10, %cst_28 {dimension_numbers = #tpu.dot_dimension_numbers<[1], [0], [0], [1], [0, 0, 1, 1], [], []>} : vector<1x256xbf16>, vector<256x640xbf16>, vector<1x640xf32> -> vector<1x640xf32>
    %36 = arith.addf %33, %35 : vector<1x640xf32>
    %37 = arith.addf %36, %17 : vector<1x640xf32>
    %38 = arith.truncf %37 : vector<1x640xf32> to vector<1x640xbf16>
    %cst_29 = arith.constant dense<0.000000e+00> : vector<1x128xf32>
    %39 = tpu.matmul %38, %11, %cst_29 {dimension_numbers = #tpu.dot_dimension_numbers<[1], [0], [0], [1], [0, 0, 1, 1], [], []>} : vector<1x640xbf16>, vector<640x128xbf16>, vector<1x128xf32> -> vector<1x128xf32>
    %40 = vector.extract_strided_slice %39 {offsets = [0, 0], sizes = [1, 1], strides = [1, 1]} : vector<1x128xf32> to vector<1x1xf32>
    %41 = arith.addf %40, %18 : vector<1x1xf32>
    %42 = arith.negf %41 : vector<1x1xf32>
    %43 = math.exp %42 : vector<1x1xf32>
    %cst_30 = arith.constant 1.000000e+00 : f32
    %44 = vector.broadcast %cst_30 : f32 to vector<1x1xf32>
    %45 = arith.addf %44, %43 : vector<1x1xf32>
    %46 = arith.divf %44, %45 : vector<1x1xf32>
    %c0_31 = arith.constant 0 : index
    %c0_32 = arith.constant 0 : index
    %47 = vector.load %arg8[%c0_31, %c0_32] : memref<1x1xf32, #tpu.memory_space<vmem>>, vector<1x1xf32>
    tpu.vector_store %arg8[%c0_31, %c0_32], %46 {strides = array<i32>} : memref<1x1xf32, #tpu.memory_space<vmem>>, vector<1x1xf32>,
    return
  }
  func.func @transform_0(%arg0: i32) -> (i32, i32) {
    %c0_i32 = arith.constant 0 : i32
    %c0_i32_0 = arith.constant 0 : i32
    return %arg0, %c0_i32 : i32, i32
  }
  func.func @transform_1(%arg0: i32) -> (i32, i32) {
    %c0_i32 = arith.constant 0 : i32
    %c0_i32_0 = arith.constant 0 : i32
    return %arg0, %c0_i32 : i32, i32
  }
  func.func @transform_2(%arg0: i32) -> (i32, i32) {
    %c0_i32 = arith.constant 0 : i32
    %c0_i32_0 = arith.constant 0 : i32
    %c0_i32_1 = arith.constant 0 : i32
    return %c0_i32, %c0_i32_0 : i32, i32
  }
  func.func @transform_3(%arg0: i32) -> (i32, i32) {
    %c0_i32 = arith.constant 0 : i32
    %c0_i32_0 = arith.constant 0 : i32
    %c0_i32_1 = arith.constant 0 : i32
    return %c0_i32, %c0_i32_0 : i32, i32
  }
  func.func @transform_4(%arg0: i32) -> (i32, i32) {
    %c0_i32 = arith.constant 0 : i32
    %c0_i32_0 = arith.constant 0 : i32
    %c0_i32_1 = arith.constant 0 : i32
    return %c0_i32, %c0_i32_0 : i32, i32
  }
  func.func @transform_5(%arg0: i32) -> (i32, i32) {
    %c0_i32 = arith.constant 0 : i32
    %c0_i32_0 = arith.constant 0 : i32
    %c0_i32_1 = arith.constant 0 : i32
    return %c0_i32, %c0_i32_0 : i32, i32
  }
  func.func @transform_6(%arg0: i32) -> (i32, i32) {
    %c0_i32 = arith.constant 0 : i32
    %c0_i32_0 = arith.constant 0 : i32
    %c0_i32_1 = arith.constant 0 : i32
    return %c0_i32, %c0_i32_0 : i32, i32
  }
  func.func @transform_7(%arg0: i32) -> (i32, i32) {
    %c0_i32 = arith.constant 0 : i32
    %c0_i32_0 = arith.constant 0 : i32
    return %arg0, %c0_i32 : i32, i32
  }
}

</mosaic_0001>

<llo_original>
// kernel: tpu_custom_call.1
$region0: #{tpu_custom_call.1}
  #allocation0 [shape = 'u32[]', space=smem, size = 0x4, offset = 0x4, fixed_abs, tag = 'smem constant byte address 0x4 - core index']
  #allocation1 [shape = 'u32[144,128]{1,0:T(1,128)}', space=vmem, size = 0x12000, scoped, tag = 'internal scratch']
  %s0 = inlined_call_operand.hbm [shape: f32[1,160], index: 0, kind: input, shape index: {}]
  %s1 = inlined_call_operand.vmem [shape: f32[1,160], index: 1, kind: input, shape index: {}]
  %s2 = inlined_call_operand.hbm [shape: bf16[832,256], index: 2, kind: input, shape index: {}]
  %s3 = inlined_call_operand.hbm [shape: bf16[256,384], index: 3, kind: input, shape index: {}]
  %s4 = inlined_call_operand.hbm [shape: bf16[640,640], index: 4, kind: input, shape index: {}]
  %s5 = inlined_call_operand.hbm [shape: bf16[640,128], index: 5, kind: input, shape index: {}]
  %s6 = inlined_call_operand.hbm [shape: f32[8,640], index: 6, kind: input, shape index: {}]
  %s7 = inlined_call_operand.hbm [shape: f32[1,1], index: 7, kind: output, shape index: {}]
  %s8 = sld [smem:[#allocation0]]
  $region62: #{tpu_custom_call.1} parent=0
    _
  %s10 = ssub.s32 1, %s8
  %s11 = scalar_select 0, %s10, %s8
  $region1: #{tpu_custom_call.1} parent=0
    #allocation2 [shape = 'u8[1024]{0}', space=vmem, size = 0x400, scoped, tag = 'input window, operand 0, single buffered']
    #allocation3 [shape = 's32[1]{0}', space=sflag, size = 0x4, scoped, tag = 'scoped memory for tpu_custom_call.1']
    #allocation4 [shape = 's32[1]{0}', space=sflag, size = 0x4, scoped, tag = 'scoped memory for tpu_custom_call.1']
    #allocation5 [shape = 'u8[425984]{0}', space=vmem, size = 0x68000, scoped, tag = 'input window, operand 2, single buffered']
    #allocation6 [shape = 's32[1]{0}', space=sflag, size = 0x4, scoped, tag = 'scoped memory for tpu_custom_call.1']
    #allocation7 [shape = 'u8[196608]{0}', space=vmem, size = 0x30000, scoped, tag = 'input window, operand 3, single buffered']
    #allocation8 [shape = 'u8[819200]{0}', space=vmem, size = 0xc8000, scoped, tag = 'input window, operand 4, single buffered']
    #allocation9 [shape = 's32[1]{0}', space=sflag, size = 0x4, scoped, tag = 'scoped memory for tpu_custom_call.1']
    #allocation10 [shape = 'u8[163840]{0}', space=vmem, size = 0x28000, scoped, tag = 'input window, operand 5, single buffered']
    #allocation11 [shape = 'u8[20480]{0}', space=vmem, size = 0x5000, scoped, tag = 'input window, operand 6, single buffered']
    #allocation12 [shape = 's32[1]{0}', space=sflag, size = 0x4, scoped, tag = 'scoped memory for tpu_custom_call.1']
    #allocation13 [shape = 'u8[512]{0}', space=vmem, size = 0x400, scoped, tag = 'output window, operand 0, single buffered']
    %12 = vsyncpa [#allocation3], 0
    %13 = vsyncpa [#allocation6], 0
    %14 = vsyncpa [#allocation9], 0
    %15 = vsyncpa [#allocation12], 0
    %16 = vsyncpa [#allocation4], 0
    // Predicated region
    $region2: #{tpu_custom_call.1} parent=1 // pred_check
      _
    $region3: #{tpu_custom_call.1} parent=1 // pred_check_branch
      %18 = sbr.rel (0) target = $region5
    $region4: #{tpu_custom_call.1} parent=1 // pred_region
      %s20 = ssub.s32 32, 32
      %21 = vsyncadd [#allocation3], %s20
      %s23 = sshll.u32 [#allocation2], 4
      %s24 = int_to_ptr.vmem [resolvable:$true] %s23
      %26 = dma.hbm_to_vmem [thread:$0]  %s0, 32, %s24, [#allocation3]
    $region5: #{tpu_custom_call.1} parent=1 // pred_fallthru
      _
    // Predicated region
    $region6: #{tpu_custom_call.1} parent=1 // pred_check
      _
    $region7: #{tpu_custom_call.1} parent=1 // pred_check_branch
      %28 = sbr.rel (0) target = $region9
    $region8: #{tpu_custom_call.1} parent=1 // pred_region
      _
    $region9: #{tpu_custom_call.1} parent=1 // pred_fallthru
      _
    // Predicated region
    $region10: #{tpu_custom_call.1} parent=1 // pred_check
      _
    $region11: #{tpu_custom_call.1} parent=1 // pred_check_branch
      %30 = sbr.rel (0) target = $region13
    $region12: #{tpu_custom_call.1} parent=1 // pred_region
      %s32 = ssub.s32 13312, 13312
      %33 = vsyncadd [#allocation6], %s32
      %s34 = sshll.u32 [#allocation5], 4
      %s35 = int_to_ptr.vmem [resolvable:$true] %s34
      %40 = dma.hbm_to_vmem [thread:$0]  %s2, 13312, %s35, [#allocation6], 128, 128, 8
    $region13: #{tpu_custom_call.1} parent=1 // pred_fallthru
      _
    // Predicated region
    $region14: #{tpu_custom_call.1} parent=1 // pred_check
      _
    $region15: #{tpu_custom_call.1} parent=1 // pred_check_branch
      %42 = sbr.rel (0) target = $region17
    $region16: #{tpu_custom_call.1} parent=1 // pred_region
      %s44 = ssub.s32 6144, 6144
      %45 = vsyncadd [#allocation6], %s44
      %s46 = sshll.u32 [#allocation7], 4
      %s47 = int_to_ptr.vmem [resolvable:$true] %s46
      %52 = dma.hbm_to_vmem [thread:$0]  %s3, 6144, %s47, [#allocation6], 192, 192, 12
    $region17: #{tpu_custom_call.1} parent=1 // pred_fallthru
      _
    // Predicated region
    $region18: #{tpu_custom_call.1} parent=1 // pred_check
      _
    $region19: #{tpu_custom_call.1} parent=1 // pred_check_branch
      %54 = sbr.rel (0) target = $region21
    $region20: #{tpu_custom_call.1} parent=1 // pred_region
      %s56 = ssub.s32 25600, 25600
      %57 = vsyncadd [#allocation9], %s56
      %s58 = sshll.u32 [#allocation8], 4
      %s59 = int_to_ptr.vmem [resolvable:$true] %s58
      %64 = dma.hbm_to_vmem [thread:$0]  %s4, 25600, %s59, [#allocation9], 320, 320, 20
    $region21: #{tpu_custom_call.1} parent=1 // pred_fallthru
      _
    // Predicated region
    $region22: #{tpu_custom_call.1} parent=1 // pred_check
      _
    $region23: #{tpu_custom_call.1} parent=1 // pred_check_branch
      %66 = sbr.rel (0) target = $region25
    $region24: #{tpu_custom_call.1} parent=1 // pred_region
      %s68 = ssub.s32 5120, 5120
      %69 = vsyncadd [#allocation9], %s68
      %s70 = sshll.u32 [#allocation10], 4
      %s71 = int_to_ptr.vmem [resolvable:$true] %s70
      %76 = dma.hbm_to_vmem [thread:$0]  %s5, 5120, %s71, [#allocation9], 64, 64, 4
    $region25: #{tpu_custom_call.1} parent=1 // pred_fallthru
      _
    // Predicated region
    $region26: #{tpu_custom_call.1} parent=1 // pred_check
      _
    $region27: #{tpu_custom_call.1} parent=1 // pred_check_branch
      %78 = sbr.rel (0) target = $region29
    $region28: #{tpu_custom_call.1} parent=1 // pred_region
      %s80 = ssub.s32 640, 640
      %81 = vsyncadd [#allocation12], %s80
      %s83 = sshll.u32 [#allocation11], 4
      %s84 = int_to_ptr.vmem [resolvable:$true] %s83
      %86 = dma.hbm_to_vmem [thread:$0]  %s6, 640, %s84, [#allocation12]
    $region29: #{tpu_custom_call.1} parent=1 // pred_fallthru
      _
    // Predicated region
    $region30: #{tpu_custom_call.1} parent=1 // pred_check
      _
    $region31: #{tpu_custom_call.1} parent=1 // pred_check_branch
      %88 = sbr.rel (0) target = $region33
    $region32: #{tpu_custom_call.1} parent=1 // pred_region
      %89 = dma.done [#allocation3], 32
    $region33: #{tpu_custom_call.1} parent=1 // pred_fallthru
      _
    // Predicated region
    $region34: #{tpu_custom_call.1} parent=1 // pred_check
      _
    $region35: #{tpu_custom_call.1} parent=1 // pred_check_branch
      %91 = sbr.rel (0) target = $region37
    $region36: #{tpu_custom_call.1} parent=1 // pred_region
      %92 = dma.done [#allocation6], 13312
    $region37: #{tpu_custom_call.1} parent=1 // pred_fallthru
      _
    // Predicated region
    $region38: #{tpu_custom_call.1} parent=1 // pred_check
      _
    $region39: #{tpu_custom_call.1} parent=1 // pred_check_branch
      %94 = sbr.rel (0) target = $region41
    $region40: #{tpu_custom_call.1} parent=1 // pred_region
      %95 = dma.done [#allocation6], 6144
    $region41: #{tpu_custom_call.1} parent=1 // pred_fallthru
      _
    // Predicated region
    $region42: #{tpu_custom_call.1} parent=1 // pred_check
      _
    $region43: #{tpu_custom_call.1} parent=1 // pred_check_branch
      %97 = sbr.rel (0) target = $region45
    $region44: #{tpu_custom_call.1} parent=1 // pred_region
      %98 = dma.done [#allocation9], 25600
    $region45: #{tpu_custom_call.1} parent=1 // pred_fallthru
      _
    // Predicated region
    $region46: #{tpu_custom_call.1} parent=1 // pred_check
      _
    $region47: #{tpu_custom_call.1} parent=1 // pred_check_branch
      %100 = sbr.rel (0) target = $region49
    $region48: #{tpu_custom_call.1} parent=1 // pred_region
      %101 = dma.done [#allocation9], 5120
    $region49: #{tpu_custom_call.1} parent=1 // pred_fallthru
      _
    // Predicated region
    $region50: #{tpu_custom_call.1} parent=1 // pred_check
      _
    $region51: #{tpu_custom_call.1} parent=1 // pred_check_branch
      %103 = sbr.rel (0) target = $region53
    $region52: #{tpu_custom_call.1} parent=1 // pred_region
      %104 = dma.done [#allocation12], 640
    $region53: #{tpu_custom_call.1} parent=1 // pred_fallthru
      _
    %v106 = vld [vmem:[#allocation2] sm:$0x3]
    %v108 = vlaneseq
    %v109 = vshrl.u32 %v108, 7
    %v110 = vsub.s32 0, %v109
    %v111 = vrot.slane %v106, %v110
    %v112 = vlaneseq
    %v113 = vshrl.u32 %v112, 7
    %v114 = vsub.s32 1, %v113
    %v115 = vrot.slane %v106, %v114
    %v118 = vpack.c.bf16 %v111, %v111
    %v119 = vpack.c.bf16 %v115, %v115
    %v120 = vld [vmem:[%s1] sm:$0x3]
    %v122 = vlaneseq
    %v123 = vshrl.u32 %v122, 7
    %v124 = vsub.s32 0, %v123
    %v125 = vrot.slane %v120, %v124
    %v126 = vlaneseq
    %v127 = vshrl.u32 %v126, 7
    %v128 = vsub.s32 1, %v127
    %v129 = vrot.slane %v120, %v128
    %v132 = vpack.c.bf16 %v125, %v125
    %v133 = vpack.c.bf16 %v129, %v129
    %v134 = vld [vmem:[#allocation5] sm:$0xff]
    %v135 = vld [vmem:[#allocation5 + $0x8] sm:$0xff]
    %v136 = vld [vmem:[#allocation5 + $0x10] sm:$0xff]
    %v137 = vld [vmem:[#allocation5 + $0x18] sm:$0xff]
    %v138 = vld [vmem:[#allocation5 + $0x20] sm:$0xff]
    %v139 = vld [vmem:[#allocation5 + $0x28] sm:$0xff]
    %v140 = vld [vmem:[#allocation5 + $0x30] sm:$0xff]
    %v141 = vld [vmem:[#allocation5 + $0x38] sm:$0xff]
    %v142 = vld [vmem:[#allocation5 + $0x40] sm:$0xff]
    %v143 = vld [vmem:[#allocation5 + $0x48] sm:$0xff]
    %v144 = vld [vmem:[#allocation5 + $0x50] sm:$0xff]
    %v145 = vld [vmem:[#allocation5 + $0x58] sm:$0xff]
    %v146 = vld [vmem:[#allocation5 + $0x60] sm:$0xff]
    %v147 = vld [vmem:[#allocation5 + $0x68] sm:$0xff]
    %v148 = vld [vmem:[#allocation5 + $0x70] sm:$0xff]
    %v149 = vld [vmem:[#allocation5 + $0x78] sm:$0xff]
    %v150 = vld [vmem:[#allocation5 + $0x80] sm:$0xff]
    %v151 = vld [vmem:[#allocation5 + $0x88] sm:$0xff]
    %v152 = vld [vmem:[#allocation5 + $0x90] sm:$0xff]
    %v153 = vld [vmem:[#allocation5 + $0x98] sm:$0xff]
    %v154 = vld [vmem:[#allocation5 + $0xa0] sm:$0xff]
    %v155 = vld [vmem:[#allocation5 + $0xa8] sm:$0xff]
    %v156 = vld [vmem:[#allocation5 + $0xb0] sm:$0xff]
    %v157 = vld [vmem:[#allocation5 + $0xb8] sm:$0xff]
    %v158 = vld [vmem:[#allocation5 + $0xc0] sm:$0xff]
    %v159 = vld [vmem:[#allocation5 + $0xc8] sm:$0xff]
    %v160 = vld [vmem:[#allocation5 + $0xd0] sm:$0xff]
    %v161 = vld [vmem:[#allocation5 + $0xd8] sm:$0xff]
    %v162 = vld [vmem:[#allocation5 + $0xe0] sm:$0xff]
    %v163 = vld [vmem:[#allocation5 + $0xe8] sm:$0xff]
    %v164 = vld [vmem:[#allocation5 + $0xf0] sm:$0xff]
    %v165 = vld [vmem:[#allocation5 + $0xf8] sm:$0xff]
    %v166 = vld [vmem:[#allocation5 + $0x100] sm:$0xff]
    %v167 = vld [vmem:[#allocation5 + $0x108] sm:$0xff]
    %v168 = vld [vmem:[#allocation5 + $0x110] sm:$0xff]
    %v169 = vld [vmem:[#allocation5 + $0x118] sm:$0xff]
    %v170 = vld [vmem:[#allocation5 + $0x120] sm:$0xff]
    %v171 = vld [vmem:[#allocation5 + $0x128] sm:$0xff]
    %v172 = vld [vmem:[#allocation5 + $0x130] sm:$0xff]
    %v173 = vld [vmem:[#allocation5 + $0x138] sm:$0xff]
    %v174 = vld [vmem:[#allocation5 + $0x140] sm:$0xff]
    %v175 = vld [vmem:[#allocation5 + $0x148] sm:$0xff]
    %v176 = vld [vmem:[#allocation5 + $0x150] sm:$0xff]
    %v177 = vld [vmem:[#allocation5 + $0x158] sm:$0xff]
    %v178 = vld [vmem:[#allocation5 + $0x160] sm:$0xff]
    %v179 = vld [vmem:[#allocation5 + $0x168] sm:$0xff]
    %v180 = vld [vmem:[#allocation5 + $0x170] sm:$0xff]
    %v181 = vld [vmem:[#allocation5 + $0x178] sm:$0xff]
    %v182 = vld [vmem:[#allocation5 + $0x180] sm:$0xff]
    %v183 = vld [vmem:[#allocation5 + $0x188] sm:$0xff]
    %v184 = vld [vmem:[#allocation5 + $0x190] sm:$0xff]
    %v185 = vld [vmem:[#allocation5 + $0x198] sm:$0xff]
    %v186 = vld [vmem:[#allocation5 + $0x1a0] sm:$0xff]
    %v187 = vld [vmem:[#allocation5 + $0x1a8] sm:$0xff]
    %v188 = vld [vmem:[#allocation5 + $0x1b0] sm:$0xff]
    %v189 = vld [vmem:[#allocation5 + $0x1b8] sm:$0xff]
    %v190 = vld [vmem:[#allocation5 + $0x1c0] sm:$0xff]
    %v191 = vld [vmem:[#allocation5 + $0x1c8] sm:$0xff]
    %v192 = vld [vmem:[#allocation5 + $0x1d0] sm:$0xff]
    %v193 = vld [vmem:[#allocation5 + $0x1d8] sm:$0xff]
    %v194 = vld [vmem:[#allocation5 + $0x1e0] sm:$0xff]
    %v195 = vld [vmem:[#allocation5 + $0x1e8] sm:$0xff]
    %v196 = vld [vmem:[#allocation5 + $0x1f0] sm:$0xff]
    %v197 = vld [vmem:[#allocation5 + $0x1f8] sm:$0xff]
    %v198 = vld [vmem:[#allocation5 + $0x200] sm:$0xff]
    %v199 = vld [vmem:[#allocation5 + $0x208] sm:$0xff]
    %v200 = vld [vmem:[#allocation5 + $0x210] sm:$0xff]
    %v201 = vld [vmem:[#allocation5 + $0x218] sm:$0xff]
    %v202 = vld [vmem:[#allocation5 + $0x220] sm:$0xff]
    %v203 = vld [vmem:[#allocation5 + $0x228] sm:$0xff]
    %v204 = vld [vmem:[#allocation5 + $0x230] sm:$0xff]
    %v205 = vld [vmem:[#allocation5 + $0x238] sm:$0xff]
    %v206 = vld [vmem:[#allocation5 + $0x240] sm:$0xff]
    %v207 = vld [vmem:[#allocation5 + $0x248] sm:$0xff]
    %v208 = vld [vmem:[#allocation5 + $0x250] sm:$0xff]
    %v209 = vld [vmem:[#allocation5 + $0x258] sm:$0xff]
    %v210 = vld [vmem:[#allocation5 + $0x260] sm:$0xff]
    %v211 = vld [vmem:[#allocation5 + $0x268] sm:$0xff]
    %v212 = vld [vmem:[#allocation5 + $0x270] sm:$0xff]
    %v213 = vld [vmem:[#allocation5 + $0x278] sm:$0xff]
    %v214 = vld [vmem:[#allocation5 + $0x280] sm:$0xff]
    %v215 = vld [vmem:[#allocation5 + $0x288] sm:$0xff]
    %v216 = vld [vmem:[#allocation5 + $0x290] sm:$0xff]
    %v217 = vld [vmem:[#allocation5 + $0x298] sm:$0xff]
    %v218 = vld [vmem:[#allocation5 + $0x2a0] sm:$0xff]
    %v219 = vld [vmem:[#allocation5 + $0x2a8] sm:$0xff]
    %v220 = vld [vmem:[#allocation5 + $0x2b0] sm:$0xff]
    %v221 = vld [vmem:[#allocation5 + $0x2b8] sm:$0xff]
    %v222 = vld [vmem:[#allocation5 + $0x2c0] sm:$0xff]
    %v223 = vld [vmem:[#allocation5 + $0x2c8] sm:$0xff]
    %v224 = vld [vmem:[#allocation5 + $0x2d0] sm:$0xff]
    %v225 = vld [vmem:[#allocation5 + $0x2d8] sm:$0xff]
    %v226 = vld [vmem:[#allocation5 + $0x2e0] sm:$0xff]
    %v227 = vld [vmem:[#allocation5 + $0x2e8] sm:$0xff]
    %v228 = vld [vmem:[#allocation5 + $0x2f0] sm:$0xff]
    %v229 = vld [vmem:[#allocation5 + $0x2f8] sm:$0xff]
    %v230 = vld [vmem:[#allocation5 + $0x300] sm:$0xff]
    %v231 = vld [vmem:[#allocation5 + $0x308] sm:$0xff]
    %v232 = vld [vmem:[#allocation5 + $0x310] sm:$0xff]
    %v233 = vld [vmem:[#allocation5 + $0x318] sm:$0xff]
    %v234 = vld [vmem:[#allocation5 + $0x320] sm:$0xff]
    %v235 = vld [vmem:[#allocation5 + $0x328] sm:$0xff]
    %v236 = vld [vmem:[#allocation5 + $0x330] sm:$0xff]
    %v237 = vld [vmem:[#allocation5 + $0x338] sm:$0xff]
    %v238 = vld [vmem:[#allocation7] sm:$0xff]
    %v239 = vld [vmem:[#allocation7 + $0x8] sm:$0xf]
    %v240 = vld [vmem:[#allocation7 + $0xc] sm:$0xff]
    %v241 = vld [vmem:[#allocation7 + $0x14] sm:$0xf]
    %v242 = vld [vmem:[#allocation7 + $0x18] sm:$0xff]
    %v243 = vld [vmem:[#allocation7 + $0x20] sm:$0xf]
    %v244 = vld [vmem:[#allocation7 + $0x24] sm:$0xff]
    %v245 = vld [vmem:[#allocation7 + $0x2c] sm:$0xf]
    %v246 = vld [vmem:[#allocation7 + $0x30] sm:$0xff]
    %v247 = vld [vmem:[#allocation7 + $0x38] sm:$0xf]
    %v248 = vld [vmem:[#allocation7 + $0x3c] sm:$0xff]
    %v249 = vld [vmem:[#allocation7 + $0x44] sm:$0xf]
    %v250 = vld [vmem:[#allocation7 + $0x48] sm:$0xff]
    %v251 = vld [vmem:[#allocation7 + $0x50] sm:$0xf]
    %v252 = vld [vmem:[#allocation7 + $0x54] sm:$0xff]
    %v253 = vld [vmem:[#allocation7 + $0x5c] sm:$0xf]
    %v254 = vld [vmem:[#allocation7 + $0x60] sm:$0xff]
    %v255 = vld [vmem:[#allocation7 + $0x68] sm:$0xf]
    %v256 = vld [vmem:[#allocation7 + $0x6c] sm:$0xff]
    %v257 = vld [vmem:[#allocation7 + $0x74] sm:$0xf]
    %v258 = vld [vmem:[#allocation7 + $0x78] sm:$0xff]
    %v259 = vld [vmem:[#allocation7 + $0x80] sm:$0xf]
    %v260 = vld [vmem:[#allocation7 + $0x84] sm:$0xff]
    %v261 = vld [vmem:[#allocation7 + $0x8c] sm:$0xf]
    %v262 = vld [vmem:[#allocation7 + $0x90] sm:$0xff]
    %v263 = vld [vmem:[#allocation7 + $0x98] sm:$0xf]
    %v264 = vld [vmem:[#allocation7 + $0x9c] sm:$0xff]
    %v265 = vld [vmem:[#allocation7 + $0xa4] sm:$0xf]
    %v266 = vld [vmem:[#allocation7 + $0xa8] sm:$0xff]
    %v267 = vld [vmem:[#allocation7 + $0xb0] sm:$0xf]
    %v268 = vld [vmem:[#allocation7 + $0xb4] sm:$0xff]
    %v269 = vld [vmem:[#allocation7 + $0xbc] sm:$0xf]
    %v270 = vld [vmem:[#allocation7 + $0xc0] sm:$0xff]
    %v271 = vld [vmem:[#allocation7 + $0xc8] sm:$0xf]
    %v272 = vld [vmem:[#allocation7 + $0xcc] sm:$0xff]
    %v273 = vld [vmem:[#allocation7 + $0xd4] sm:$0xf]
    %v274 = vld [vmem:[#allocation7 + $0xd8] sm:$0xff]
    %v275 = vld [vmem:[#allocation7 + $0xe0] sm:$0xf]
    %v276 = vld [vmem:[#allocation7 + $0xe4] sm:$0xff]
    %v277 = vld [vmem:[#allocation7 + $0xec] sm:$0xf]
    %v278 = vld [vmem:[#allocation7 + $0xf0] sm:$0xff]
    %v279 = vld [vmem:[#allocation7 + $0xf8] sm:$0xf]
    %v280 = vld [vmem:[#allocation7 + $0xfc] sm:$0xff]
    %v281 = vld [vmem:[#allocation7 + $0x104] sm:$0xf]
    %v282 = vld [vmem:[#allocation7 + $0x108] sm:$0xff]
    %v283 = vld [vmem:[#allocation7 + $0x110] sm:$0xf]
    %v284 = vld [vmem:[#allocation7 + $0x114] sm:$0xff]
    %v285 = vld [vmem:[#allocation7 + $0x11c] sm:$0xf]
    %v286 = vld [vmem:[#allocation7 + $0x120] sm:$0xff]
    %v287 = vld [vmem:[#allocation7 + $0x128] sm:$0xf]
    %v288 = vld [vmem:[#allocation7 + $0x12c] sm:$0xff]
    %v289 = vld [vmem:[#allocation7 + $0x134] sm:$0xf]
    %v290 = vld [vmem:[#allocation7 + $0x138] sm:$0xff]
    %v291 = vld [vmem:[#allocation7 + $0x140] sm:$0xf]
    %v292 = vld [vmem:[#allocation7 + $0x144] sm:$0xff]
    %v293 = vld [vmem:[#allocation7 + $0x14c] sm:$0xf]
    %v294 = vld [vmem:[#allocation7 + $0x150] sm:$0xff]
    %v295 = vld [vmem:[#allocation7 + $0x158] sm:$0xf]
    %v296 = vld [vmem:[#allocation7 + $0x15c] sm:$0xff]
    %v297 = vld [vmem:[#allocation7 + $0x164] sm:$0xf]
    %v298 = vld [vmem:[#allocation7 + $0x168] sm:$0xff]
    %v299 = vld [vmem:[#allocation7 + $0x170] sm:$0xf]
    %v300 = vld [vmem:[#allocation7 + $0x174] sm:$0xff]
    %v301 = vld [vmem:[#allocation7 + $0x17c] sm:$0xf]
    %v302 = vld [vmem:[#allocation8] sm:$0xff]
    %v303 = vld [vmem:[#allocation8 + $0x8] sm:$0xff]
    %v304 = vld [vmem:[#allocation8 + $0x10] sm:$0xf]
    %v305 = vld [vmem:[#allocation8 + $0x14] sm:$0xff]
    %v306 = vld [vmem:[#allocation8 + $0x1c] sm:$0xff]
    %v307 = vld [vmem:[#allocation8 + $0x24] sm:$0xf]
    %v308 = vld [vmem:[#allocation8 + $0x28] sm:$0xff]
    %v309 = vld [vmem:[#allocation8 + $0x30] sm:$0xff]
    %v310 = vld [vmem:[#allocation8 + $0x38] sm:$0xf]
    %v311 = vld [vmem:[#allocation8 + $0x3c] sm:$0xff]
    %v312 = vld [vmem:[#allocation8 + $0x44] sm:$0xff]
    %v313 = vld [vmem:[#allocation8 + $0x4c] sm:$0xf]
    %v314 = vld [vmem:[#allocation8 + $0x50] sm:$0xff]
    %v315 = vld [vmem:[#allocation8 + $0x58] sm:$0xff]
    %v316 = vld [vmem:[#allocation8 + $0x60] sm:$0xf]
    %v317 = vld [vmem:[#allocation8 + $0x64] sm:$0xff]
    %v318 = vld [vmem:[#allocation8 + $0x6c] sm:$0xff]
    %v319 = vld [vmem:[#allocation8 + $0x74] sm:$0xf]
    %v320 = vld [vmem:[#allocation8 + $0x78] sm:$0xff]
    %v321 = vld [vmem:[#allocation8 + $0x80] sm:$0xff]
    %v322 = vld [vmem:[#allocation8 + $0x88] sm:$0xf]
    %v323 = vld [vmem:[#allocation8 + $0x8c] sm:$0xff]
    %v324 = vld [vmem:[#allocation8 + $0x94] sm:$0xff]
    %v325 = vld [vmem:[#allocation8 + $0x9c] sm:$0xf]
    %v326 = vld [vmem:[#allocation8 + $0xa0] sm:$0xff]
    %v327 = vld [vmem:[#allocation8 + $0xa8] sm:$0xff]
    %v328 = vld [vmem:[#allocation8 + $0xb0] sm:$0xf]
    %v329 = vld [vmem:[#allocation8 + $0xb4] sm:$0xff]
    %v330 = vld [vmem:[#allocation8 + $0xbc] sm:$0xff]
    %v331 = vld [vmem:[#allocation8 + $0xc4] sm:$0xf]
    %v332 = vld [vmem:[#allocation8 + $0xc8] sm:$0xff]
    %v333 = vld [vmem:[#allocation8 + $0xd0] sm:$0xff]
    %v334 = vld [vmem:[#allocation8 + $0xd8] sm:$0xf]
    %v335 = vld [vmem:[#allocation8 + $0xdc] sm:$0xff]
    %v336 = vld [vmem:[#allocation8 + $0xe4] sm:$0xff]
    %v337 = vld [vmem:[#allocation8 + $0xec] sm:$0xf]
    %v338 = vld [vmem:[#allocation8 + $0xf0] sm:$0xff]
    %v339 = vld [vmem:[#allocation8 + $0xf8] sm:$0xff]
    %v340 = vld [vmem:[#allocation8 + $0x100] sm:$0xf]
    %v341 = vld [vmem:[#allocation8 + $0x104] sm:$0xff]
    %v342 = vld [vmem:[#allocation8 + $0x10c] sm:$0xff]
    %v343 = vld [vmem:[#allocation8 + $0x114] sm:$0xf]
    %v344 = vld [vmem:[#allocation8 + $0x118] sm:$0xff]
    %v345 = vld [vmem:[#allocation8 + $0x120] sm:$0xff]
    %v346 = vld [vmem:[#allocation8 + $0x128] sm:$0xf]
    %v347 = vld [vmem:[#allocation8 + $0x12c] sm:$0xff]
    %v348 = vld [vmem:[#allocation8 + $0x134] sm:$0xff]
    %v349 = vld [vmem:[#allocation8 + $0x13c] sm:$0xf]
    %v350 = vld [vmem:[#allocation8 + $0x140] sm:$0xff]
    %v351 = vld [vmem:[#allocation8 + $0x148] sm:$0xff]
    %v352 = vld [vmem:[#allocation8 + $0x150] sm:$0xf]
    %v353 = vld [vmem:[#allocation8 + $0x154] sm:$0xff]
    %v354 = vld [vmem:[#allocation8 + $0x15c] sm:$0xff]
    %v355 = vld [vmem:[#allocation8 + $0x164] sm:$0xf]
    %v356 = vld [vmem:[#allocation8 + $0x168] sm:$0xff]
    %v357 = vld [vmem:[#allocation8 + $0x170] sm:$0xff]
    %v358 = vld [vmem:[#allocation8 + $0x178] sm:$0xf]
    %v359 = vld [vmem:[#allocation8 + $0x17c] sm:$0xff]
    %v360 = vld [vmem:[#allocation8 + $0x184] sm:$0xff]
    %v361 = vld [vmem:[#allocation8 + $0x18c] sm:$0xf]
    %v362 = vld [vmem:[#allocation8 + $0x190] sm:$0xff]
    %v363 = vld [vmem:[#allocation8 + $0x198] sm:$0xff]
    %v364 = vld [vmem:[#allocation8 + $0x1a0] sm:$0xf]
    %v365 = vld [vmem:[#allocation8 + $0x1a4] sm:$0xff]
    %v366 = vld [vmem:[#allocation8 + $0x1ac] sm:$0xff]
    %v367 = vld [vmem:[#allocation8 + $0x1b4] sm:$0xf]
    %v368 = vld [vmem:[#allocation8 + $0x1b8] sm:$0xff]
    %v369 = vld [vmem:[#allocation8 + $0x1c0] sm:$0xff]
    %v370 = vld [vmem:[#allocation8 + $0x1c8] sm:$0xf]
    %v371 = vld [vmem:[#allocation8 + $0x1cc] sm:$0xff]
    %v372 = vld [vmem:[#allocation8 + $0x1d4] sm:$0xff]
    %v373 = vld [vmem:[#allocation8 + $0x1dc] sm:$0xf]
    %v374 = vld [vmem:[#allocation8 + $0x1e0] sm:$0xff]
    %v375 = vld [vmem:[#allocation8 + $0x1e8] sm:$0xff]
    %v376 = vld [vmem:[#allocation8 + $0x1f0] sm:$0xf]
    %v377 = vld [vmem:[#allocation8 + $0x1f4] sm:$0xff]
    %v378 = vld [vmem:[#allocation8 + $0x1fc] sm:$0xff]
    %v379 = vld [vmem:[#allocation8 + $0x204] sm:$0xf]
    %v380 = vld [vmem:[#allocation8 + $0x208] sm:$0xff]
    %v381 = vld [vmem:[#allocation8 + $0x210] sm:$0xff]
    %v382 = vld [vmem:[#allocation8 + $0x218] sm:$0xf]
    %v383 = vld [vmem:[#allocation8 + $0x21c] sm:$0xff]
    %v384 = vld [vmem:[#allocation8 + $0x224] sm:$0xff]
    %v385 = vld [vmem:[#allocation8 + $0x22c] sm:$0xf]
    %v386 = vld [vmem:[#allocation8 + $0x230] sm:$0xff]
    %v387 = vld [vmem:[#allocation8 + $0x238] sm:$0xff]
    %v388 = vld [vmem:[#allocation8 + $0x240] sm:$0xf]
    %v389 = vld [vmem:[#allocation8 + $0x244] sm:$0xff]
    %v390 = vld [vmem:[#allocation8 + $0x24c] sm:$0xff]
    %v391 = vld [vmem:[#allocation8 + $0x254] sm:$0xf]
    %v392 = vld [vmem:[#allocation8 + $0x258] sm:$0xff]
    %v393 = vld [vmem:[#allocation8 + $0x260] sm:$0xff]
    %v394 = vld [vmem:[#allocation8 + $0x268] sm:$0xf]
    %v395 = vld [vmem:[#allocation8 + $0x26c] sm:$0xff]
    %v396 = vld [vmem:[#allocation8 + $0x274] sm:$0xff]
    %v397 = vld [vmem:[#allocation8 + $0x27c] sm:$0xf]
    %v398 = vld [vmem:[#allocation8 + $0x280] sm:$0xff]
    %v399 = vld [vmem:[#allocation8 + $0x288] sm:$0xff]
    %v400 = vld [vmem:[#allocation8 + $0x290] sm:$0xf]
    %v401 = vld [vmem:[#allocation8 + $0x294] sm:$0xff]
    %v402 = vld [vmem:[#allocation8 + $0x29c] sm:$0xff]
    %v403 = vld [vmem:[#allocation8 + $0x2a4] sm:$0xf]
    %v404 = vld [vmem:[#allocation8 + $0x2a8] sm:$0xff]
    %v405 = vld [vmem:[#allocation8 + $0x2b0] sm:$0xff]
    %v406 = vld [vmem:[#allocation8 + $0x2b8] sm:$0xf]
    %v407 = vld [vmem:[#allocation8 + $0x2bc] sm:$0xff]
    %v408 = vld [vmem:[#allocation8 + $0x2c4] sm:$0xff]
    %v409 = vld [vmem:[#allocation8 + $0x2cc] sm:$0xf]
    %v410 = vld [vmem:[#allocation8 + $0x2d0] sm:$0xff]
    %v411 = vld [vmem:[#allocation8 + $0x2d8] sm:$0xff]
    %v412 = vld [vmem:[#allocation8 + $0x2e0] sm:$0xf]
    %v413 = vld [vmem:[#allocation8 + $0x2e4] sm:$0xff]
    %v414 = vld [vmem:[#allocation8 + $0x2ec] sm:$0xff]
    %v415 = vld [vmem:[#allocation8 + $0x2f4] sm:$0xf]
    %v416 = vld [vmem:[#allocation8 + $0x2f8] sm:$0xff]
    %v417 = vld [vmem:[#allocation8 + $0x300] sm:$0xff]
    %v418 = vld [vmem:[#allocation8 + $0x308] sm:$0xf]
    %v419 = vld [vmem:[#allocation8 + $0x30c] sm:$0xff]
    %v420 = vld [vmem:[#allocation8 + $0x314] sm:$0xff]
    %v421 = vld [vmem:[#allocation8 + $0x31c] sm:$0xf]
    %v422 = vld [vmem:[#allocation8 + $0x320] sm:$0xff]
    %v423 = vld [vmem:[#allocation8 + $0x328] sm:$0xff]
    %v424 = vld [vmem:[#allocation8 + $0x330] sm:$0xf]
    %v425 = vld [vmem:[#allocation8 + $0x334] sm:$0xff]
    %v426 = vld [vmem:[#allocation8 + $0x33c] sm:$0xff]
    %v427 = vld [vmem:[#allocation8 + $0x344] sm:$0xf]
    %v428 = vld [vmem:[#allocation8 + $0x348] sm:$0xff]
    %v429 = vld [vmem:[#allocation8 + $0x350] sm:$0xff]
    %v430 = vld [vmem:[#allocation8 + $0x358] sm:$0xf]
    %v431 = vld [vmem:[#allocation8 + $0x35c] sm:$0xff]
    %v432 = vld [vmem:[#allocation8 + $0x364] sm:$0xff]
    %v433 = vld [vmem:[#allocation8 + $0x36c] sm:$0xf]
    %v434 = vld [vmem:[#allocation8 + $0x370] sm:$0xff]
    %v435 = vld [vmem:[#allocation8 + $0x378] sm:$0xff]
    %v436 = vld [vmem:[#allocation8 + $0x380] sm:$0xf]
    %v437 = vld [vmem:[#allocation8 + $0x384] sm:$0xff]
    %v438 = vld [vmem:[#allocation8 + $0x38c] sm:$0xff]
    %v439 = vld [vmem:[#allocation8 + $0x394] sm:$0xf]
    %v440 = vld [vmem:[#allocation8 + $0x398] sm:$0xff]
    %v441 = vld [vmem:[#allocation8 + $0x3a0] sm:$0xff]
    %v442 = vld [vmem:[#allocation8 + $0x3a8] sm:$0xf]
    %v443 = vld [vmem:[#allocation8 + $0x3ac] sm:$0xff]
    %v444 = vld [vmem:[#allocation8 + $0x3b4] sm:$0xff]
    %v445 = vld [vmem:[#allocation8 + $0x3bc] sm:$0xf]
    %v446 = vld [vmem:[#allocation8 + $0x3c0] sm:$0xff]
    %v447 = vld [vmem:[#allocation8 + $0x3c8] sm:$0xff]
    %v448 = vld [vmem:[#allocation8 + $0x3d0] sm:$0xf]
    %v449 = vld [vmem:[#allocation8 + $0x3d4] sm:$0xff]
    %v450 = vld [vmem:[#allocation8 + $0x3dc] sm:$0xff]
    %v451 = vld [vmem:[#allocation8 + $0x3e4] sm:$0xf]
    %v452 = vld [vmem:[#allocation8 + $0x3e8] sm:$0xff]
    %v453 = vld [vmem:[#allocation8 + $0x3f0] sm:$0xff]
    %v454 = vld [vmem:[#allocation8 + $0x3f8] sm:$0xf]
    %v455 = vld [vmem:[#allocation8 + $0x3fc] sm:$0xff]
    %v456 = vld [vmem:[#allocation8 + $0x404] sm:$0xff]
    %v457 = vld [vmem:[#allocation8 + $0x40c] sm:$0xf]
    %v458 = vld [vmem:[#allocation8 + $0x410] sm:$0xff]
    %v459 = vld [vmem:[#allocation8 + $0x418] sm:$0xff]
    %v460 = vld [vmem:[#allocation8 + $0x420] sm:$0xf]
    %v461 = vld [vmem:[#allocation8 + $0x424] sm:$0xff]
    %v462 = vld [vmem:[#allocation8 + $0x42c] sm:$0xff]
    %v463 = vld [vmem:[#allocation8 + $0x434] sm:$0xf]
    %v464 = vld [vmem:[#allocation8 + $0x438] sm:$0xff]
    %v465 = vld [vmem:[#allocation8 + $0x440] sm:$0xff]
    %v466 = vld [vmem:[#allocation8 + $0x448] sm:$0xf]
    %v467 = vld [vmem:[#allocation8 + $0x44c] sm:$0xff]
    %v468 = vld [vmem:[#allocation8 + $0x454] sm:$0xff]
    %v469 = vld [vmem:[#allocation8 + $0x45c] sm:$0xf]
    %v470 = vld [vmem:[#allocation8 + $0x460] sm:$0xff]
    %v471 = vld [vmem:[#allocation8 + $0x468] sm:$0xff]
    %v472 = vld [vmem:[#allocation8 + $0x470] sm:$0xf]
    %v473 = vld [vmem:[#allocation8 + $0x474] sm:$0xff]
    %v474 = vld [vmem:[#allocation8 + $0x47c] sm:$0xff]
    %v475 = vld [vmem:[#allocation8 + $0x484] sm:$0xf]
    %v476 = vld [vmem:[#allocation8 + $0x488] sm:$0xff]
    %v477 = vld [vmem:[#allocation8 + $0x490] sm:$0xff]
    %v478 = vld [vmem:[#allocation8 + $0x498] sm:$0xf]
    %v479 = vld [vmem:[#allocation8 + $0x49c] sm:$0xff]
    %v480 = vld [vmem:[#allocation8 + $0x4a4] sm:$0xff]
    %v481 = vld [vmem:[#allocation8 + $0x4ac] sm:$0xf]
    %v482 = vld [vmem:[#allocation8 + $0x4b0] sm:$0xff]
    %v483 = vld [vmem:[#allocation8 + $0x4b8] sm:$0xff]
    %v484 = vld [vmem:[#allocation8 + $0x4c0] sm:$0xf]
    %v485 = vld [vmem:[#allocation8 + $0x4c4] sm:$0xff]
    %v486 = vld [vmem:[#allocation8 + $0x4cc] sm:$0xff]
    %v487 = vld [vmem:[#allocation8 + $0x4d4] sm:$0xf]
    %v488 = vld [vmem:[#allocation8 + $0x4d8] sm:$0xff]
    %v489 = vld [vmem:[#allocation8 + $0x4e0] sm:$0xff]
    %v490 = vld [vmem:[#allocation8 + $0x4e8] sm:$0xf]
    %v491 = vld [vmem:[#allocation8 + $0x4ec] sm:$0xff]
    %v492 = vld [vmem:[#allocation8 + $0x4f4] sm:$0xff]
    %v493 = vld [vmem:[#allocation8 + $0x4fc] sm:$0xf]
    %v494 = vld [vmem:[#allocation8 + $0x500] sm:$0xff]
    %v495 = vld [vmem:[#allocation8 + $0x508] sm:$0xff]
    %v496 = vld [vmem:[#allocation8 + $0x510] sm:$0xf]
    %v497 = vld [vmem:[#allocation8 + $0x514] sm:$0xff]
    %v498 = vld [vmem:[#allocation8 + $0x51c] sm:$0xff]
    %v499 = vld [vmem:[#allocation8 + $0x524] sm:$0xf]
    %v500 = vld [vmem:[#allocation8 + $0x528] sm:$0xff]
    %v501 = vld [vmem:[#allocation8 + $0x530] sm:$0xff]
    %v502 = vld [vmem:[#allocation8 + $0x538] sm:$0xf]
    %v503 = vld [vmem:[#allocation8 + $0x53c] sm:$0xff]
    %v504 = vld [vmem:[#allocation8 + $0x544] sm:$0xff]
    %v505 = vld [vmem:[#allocation8 + $0x54c] sm:$0xf]
    %v506 = vld [vmem:[#allocation8 + $0x550] sm:$0xff]
    %v507 = vld [vmem:[#allocation8 + $0x558] sm:$0xff]
    %v508 = vld [vmem:[#allocation8 + $0x560] sm:$0xf]
    %v509 = vld [vmem:[#allocation8 + $0x564] sm:$0xff]
    %v510 = vld [vmem:[#allocation8 + $0x56c] sm:$0xff]
    %v511 = vld [vmem:[#allocation8 + $0x574] sm:$0xf]
    %v512 = vld [vmem:[#allocation8 + $0x578] sm:$0xff]
    %v513 = vld [vmem:[#allocation8 + $0x580] sm:$0xff]
    %v514 = vld [vmem:[#allocation8 + $0x588] sm:$0xf]
    %v515 = vld [vmem:[#allocation8 + $0x58c] sm:$0xff]
    %v516 = vld [vmem:[#allocation8 + $0x594] sm:$0xff]
    %v517 = vld [vmem:[#allocation8 + $0x59c] sm:$0xf]
    %v518 = vld [vmem:[#allocation8 + $0x5a0] sm:$0xff]
    %v519 = vld [vmem:[#allocation8 + $0x5a8] sm:$0xff]
    %v520 = vld [vmem:[#allocation8 + $0x5b0] sm:$0xf]
    %v521 = vld [vmem:[#allocation8 + $0x5b4] sm:$0xff]
    %v522 = vld [vmem:[#allocation8 + $0x5bc] sm:$0xff]
    %v523 = vld [vmem:[#allocation8 + $0x5c4] sm:$0xf]
    %v524 = vld [vmem:[#allocation8 + $0x5c8] sm:$0xff]
    %v525 = vld [vmem:[#allocation8 + $0x5d0] sm:$0xff]
    %v526 = vld [vmem:[#allocation8 + $0x5d8] sm:$0xf]
    %v527 = vld [vmem:[#allocation8 + $0x5dc] sm:$0xff]
    %v528 = vld [vmem:[#allocation8 + $0x5e4] sm:$0xff]
    %v529 = vld [vmem:[#allocation8 + $0x5ec] sm:$0xf]
    %v530 = vld [vmem:[#allocation8 + $0x5f0] sm:$0xff]
    %v531 = vld [vmem:[#allocation8 + $0x5f8] sm:$0xff]
    %v532 = vld [vmem:[#allocation8 + $0x600] sm:$0xf]
    %v533 = vld [vmem:[#allocation8 + $0x604] sm:$0xff]
    %v534 = vld [vmem:[#allocation8 + $0x60c] sm:$0xff]
    %v535 = vld [vmem:[#allocation8 + $0x614] sm:$0xf]
    %v536 = vld [vmem:[#allocation8 + $0x618] sm:$0xff]
    %v537 = vld [vmem:[#allocation8 + $0x620] sm:$0xff]
    %v538 = vld [vmem:[#allocation8 + $0x628] sm:$0xf]
    %v539 = vld [vmem:[#allocation8 + $0x62c] sm:$0xff]
    %v540 = vld [vmem:[#allocation8 + $0x634] sm:$0xff]
    %v541 = vld [vmem:[#allocation8 + $0x63c] sm:$0xf]
    %v542 = vld [vmem:[#allocation10] sm:$0xf]
    %v543 = vld [vmem:[#allocation10 + $0x4] sm:$0xf]
    %v544 = vld [vmem:[#allocation10 + $0x8] sm:$0xf]
    %v545 = vld [vmem:[#allocation10 + $0xc] sm:$0xf]
    %v546 = vld [vmem:[#allocation10 + $0x10] sm:$0xf]
    %v547 = vld [vmem:[#allocation10 + $0x14] sm:$0xf]
    %v548 = vld [vmem:[#allocation10 + $0x18] sm:$0xf]
    %v549 = vld [vmem:[#allocation10 + $0x1c] sm:$0xf]
    %v550 = vld [vmem:[#allocation10 + $0x20] sm:$0xf]
    %v551 = vld [vmem:[#allocation10 + $0x24] sm:$0xf]
    %v552 = vld [vmem:[#allocation10 + $0x28] sm:$0xf]
    %v553 = vld [vmem:[#allocation10 + $0x2c] sm:$0xf]
    %v554 = vld [vmem:[#allocation10 + $0x30] sm:$0xf]
    %v555 = vld [vmem:[#allocation10 + $0x34] sm:$0xf]
    %v556 = vld [vmem:[#allocation10 + $0x38] sm:$0xf]
    %v557 = vld [vmem:[#allocation10 + $0x3c] sm:$0xf]
    %v558 = vld [vmem:[#allocation10 + $0x40] sm:$0xf]
    %v559 = vld [vmem:[#allocation10 + $0x44] sm:$0xf]
    %v560 = vld [vmem:[#allocation10 + $0x48] sm:$0xf]
    %v561 = vld [vmem:[#allocation10 + $0x4c] sm:$0xf]
    %v562 = vld [vmem:[#allocation10 + $0x50] sm:$0xf]
    %v563 = vld [vmem:[#allocation10 + $0x54] sm:$0xf]
    %v564 = vld [vmem:[#allocation10 + $0x58] sm:$0xf]
    %v565 = vld [vmem:[#allocation10 + $0x5c] sm:$0xf]
    %v566 = vld [vmem:[#allocation10 + $0x60] sm:$0xf]
    %v567 = vld [vmem:[#allocation10 + $0x64] sm:$0xf]
    %v568 = vld [vmem:[#allocation10 + $0x68] sm:$0xf]
    %v569 = vld [vmem:[#allocation10 + $0x6c] sm:$0xf]
    %v570 = vld [vmem:[#allocation10 + $0x70] sm:$0xf]
    %v571 = vld [vmem:[#allocation10 + $0x74] sm:$0xf]
    %v572 = vld [vmem:[#allocation10 + $0x78] sm:$0xf]
    %v573 = vld [vmem:[#allocation10 + $0x7c] sm:$0xf]
    %v574 = vld [vmem:[#allocation10 + $0x80] sm:$0xf]
    %v575 = vld [vmem:[#allocation10 + $0x84] sm:$0xf]
    %v576 = vld [vmem:[#allocation10 + $0x88] sm:$0xf]
    %v577 = vld [vmem:[#allocation10 + $0x8c] sm:$0xf]
    %v578 = vld [vmem:[#allocation10 + $0x90] sm:$0xf]
    %v579 = vld [vmem:[#allocation10 + $0x94] sm:$0xf]
    %v580 = vld [vmem:[#allocation10 + $0x98] sm:$0xf]
    %v581 = vld [vmem:[#allocation10 + $0x9c] sm:$0xf]
    %v582 = vld [vmem:[#allocation10 + $0xa0] sm:$0xf]
    %v583 = vld [vmem:[#allocation10 + $0xa4] sm:$0xf]
    %v584 = vld [vmem:[#allocation10 + $0xa8] sm:$0xf]
    %v585 = vld [vmem:[#allocation10 + $0xac] sm:$0xf]
    %v586 = vld [vmem:[#allocation10 + $0xb0] sm:$0xf]
    %v587 = vld [vmem:[#allocation10 + $0xb4] sm:$0xf]
    %v588 = vld [vmem:[#allocation10 + $0xb8] sm:$0xf]
    %v589 = vld [vmem:[#allocation10 + $0xbc] sm:$0xf]
    %v590 = vld [vmem:[#allocation10 + $0xc0] sm:$0xf]
    %v591 = vld [vmem:[#allocation10 + $0xc4] sm:$0xf]
    %v592 = vld [vmem:[#allocation10 + $0xc8] sm:$0xf]
    %v593 = vld [vmem:[#allocation10 + $0xcc] sm:$0xf]
    %v594 = vld [vmem:[#allocation10 + $0xd0] sm:$0xf]
    %v595 = vld [vmem:[#allocation10 + $0xd4] sm:$0xf]
    %v596 = vld [vmem:[#allocation10 + $0xd8] sm:$0xf]
    %v597 = vld [vmem:[#allocation10 + $0xdc] sm:$0xf]
    %v598 = vld [vmem:[#allocation10 + $0xe0] sm:$0xf]
    %v599 = vld [vmem:[#allocation10 + $0xe4] sm:$0xf]
    %v600 = vld [vmem:[#allocation10 + $0xe8] sm:$0xf]
    %v601 = vld [vmem:[#allocation10 + $0xec] sm:$0xf]
    %v602 = vld [vmem:[#allocation10 + $0xf0] sm:$0xf]
    %v603 = vld [vmem:[#allocation10 + $0xf4] sm:$0xf]
    %v604 = vld [vmem:[#allocation10 + $0xf8] sm:$0xf]
    %v605 = vld [vmem:[#allocation10 + $0xfc] sm:$0xf]
    %v606 = vld [vmem:[#allocation10 + $0x100] sm:$0xf]
    %v607 = vld [vmem:[#allocation10 + $0x104] sm:$0xf]
    %v608 = vld [vmem:[#allocation10 + $0x108] sm:$0xf]
    %v609 = vld [vmem:[#allocation10 + $0x10c] sm:$0xf]
    %v610 = vld [vmem:[#allocation10 + $0x110] sm:$0xf]
    %v611 = vld [vmem:[#allocation10 + $0x114] sm:$0xf]
    %v612 = vld [vmem:[#allocation10 + $0x118] sm:$0xf]
    %v613 = vld [vmem:[#allocation10 + $0x11c] sm:$0xf]
    %v614 = vld [vmem:[#allocation10 + $0x120] sm:$0xf]
    %v615 = vld [vmem:[#allocation10 + $0x124] sm:$0xf]
    %v616 = vld [vmem:[#allocation10 + $0x128] sm:$0xf]
    %v617 = vld [vmem:[#allocation10 + $0x12c] sm:$0xf]
    %v618 = vld [vmem:[#allocation10 + $0x130] sm:$0xf]
    %v619 = vld [vmem:[#allocation10 + $0x134] sm:$0xf]
    %v620 = vld [vmem:[#allocation10 + $0x138] sm:$0xf]
    %v621 = vld [vmem:[#allocation10 + $0x13c] sm:$0xf]
    %v622 = vld [vmem:[#allocation11] ss:$8 sm:$0x3]
    %s623 = scalar_lea.vmem [#allocation11], 1
    %v624 = vld [vmem:[%s623] ss:$8 sm:$0x3]
    %s625 = scalar_lea.vmem [#allocation11], 2
    %v626 = vld [vmem:[%s625] ss:$8 sm:$0x7]
    %s627 = scalar_lea.vmem [#allocation11], 3
    %v628 = vld [vmem:[%s627] ss:$8 sm:$0x3]
    %s629 = scalar_lea.vmem [#allocation11], 4
    %v630 = vld [vmem:[%s629] ss:$8 sm:$0x3]
    %s631 = scalar_lea.vmem [#allocation11], 5
    %v632 = vld [vmem:[%s631] ss:$8 sm:$0xf]
    %v633 = vld [vmem:[%s631] ss:$8 sm:$0x10]
    %v634 = vor.u32 %v632, %v633
    %v635 = vld [vmem:[#allocation11 + $0x6] ss:$0 sm:$0xff]
    %v656 = vunpack.c.l.b16 %v134
    %v657 = vunpack.c.h.b16 %v134
    %v658 = vunpack.c.l.b16 %v135
    %v659 = vunpack.c.h.b16 %v135
    %v660 = vunpack.c.l.b16 %v136
    %v661 = vunpack.c.h.b16 %v136
    %v662 = vunpack.c.l.b16 %v137
    %v663 = vunpack.c.h.b16 %v137
    %v664 = vunpack.c.l.b16 %v138
    %v665 = vunpack.c.h.b16 %v138
    %v666 = vunpack.c.l.b16 %v139
    %v667 = vunpack.c.h.b16 %v139
    %v668 = vunpack.c.l.b16 %v140
    %v669 = vunpack.c.h.b16 %v140
    %v670 = vunpack.c.l.b16 %v141
    %v671 = vunpack.c.h.b16 %v141
    %v672 = vunpack.c.l.b16 %v142
    %v673 = vunpack.c.h.b16 %v142
    %v674 = vunpack.c.l.b16 %v143
    %v675 = vunpack.c.h.b16 %v143
    %v676 = vunpack.c.l.b16 %v144
    %v677 = vunpack.c.h.b16 %v144
    %v678 = vunpack.c.l.b16 %v145
    %v679 = vunpack.c.h.b16 %v145
    %v680 = vunpack.c.l.b16 %v146
    %v681 = vunpack.c.h.b16 %v146
    %v682 = vunpack.c.l.b16 %v147
    %v683 = vunpack.c.h.b16 %v147
    %v684 = vunpack.c.l.b16 %v148
    %v685 = vunpack.c.h.b16 %v148
    %v686 = vunpack.c.l.b16 %v149
    %v687 = vunpack.c.h.b16 %v149
    %v688 = vunpack.c.l.b16 %v150
    %v689 = vunpack.c.h.b16 %v150
    %v690 = vunpack.c.l.b16 %v151
    %v691 = vunpack.c.h.b16 %v151
    %v692 = vunpack.c.l.b16 %v152
    %v693 = vunpack.c.h.b16 %v152
    %v694 = vunpack.c.l.b16 %v153
    %v695 = vunpack.c.h.b16 %v153
    %v696 = vpack.c.b16 %v658, %v656
    %v697 = vpack.c.b16 %v659, %v657
    %v698 = vpack.c.b16 %v662, %v660
    %v699 = vpack.c.b16 %v663, %v661
    %v700 = vpack.c.b16 %v666, %v664
    %v701 = vpack.c.b16 %v667, %v665
    %v702 = vpack.c.b16 %v670, %v668
    %v703 = vpack.c.b16 %v671, %v669
    %v704 = vpack.c.b16 %v674, %v672
    %v705 = vpack.c.b16 %v675, %v673
    %v706 = vpack.c.b16 %v678, %v676
    %v707 = vpack.c.b16 %v679, %v677
    %v708 = vpack.c.b16 %v682, %v680
    %v709 = vpack.c.b16 %v683, %v681
    %v710 = vpack.c.b16 %v686, %v684
    %v711 = vpack.c.b16 %v687, %v685
    %v712 = vpack.c.b16 %v690, %v688
    %v713 = vpack.c.b16 %v691, %v689
    %v714 = vpack.c.b16 %v694, %v692
    %v715 = vpack.c.b16 %v695, %v693
    %v737 = vlaneseq
    %v738 = vshrl.u32 %v737, 7
    %v739 = vsub.s32 0, %v738
    %v740 = vrot.slane %v622, %v739
    %v741 = vlaneseq
    %v742 = vshrl.u32 %v741, 7
    %v743 = vsub.s32 1, %v742
    %v744 = vrot.slane %v622, %v743
    %vm747 = vcmask 261120
    %v749 = vsel %vm747, %v119, 0
    %751 = vmatprep.subr.bf16.mxu0 %v697
    %752 = vmatpush1.bf16.msra.mxu0 %v696
    %753 = vmatprep.subr.bf16.mxu0 %v699
    %754 = vmatpush1.bf16.msra.mxu0 %v698
    %755 = vmatprep.subr.bf16.mxu0 %v701
    %756 = vmatpush1.bf16.msra.mxu0 %v700
    %757 = vmatprep.subr.bf16.mxu0 %v703
    %758 = vmatpush1.bf16.msra.mxu0 %v702
    %759 = vmatprep.subr.bf16.mxu0 %v705
    %760 = vmatpush1.bf16.msra.mxu0 %v704
    %761 = vmatprep.subr.bf16.mxu0 %v707
    %762 = vmatpush1.bf16.msra.mxu0 %v706
    %763 = vmatprep.subr.bf16.mxu0 %v709
    %764 = vmatpush1.bf16.msra.mxu0 %v708
    %765 = vmatprep.subr.bf16.mxu0 %v711
    %766 = vmatpush1.bf16.msra.mxu0 %v710
    %767 = vmatprep.subr.bf16.mxu0 %v713
    %768 = vmatpush1.bf16.msra.mxu0 %v712
    %769 = vmatprep.subr.bf16.mxu0 %v715
    %770 = vmatpush1.bf16.msra.mxu0 %v714
    %771 = vmatprep.subr.bf16.mxu0 0
    %772 = vmatpush1.bf16.msra.mxu0 0
    %773 = vmatprep.subr.bf16.mxu0 0
    %774 = vmatpush1.bf16.msra.mxu0 0
    %775 = vmatprep.subr.bf16.mxu0 0
    %776 = vmatpush1.bf16.msra.mxu0 0
    %777 = vmatprep.subr.bf16.mxu0 0
    %778 = vmatpush1.bf16.msra.mxu0 0
    %779 = vmatprep.subr.bf16.mxu0 0
    %780 = vmatpush1.bf16.msra.mxu0 0
    %781 = vmatprep.subr.bf16.mxu0 0
    %782 = vmatpush1.bf16.msra.mxu0 0
    %783 = vmatprep.mubr.bf16.mxu0 %v749
    %784 = vmatmul.mubr.bf16.gmra.mrb[0].mxu0 %v118
    %v785 = vpop.f32.mrb[0].mxu0
    %v786 = vadd.f32 %v740, %v785
    %v787 = vpop.f32.mrb[0].mxu0
    %v788 = vadd.f32 %v744, %v787
    %v789 = vpop.f32.mrb[0].mxu0
    %v790 = vpop.f32.mrb[0].mxu0
    %791 = vdwg.mxu0
    %v792 = vpack.c.bf16 %v786, %v786
    %v793 = vpack.c.bf16 %v788, %v788
    %v826 = vunpack.c.l.b16 %v154
    %v827 = vunpack.c.h.b16 %v154
    %v828 = vunpack.c.l.b16 %v155
    %v829 = vunpack.c.h.b16 %v155
    %v830 = vunpack.c.l.b16 %v156
    %v831 = vunpack.c.h.b16 %v156
    %v832 = vunpack.c.l.b16 %v157
    %v833 = vunpack.c.h.b16 %v157
    %v834 = vunpack.c.l.b16 %v158
    %v835 = vunpack.c.h.b16 %v158
    %v836 = vunpack.c.l.b16 %v159
    %v837 = vunpack.c.h.b16 %v159
    %v838 = vunpack.c.l.b16 %v160
    %v839 = vunpack.c.h.b16 %v160
    %v840 = vunpack.c.l.b16 %v161
    %v841 = vunpack.c.h.b16 %v161
    %v842 = vunpack.c.l.b16 %v162
    %v843 = vunpack.c.h.b16 %v162
    %v844 = vunpack.c.l.b16 %v163
    %v845 = vunpack.c.h.b16 %v163
    %v846 = vunpack.c.l.b16 %v164
    %v847 = vunpack.c.h.b16 %v164
    %v848 = vunpack.c.l.b16 %v165
    %v849 = vunpack.c.h.b16 %v165
    %v850 = vunpack.c.l.b16 %v166
    %v851 = vunpack.c.h.b16 %v166
    %v852 = vunpack.c.l.b16 %v167
    %v853 = vunpack.c.h.b16 %v167
    %v854 = vunpack.c.l.b16 %v168
    %v855 = vunpack.c.h.b16 %v168
    %v856 = vunpack.c.l.b16 %v169
    %v857 = vunpack.c.h.b16 %v169
    %v858 = vunpack.c.l.b16 %v170
    %v859 = vunpack.c.h.b16 %v170
    %v860 = vunpack.c.l.b16 %v171
    %v861 = vunpack.c.h.b16 %v171
    %v862 = vunpack.c.l.b16 %v172
    %v863 = vunpack.c.h.b16 %v172
    %v864 = vunpack.c.l.b16 %v173
    %v865 = vunpack.c.h.b16 %v173
    %v866 = vunpack.c.l.b16 %v174
    %v867 = vunpack.c.h.b16 %v174
    %v868 = vunpack.c.l.b16 %v175
    %v869 = vunpack.c.h.b16 %v175
    %v870 = vunpack.c.l.b16 %v176
    %v871 = vunpack.c.h.b16 %v176
    %v872 = vunpack.c.l.b16 %v177
    %v873 = vunpack.c.h.b16 %v177
    %v874 = vunpack.c.l.b16 %v178
    %v875 = vunpack.c.h.b16 %v178
    %v876 = vunpack.c.l.b16 %v179
    %v877 = vunpack.c.h.b16 %v179
    %v878 = vunpack.c.l.b16 %v180
    %v879 = vunpack.c.h.b16 %v180
    %v880 = vunpack.c.l.b16 %v181
    %v881 = vunpack.c.h.b16 %v181
    %v882 = vunpack.c.l.b16 %v182
    %v883 = vunpack.c.h.b16 %v182
    %v884 = vunpack.c.l.b16 %v183
    %v885 = vunpack.c.h.b16 %v183
    %v886 = vunpack.c.l.b16 %v184
    %v887 = vunpack.c.h.b16 %v184
    %v888 = vunpack.c.l.b16 %v185
    %v889 = vunpack.c.h.b16 %v185
    %v890 = vpack.c.b16 %v828, %v826
    %v891 = vpack.c.b16 %v829, %v827
    %v892 = vpack.c.b16 %v832, %v830
    %v893 = vpack.c.b16 %v833, %v831
    %v894 = vpack.c.b16 %v836, %v834
    %v895 = vpack.c.b16 %v837, %v835
    %v896 = vpack.c.b16 %v840, %v838
    %v897 = vpack.c.b16 %v841, %v839
    %v898 = vpack.c.b16 %v844, %v842
    %v899 = vpack.c.b16 %v845, %v843
    %v900 = vpack.c.b16 %v848, %v846
    %v901 = vpack.c.b16 %v849, %v847
    %v902 = vpack.c.b16 %v852, %v850
    %v903 = vpack.c.b16 %v853, %v851
    %v904 = vpack.c.b16 %v856, %v854
    %v905 = vpack.c.b16 %v857, %v855
    %v906 = vpack.c.b16 %v860, %v858
    %v907 = vpack.c.b16 %v861, %v859
    %v908 = vpack.c.b16 %v864, %v862
    %v909 = vpack.c.b16 %v865, %v863
    %v910 = vpack.c.b16 %v868, %v866
    %v911 = vpack.c.b16 %v869, %v867
    %v912 = vpack.c.b16 %v872, %v870
    %v913 = vpack.c.b16 %v873, %v871
    %v914 = vpack.c.b16 %v876, %v874
    %v915 = vpack.c.b16 %v877, %v875
    %v916 = vpack.c.b16 %v880, %v878
    %v917 = vpack.c.b16 %v881, %v879
    %v918 = vpack.c.b16 %v884, %v882
    %v919 = vpack.c.b16 %v885, %v883
    %v920 = vpack.c.b16 %v888, %v886
    %v921 = vpack.c.b16 %v889, %v887
    %v955 = vlaneseq
    %v956 = vshrl.u32 %v955, 7
    %v957 = vsub.s32 0, %v956
    %v958 = vrot.slane %v624, %v957
    %v959 = vlaneseq
    %v960 = vshrl.u32 %v959, 7
    %v961 = vsub.s32 1, %v960
    %v962 = vrot.slane %v624, %v961
    %965 = vmatprep.subr.bf16.mxu0 %v891
    %966 = vmatpush1.bf16.msra.mxu0 %v890
    %967 = vmatprep.subr.bf16.mxu0 %v893
    %968 = vmatpush1.bf16.msra.mxu0 %v892
    %969 = vmatprep.subr.bf16.mxu0 %v895
    %970 = vmatpush1.bf16.msra.mxu0 %v894
    %971 = vmatprep.subr.bf16.mxu0 %v897
    %972 = vmatpush1.bf16.msra.mxu0 %v896
    %973 = vmatprep.subr.bf16.mxu0 %v899
    %974 = vmatpush1.bf16.msra.mxu0 %v898
    %975 = vmatprep.subr.bf16.mxu0 %v901
    %976 = vmatpush1.bf16.msra.mxu0 %v900
    %977 = vmatprep.subr.bf16.mxu0 %v903
    %978 = vmatpush1.bf16.msra.mxu0 %v902
    %979 = vmatprep.subr.bf16.mxu0 %v905
    %980 = vmatpush1.bf16.msra.mxu0 %v904
    %981 = vmatprep.subr.bf16.mxu0 %v907
    %982 = vmatpush1.bf16.msra.mxu0 %v906
    %983 = vmatprep.subr.bf16.mxu0 %v909
    %984 = vmatpush1.bf16.msra.mxu0 %v908
    %985 = vmatprep.subr.bf16.mxu0 %v911
    %986 = vmatpush1.bf16.msra.mxu0 %v910
    %987 = vmatprep.subr.bf16.mxu0 %v913
    %988 = vmatpush1.bf16.msra.mxu0 %v912
    %989 = vmatprep.subr.bf16.mxu0 %v915
    %990 = vmatpush1.bf16.msra.mxu0 %v914
    %991 = vmatprep.subr.bf16.mxu0 %v917
    %992 = vmatpush1.bf16.msra.mxu0 %v916
    %993 = vmatprep.subr.bf16.mxu0 %v919
    %994 = vmatpush1.bf16.msra.mxu0 %v918
    %995 = vmatprep.subr.bf16.mxu0 %v921
    %996 = vmatpush1.bf16.msra.mxu0 %v920
    %997 = vmatprep.mubr.bf16.mxu0 %v793
    %998 = vmatmul.mubr.bf16.gmra.mrb[0].mxu0 %v792
    %v999 = vpop.f32.mrb[0].mxu0
    %v1000 = vadd.f32 %v958, %v999
    %v1001 = vpop.f32.mrb[0].mxu0
    %v1002 = vadd.f32 %v962, %v1001
    %v1003 = vpop.f32.mrb[0].mxu0
    %v1004 = vpop.f32.mrb[0].mxu0
    %1005 = vdwg.mxu0
    %v1006 = vpack.c.bf16 %v1000, %v1000
    %v1007 = vpack.c.bf16 %v1002, %v1002
    %v1072 = vunpack.c.l.b16 %v238
    %v1073 = vunpack.c.h.b16 %v238
    %v1074 = vunpack.c.l.b16 %v239
    %v1075 = vunpack.c.l.b16 %v240
    %v1076 = vunpack.c.h.b16 %v240
    %v1077 = vunpack.c.l.b16 %v241
    %v1078 = vunpack.c.l.b16 %v242
    %v1079 = vunpack.c.h.b16 %v242
    %v1080 = vunpack.c.l.b16 %v243
    %v1081 = vunpack.c.l.b16 %v244
    %v1082 = vunpack.c.h.b16 %v244
    %v1083 = vunpack.c.l.b16 %v245
    %v1084 = vunpack.c.l.b16 %v246
    %v1085 = vunpack.c.h.b16 %v246
    %v1086 = vunpack.c.l.b16 %v247
    %v1087 = vunpack.c.l.b16 %v248
    %v1088 = vunpack.c.h.b16 %v248
    %v1089 = vunpack.c.l.b16 %v249
    %v1090 = vunpack.c.l.b16 %v250
    %v1091 = vunpack.c.h.b16 %v250
    %v1092 = vunpack.c.l.b16 %v251
    %v1093 = vunpack.c.l.b16 %v252
    %v1094 = vunpack.c.h.b16 %v252
    %v1095 = vunpack.c.l.b16 %v253
    %v1096 = vunpack.c.l.b16 %v254
    %v1097 = vunpack.c.h.b16 %v254
    %v1098 = vunpack.c.l.b16 %v255
    %v1099 = vunpack.c.l.b16 %v256
    %v1100 = vunpack.c.h.b16 %v256
    %v1101 = vunpack.c.l.b16 %v257
    %v1102 = vunpack.c.l.b16 %v258
    %v1103 = vunpack.c.h.b16 %v258
    %v1104 = vunpack.c.l.b16 %v259
    %v1105 = vunpack.c.l.b16 %v260
    %v1106 = vunpack.c.h.b16 %v260
    %v1107 = vunpack.c.l.b16 %v261
    %v1108 = vunpack.c.l.b16 %v262
    %v1109 = vunpack.c.h.b16 %v262
    %v1110 = vunpack.c.l.b16 %v263
    %v1111 = vunpack.c.l.b16 %v264
    %v1112 = vunpack.c.h.b16 %v264
    %v1113 = vunpack.c.l.b16 %v265
    %v1114 = vunpack.c.l.b16 %v266
    %v1115 = vunpack.c.h.b16 %v266
    %v1116 = vunpack.c.l.b16 %v267
    %v1117 = vunpack.c.l.b16 %v268
    %v1118 = vunpack.c.h.b16 %v268
    %v1119 = vunpack.c.l.b16 %v269
    %v1120 = vunpack.c.l.b16 %v270
    %v1121 = vunpack.c.h.b16 %v270
    %v1122 = vunpack.c.l.b16 %v271
    %v1123 = vunpack.c.l.b16 %v272
    %v1124 = vunpack.c.h.b16 %v272
    %v1125 = vunpack.c.l.b16 %v273
    %v1126 = vunpack.c.l.b16 %v274
    %v1127 = vunpack.c.h.b16 %v274
    %v1128 = vunpack.c.l.b16 %v275
    %v1129 = vunpack.c.l.b16 %v276
    %v1130 = vunpack.c.h.b16 %v276
    %v1131 = vunpack.c.l.b16 %v277
    %v1132 = vunpack.c.l.b16 %v278
    %v1133 = vunpack.c.h.b16 %v278
    %v1134 = vunpack.c.l.b16 %v279
    %v1135 = vunpack.c.l.b16 %v280
    %v1136 = vunpack.c.h.b16 %v280
    %v1137 = vunpack.c.l.b16 %v281
    %v1138 = vunpack.c.l.b16 %v282
    %v1139 = vunpack.c.h.b16 %v282
    %v1140 = vunpack.c.l.b16 %v283
    %v1141 = vunpack.c.l.b16 %v284
    %v1142 = vunpack.c.h.b16 %v284
    %v1143 = vunpack.c.l.b16 %v285
    %v1144 = vunpack.c.l.b16 %v286
    %v1145 = vunpack.c.h.b16 %v286
    %v1146 = vunpack.c.l.b16 %v287
    %v1147 = vunpack.c.l.b16 %v288
    %v1148 = vunpack.c.h.b16 %v288
    %v1149 = vunpack.c.l.b16 %v289
    %v1150 = vunpack.c.l.b16 %v290
    %v1151 = vunpack.c.h.b16 %v290
    %v1152 = vunpack.c.l.b16 %v291
    %v1153 = vunpack.c.l.b16 %v292
    %v1154 = vunpack.c.h.b16 %v292
    %v1155 = vunpack.c.l.b16 %v293
    %v1156 = vunpack.c.l.b16 %v294
    %v1157 = vunpack.c.h.b16 %v294
    %v1158 = vunpack.c.l.b16 %v295
    %v1159 = vunpack.c.l.b16 %v296
    %v1160 = vunpack.c.h.b16 %v296
    %v1161 = vunpack.c.l.b16 %v297
    %v1162 = vunpack.c.l.b16 %v298
    %v1163 = vunpack.c.h.b16 %v298
    %v1164 = vunpack.c.l.b16 %v299
    %v1165 = vunpack.c.l.b16 %v300
    %v1166 = vunpack.c.h.b16 %v300
    %v1167 = vunpack.c.l.b16 %v301
    %v1168 = vpack.c.b16 %v1075, %v1072
    %v1169 = vpack.c.b16 %v1076, %v1073
    %v1170 = vpack.c.b16 %v1077, %v1074
    %v1171 = vpack.c.b16 %v1081, %v1078
    %v1172 = vpack.c.b16 %v1082, %v1079
    %v1173 = vpack.c.b16 %v1083, %v1080
    %v1174 = vpack.c.b16 %v1087, %v1084
    %v1175 = vpack.c.b16 %v1088, %v1085
    %v1176 = vpack.c.b16 %v1089, %v1086
    %v1177 = vpack.c.b16 %v1093, %v1090
    %v1178 = vpack.c.b16 %v1094, %v1091
    %v1179 = vpack.c.b16 %v1095, %v1092
    %v1180 = vpack.c.b16 %v1099, %v1096
    %v1181 = vpack.c.b16 %v1100, %v1097
    %v1182 = vpack.c.b16 %v1101, %v1098
    %v1183 = vpack.c.b16 %v1105, %v1102
    %v1184 = vpack.c.b16 %v1106, %v1103
    %v1185 = vpack.c.b16 %v1107, %v1104
    %v1186 = vpack.c.b16 %v1111, %v1108
    %v1187 = vpack.c.b16 %v1112, %v1109
    %v1188 = vpack.c.b16 %v1113, %v1110
    %v1189 = vpack.c.b16 %v1117, %v1114
    %v1190 = vpack.c.b16 %v1118, %v1115
    %v1191 = vpack.c.b16 %v1119, %v1116
    %v1192 = vpack.c.b16 %v1123, %v1120
    %v1193 = vpack.c.b16 %v1124, %v1121
    %v1194 = vpack.c.b16 %v1125, %v1122
    %v1195 = vpack.c.b16 %v1129, %v1126
    %v1196 = vpack.c.b16 %v1130, %v1127
    %v1197 = vpack.c.b16 %v1131, %v1128
    %v1198 = vpack.c.b16 %v1135, %v1132
    %v1199 = vpack.c.b16 %v1136, %v1133
    %v1200 = vpack.c.b16 %v1137, %v1134
    %v1201 = vpack.c.b16 %v1141, %v1138
    %v1202 = vpack.c.b16 %v1142, %v1139
    %v1203 = vpack.c.b16 %v1143, %v1140
    %v1204 = vpack.c.b16 %v1147, %v1144
    %v1205 = vpack.c.b16 %v1148, %v1145
    %v1206 = vpack.c.b16 %v1149, %v1146
    %v1207 = vpack.c.b16 %v1153, %v1150
    %v1208 = vpack.c.b16 %v1154, %v1151
    %v1209 = vpack.c.b16 %v1155, %v1152
    %v1210 = vpack.c.b16 %v1159, %v1156
    %v1211 = vpack.c.b16 %v1160, %v1157
    %v1212 = vpack.c.b16 %v1161, %v1158
    %v1213 = vpack.c.b16 %v1165, %v1162
    %v1214 = vpack.c.b16 %v1166, %v1163
    %v1215 = vpack.c.b16 %v1167, %v1164
    %v1265 = vlaneseq
    %v1266 = vshrl.u32 %v1265, 7
    %v1267 = vsub.s32 0, %v1266
    %v1268 = vrot.slane %v626, %v1267
    %v1269 = vlaneseq
    %v1270 = vshrl.u32 %v1269, 7
    %v1271 = vsub.s32 1, %v1270
    %v1272 = vrot.slane %v626, %v1271
    %v1273 = vlaneseq
    %v1274 = vshrl.u32 %v1273, 7
    %v1275 = vsub.s32 2, %v1274
    %v1276 = vrot.slane %v626, %v1275
    %1280 = vmatprep.subr.bf16.mxu0 %v1169
    %1281 = vmatpush1.bf16.msra.mxu0 %v1168
    %1282 = vmatprep.subr.bf16.mxu0 %v1172
    %1283 = vmatpush1.bf16.msra.mxu0 %v1171
    %1284 = vmatprep.subr.bf16.mxu0 %v1175
    %1285 = vmatpush1.bf16.msra.mxu0 %v1174
    %1286 = vmatprep.subr.bf16.mxu0 %v1178
    %1287 = vmatpush1.bf16.msra.mxu0 %v1177
    %1288 = vmatprep.subr.bf16.mxu0 %v1181
    %1289 = vmatpush1.bf16.msra.mxu0 %v1180
    %1290 = vmatprep.subr.bf16.mxu0 %v1184
    %1291 = vmatpush1.bf16.msra.mxu0 %v1183
    %1292 = vmatprep.subr.bf16.mxu0 %v1187
    %1293 = vmatpush1.bf16.msra.mxu0 %v1186
    %1294 = vmatprep.subr.bf16.mxu0 %v1190
    %1295 = vmatpush1.bf16.msra.mxu0 %v1189
    %1296 = vmatprep.subr.bf16.mxu0 %v1193
    %1297 = vmatpush1.bf16.msra.mxu0 %v1192
    %1298 = vmatprep.subr.bf16.mxu0 %v1196
    %1299 = vmatpush1.bf16.msra.mxu0 %v1195
    %1300 = vmatprep.subr.bf16.mxu0 %v1199
    %1301 = vmatpush1.bf16.msra.mxu0 %v1198
    %1302 = vmatprep.subr.bf16.mxu0 %v1202
    %1303 = vmatpush1.bf16.msra.mxu0 %v1201
    %1304 = vmatprep.subr.bf16.mxu0 %v1205
    %1305 = vmatpush1.bf16.msra.mxu0 %v1204
    %1306 = vmatprep.subr.bf16.mxu0 %v1208
    %1307 = vmatpush1.bf16.msra.mxu0 %v1207
    %1308 = vmatprep.subr.bf16.mxu0 %v1211
    %1309 = vmatpush1.bf16.msra.mxu0 %v1210
    %1310 = vmatprep.subr.bf16.mxu0 %v1214
    %1311 = vmatpush1.bf16.msra.mxu0 %v1213
    %1312 = vmatprep.mubr.bf16.mxu0 %v1007
    %1313 = vmatmul.mubr.bf16.gmra.mrb[0].mxu0 %v1006
    %v1314 = vpop.f32.mrb[0].mxu0
    %v1315 = vadd.f32 %v1268, %v1314
    %v1316 = vpop.f32.mrb[0].mxu0
    %v1317 = vadd.f32 %v1272, %v1316
    %v1318 = vpop.f32.mrb[0].mxu0
    %v1319 = vpop.f32.mrb[0].mxu0
    %1320 = vdwg.mxu0
    %1321 = vmatprep.subr.bf16.mxu0 0
    %1322 = vmatpush1.bf16.msra.mxu0 %v1170
    %1323 = vmatprep.subr.bf16.mxu0 0
    %1324 = vmatpush1.bf16.msra.mxu0 %v1173
    %1325 = vmatprep.subr.bf16.mxu0 0
    %1326 = vmatpush1.bf16.msra.mxu0 %v1176
    %1327 = vmatprep.subr.bf16.mxu0 0
    %1328 = vmatpush1.bf16.msra.mxu0 %v1179
    %1329 = vmatprep.subr.bf16.mxu0 0
    %1330 = vmatpush1.bf16.msra.mxu0 %v1182
    %1331 = vmatprep.subr.bf16.mxu0 0
    %1332 = vmatpush1.bf16.msra.mxu0 %v1185
    %1333 = vmatprep.subr.bf16.mxu0 0
    %1334 = vmatpush1.bf16.msra.mxu0 %v1188
    %1335 = vmatprep.subr.bf16.mxu0 0
    %1336 = vmatpush1.bf16.msra.mxu0 %v1191
    %1337 = vmatprep.subr.bf16.mxu0 0
    %1338 = vmatpush1.bf16.msra.mxu0 %v1194
    %1339 = vmatprep.subr.bf16.mxu0 0
    %1340 = vmatpush1.bf16.msra.mxu0 %v1197
    %1341 = vmatprep.subr.bf16.mxu0 0
    %1342 = vmatpush1.bf16.msra.mxu0 %v1200
    %1343 = vmatprep.subr.bf16.mxu0 0
    %1344 = vmatpush1.bf16.msra.mxu0 %v1203
    %1345 = vmatprep.subr.bf16.mxu0 0
    %1346 = vmatpush1.bf16.msra.mxu0 %v1206
    %1347 = vmatprep.subr.bf16.mxu0 0
    %1348 = vmatpush1.bf16.msra.mxu0 %v1209
    %1349 = vmatprep.subr.bf16.mxu0 0
    %1350 = vmatpush1.bf16.msra.mxu0 %v1212
    %1351 = vmatprep.subr.bf16.mxu0 0
    %1352 = vmatpush1.bf16.msra.mxu0 %v1215
    %1353 = vmatprep.mubr.bf16.mxu0 %v1007
    %1354 = vmatmul.mubr.bf16.gmra.mrb[0].mxu0 %v1006
    %v1355 = vpop.f32.mrb[0].mxu0
    %v1356 = vadd.f32 %v1276, %v1355
    %v1357 = vpop.f32.mrb[0].mxu0
    %v1358 = vpop.f32.mrb[0].mxu0
    %v1359 = vpop.f32.mrb[0].mxu0
    %1360 = vdwg.mxu0
    %v1381 = vunpack.c.l.b16 %v186
    %v1382 = vunpack.c.h.b16 %v186
    %v1383 = vunpack.c.l.b16 %v187
    %v1384 = vunpack.c.h.b16 %v187
    %v1385 = vunpack.c.l.b16 %v188
    %v1386 = vunpack.c.h.b16 %v188
    %v1387 = vunpack.c.l.b16 %v189
    %v1388 = vunpack.c.h.b16 %v189
    %v1389 = vunpack.c.l.b16 %v190
    %v1390 = vunpack.c.h.b16 %v190
    %v1391 = vunpack.c.l.b16 %v191
    %v1392 = vunpack.c.h.b16 %v191
    %v1393 = vunpack.c.l.b16 %v192
    %v1394 = vunpack.c.h.b16 %v192
    %v1395 = vunpack.c.l.b16 %v193
    %v1396 = vunpack.c.h.b16 %v193
    %v1397 = vunpack.c.l.b16 %v194
    %v1398 = vunpack.c.h.b16 %v194
    %v1399 = vunpack.c.l.b16 %v195
    %v1400 = vunpack.c.h.b16 %v195
    %v1401 = vunpack.c.l.b16 %v196
    %v1402 = vunpack.c.h.b16 %v196
    %v1403 = vunpack.c.l.b16 %v197
    %v1404 = vunpack.c.h.b16 %v197
    %v1405 = vunpack.c.l.b16 %v198
    %v1406 = vunpack.c.h.b16 %v198
    %v1407 = vunpack.c.l.b16 %v199
    %v1408 = vunpack.c.h.b16 %v199
    %v1409 = vunpack.c.l.b16 %v200
    %v1410 = vunpack.c.h.b16 %v200
    %v1411 = vunpack.c.l.b16 %v201
    %v1412 = vunpack.c.h.b16 %v201
    %v1413 = vunpack.c.l.b16 %v202
    %v1414 = vunpack.c.h.b16 %v202
    %v1415 = vunpack.c.l.b16 %v203
    %v1416 = vunpack.c.h.b16 %v203
    %v1417 = vunpack.c.l.b16 %v204
    %v1418 = vunpack.c.h.b16 %v204
    %v1419 = vunpack.c.l.b16 %v205
    %v1420 = vunpack.c.h.b16 %v205
    %v1421 = vpack.c.b16 %v1383, %v1381
    %v1422 = vpack.c.b16 %v1384, %v1382
    %v1423 = vpack.c.b16 %v1387, %v1385
    %v1424 = vpack.c.b16 %v1388, %v1386
    %v1425 = vpack.c.b16 %v1391, %v1389
    %v1426 = vpack.c.b16 %v1392, %v1390
    %v1427 = vpack.c.b16 %v1395, %v1393
    %v1428 = vpack.c.b16 %v1396, %v1394
    %v1429 = vpack.c.b16 %v1399, %v1397
    %v1430 = vpack.c.b16 %v1400, %v1398
    %v1431 = vpack.c.b16 %v1403, %v1401
    %v1432 = vpack.c.b16 %v1404, %v1402
    %v1433 = vpack.c.b16 %v1407, %v1405
    %v1434 = vpack.c.b16 %v1408, %v1406
    %v1435 = vpack.c.b16 %v1411, %v1409
    %v1436 = vpack.c.b16 %v1412, %v1410
    %v1437 = vpack.c.b16 %v1415, %v1413
    %v1438 = vpack.c.b16 %v1416, %v1414
    %v1439 = vpack.c.b16 %v1419, %v1417
    %v1440 = vpack.c.b16 %v1420, %v1418
    %v1462 = vlaneseq
    %v1463 = vshrl.u32 %v1462, 7
    %v1464 = vsub.s32 0, %v1463
    %v1465 = vrot.slane %v628, %v1464
    %v1466 = vlaneseq
    %v1467 = vshrl.u32 %v1466, 7
    %v1468 = vsub.s32 1, %v1467
    %v1469 = vrot.slane %v628, %v1468
    %v1473 = vsel %vm747, %v133, 0
    %1475 = vmatprep.subr.bf16.mxu0 %v1422
    %1476 = vmatpush1.bf16.msra.mxu0 %v1421
    %1477 = vmatprep.subr.bf16.mxu0 %v1424
    %1478 = vmatpush1.bf16.msra.mxu0 %v1423
    %1479 = vmatprep.subr.bf16.mxu0 %v1426
    %1480 = vmatpush1.bf16.msra.mxu0 %v1425
    %1481 = vmatprep.subr.bf16.mxu0 %v1428
    %1482 = vmatpush1.bf16.msra.mxu0 %v1427
    %1483 = vmatprep.subr.bf16.mxu0 %v1430
    %1484 = vmatpush1.bf16.msra.mxu0 %v1429
    %1485 = vmatprep.subr.bf16.mxu0 %v1432
    %1486 = vmatpush1.bf16.msra.mxu0 %v1431
    %1487 = vmatprep.subr.bf16.mxu0 %v1434
    %1488 = vmatpush1.bf16.msra.mxu0 %v1433
    %1489 = vmatprep.subr.bf16.mxu0 %v1436
    %1490 = vmatpush1.bf16.msra.mxu0 %v1435
    %1491 = vmatprep.subr.bf16.mxu0 %v1438
    %1492 = vmatpush1.bf16.msra.mxu0 %v1437
    %1493 = vmatprep.subr.bf16.mxu0 %v1440
    %1494 = vmatpush1.bf16.msra.mxu0 %v1439
    %1495 = vmatprep.subr.bf16.mxu0 0
    %1496 = vmatpush1.bf16.msra.mxu0 0
    %1497 = vmatprep.subr.bf16.mxu0 0
    %1498 = vmatpush1.bf16.msra.mxu0 0
    %1499 = vmatprep.subr.bf16.mxu0 0
    %1500 = vmatpush1.bf16.msra.mxu0 0
    %1501 = vmatprep.subr.bf16.mxu0 0
    %1502 = vmatpush1.bf16.msra.mxu0 0
    %1503 = vmatprep.subr.bf16.mxu0 0
    %1504 = vmatpush1.bf16.msra.mxu0 0
    %1505 = vmatprep.subr.bf16.mxu0 0
    %1506 = vmatpush1.bf16.msra.mxu0 0
    %1507 = vmatprep.mubr.bf16.mxu0 %v1473
    %1508 = vmatmul.mubr.bf16.gmra.mrb[0].mxu0 %v132
    %v1509 = vpop.f32.mrb[0].mxu0
    %v1510 = vadd.f32 %v1465, %v1509
    %v1511 = vpop.f32.mrb[0].mxu0
    %v1512 = vadd.f32 %v1469, %v1511
    %v1513 = vpop.f32.mrb[0].mxu0
    %v1514 = vpop.f32.mrb[0].mxu0
    %1515 = vdwg.mxu0
    %v1516 = vpack.c.bf16 %v1510, %v1510
    %v1517 = vpack.c.bf16 %v1512, %v1512
    %v1550 = vunpack.c.l.b16 %v206
    %v1551 = vunpack.c.h.b16 %v206
    %v1552 = vunpack.c.l.b16 %v207
    %v1553 = vunpack.c.h.b16 %v207
    %v1554 = vunpack.c.l.b16 %v208
    %v1555 = vunpack.c.h.b16 %v208
    %v1556 = vunpack.c.l.b16 %v209
    %v1557 = vunpack.c.h.b16 %v209
    %v1558 = vunpack.c.l.b16 %v210
    %v1559 = vunpack.c.h.b16 %v210
    %v1560 = vunpack.c.l.b16 %v211
    %v1561 = vunpack.c.h.b16 %v211
    %v1562 = vunpack.c.l.b16 %v212
    %v1563 = vunpack.c.h.b16 %v212
    %v1564 = vunpack.c.l.b16 %v213
    %v1565 = vunpack.c.h.b16 %v213
    %v1566 = vunpack.c.l.b16 %v214
    %v1567 = vunpack.c.h.b16 %v214
    %v1568 = vunpack.c.l.b16 %v215
    %v1569 = vunpack.c.h.b16 %v215
    %v1570 = vunpack.c.l.b16 %v216
    %v1571 = vunpack.c.h.b16 %v216
    %v1572 = vunpack.c.l.b16 %v217
    %v1573 = vunpack.c.h.b16 %v217
    %v1574 = vunpack.c.l.b16 %v218
    %v1575 = vunpack.c.h.b16 %v218
    %v1576 = vunpack.c.l.b16 %v219
    %v1577 = vunpack.c.h.b16 %v219
    %v1578 = vunpack.c.l.b16 %v220
    %v1579 = vunpack.c.h.b16 %v220
    %v1580 = vunpack.c.l.b16 %v221
    %v1581 = vunpack.c.h.b16 %v221
    %v1582 = vunpack.c.l.b16 %v222
    %v1583 = vunpack.c.h.b16 %v222
    %v1584 = vunpack.c.l.b16 %v223
    %v1585 = vunpack.c.h.b16 %v223
    %v1586 = vunpack.c.l.b16 %v224
    %v1587 = vunpack.c.h.b16 %v224
    %v1588 = vunpack.c.l.b16 %v225
    %v1589 = vunpack.c.h.b16 %v225
    %v1590 = vunpack.c.l.b16 %v226
    %v1591 = vunpack.c.h.b16 %v226
    %v1592 = vunpack.c.l.b16 %v227
    %v1593 = vunpack.c.h.b16 %v227
    %v1594 = vunpack.c.l.b16 %v228
    %v1595 = vunpack.c.h.b16 %v228
    %v1596 = vunpack.c.l.b16 %v229
    %v1597 = vunpack.c.h.b16 %v229
    %v1598 = vunpack.c.l.b16 %v230
    %v1599 = vunpack.c.h.b16 %v230
    %v1600 = vunpack.c.l.b16 %v231
    %v1601 = vunpack.c.h.b16 %v231
    %v1602 = vunpack.c.l.b16 %v232
    %v1603 = vunpack.c.h.b16 %v232
    %v1604 = vunpack.c.l.b16 %v233
    %v1605 = vunpack.c.h.b16 %v233
    %v1606 = vunpack.c.l.b16 %v234
    %v1607 = vunpack.c.h.b16 %v234
    %v1608 = vunpack.c.l.b16 %v235
    %v1609 = vunpack.c.h.b16 %v235
    %v1610 = vunpack.c.l.b16 %v236
    %v1611 = vunpack.c.h.b16 %v236
    %v1612 = vunpack.c.l.b16 %v237
    %v1613 = vunpack.c.h.b16 %v237
    %v1614 = vpack.c.b16 %v1552, %v1550
    %v1615 = vpack.c.b16 %v1553, %v1551
    %v1616 = vpack.c.b16 %v1556, %v1554
    %v1617 = vpack.c.b16 %v1557, %v1555
    %v1618 = vpack.c.b16 %v1560, %v1558
    %v1619 = vpack.c.b16 %v1561, %v1559
    %v1620 = vpack.c.b16 %v1564, %v1562
    %v1621 = vpack.c.b16 %v1565, %v1563
    %v1622 = vpack.c.b16 %v1568, %v1566
    %v1623 = vpack.c.b16 %v1569, %v1567
    %v1624 = vpack.c.b16 %v1572, %v1570
    %v1625 = vpack.c.b16 %v1573, %v1571
    %v1626 = vpack.c.b16 %v1576, %v1574
    %v1627 = vpack.c.b16 %v1577, %v1575
    %v1628 = vpack.c.b16 %v1580, %v1578
    %v1629 = vpack.c.b16 %v1581, %v1579
    %v1630 = vpack.c.b16 %v1584, %v1582
    %v1631 = vpack.c.b16 %v1585, %v1583
    %v1632 = vpack.c.b16 %v1588, %v1586
    %v1633 = vpack.c.b16 %v1589, %v1587
    %v1634 = vpack.c.b16 %v1592, %v1590
    %v1635 = vpack.c.b16 %v1593, %v1591
    %v1636 = vpack.c.b16 %v1596, %v1594
    %v1637 = vpack.c.b16 %v1597, %v1595
    %v1638 = vpack.c.b16 %v1600, %v1598
    %v1639 = vpack.c.b16 %v1601, %v1599
    %v1640 = vpack.c.b16 %v1604, %v1602
    %v1641 = vpack.c.b16 %v1605, %v1603
    %v1642 = vpack.c.b16 %v1608, %v1606
    %v1643 = vpack.c.b16 %v1609, %v1607
    %v1644 = vpack.c.b16 %v1612, %v1610
    %v1645 = vpack.c.b16 %v1613, %v1611
    %v1679 = vlaneseq
    %v1680 = vshrl.u32 %v1679, 7
    %v1681 = vsub.s32 0, %v1680
    %v1682 = vrot.slane %v630, %v1681
    %v1683 = vlaneseq
    %v1684 = vshrl.u32 %v1683, 7
    %v1685 = vsub.s32 1, %v1684
    %v1686 = vrot.slane %v630, %v1685
    %1689 = vmatprep.subr.bf16.mxu0 %v1615
    %1690 = vmatpush1.bf16.msra.mxu0 %v1614
    %1691 = vmatprep.subr.bf16.mxu0 %v1617
    %1692 = vmatpush1.bf16.msra.mxu0 %v1616
    %1693 = vmatprep.subr.bf16.mxu0 %v1619
    %1694 = vmatpush1.bf16.msra.mxu0 %v1618
    %1695 = vmatprep.subr.bf16.mxu0 %v1621
    %1696 = vmatpush1.bf16.msra.mxu0 %v1620
    %1697 = vmatprep.subr.bf16.mxu0 %v1623
    %1698 = vmatpush1.bf16.msra.mxu0 %v1622
    %1699 = vmatprep.subr.bf16.mxu0 %v1625
    %1700 = vmatpush1.bf16.msra.mxu0 %v1624
    %1701 = vmatprep.subr.bf16.mxu0 %v1627
    %1702 = vmatpush1.bf16.msra.mxu0 %v1626
    %1703 = vmatprep.subr.bf16.mxu0 %v1629
    %1704 = vmatpush1.bf16.msra.mxu0 %v1628
    %1705 = vmatprep.subr.bf16.mxu0 %v1631
    %1706 = vmatpush1.bf16.msra.mxu0 %v1630
    %1707 = vmatprep.subr.bf16.mxu0 %v1633
    %1708 = vmatpush1.bf16.msra.mxu0 %v1632
    %1709 = vmatprep.subr.bf16.mxu0 %v1635
    %1710 = vmatpush1.bf16.msra.mxu0 %v1634
    %1711 = vmatprep.subr.bf16.mxu0 %v1637
    %1712 = vmatpush1.bf16.msra.mxu0 %v1636
    %1713 = vmatprep.subr.bf16.mxu0 %v1639
    %1714 = vmatpush1.bf16.msra.mxu0 %v1638
    %1715 = vmatprep.subr.bf16.mxu0 %v1641
    %1716 = vmatpush1.bf16.msra.mxu0 %v1640
    %1717 = vmatprep.subr.bf16.mxu0 %v1643
    %1718 = vmatpush1.bf16.msra.mxu0 %v1642
    %1719 = vmatprep.subr.bf16.mxu0 %v1645
    %1720 = vmatpush1.bf16.msra.mxu0 %v1644
    %1721 = vmatprep.mubr.bf16.mxu0 %v1517
    %1722 = vmatmul.mubr.bf16.gmra.mrb[0].mxu0 %v1516
    %v1723 = vpop.f32.mrb[0].mxu0
    %v1724 = vadd.f32 %v1682, %v1723
    %v1725 = vpop.f32.mrb[0].mxu0
    %v1726 = vadd.f32 %v1686, %v1725
    %v1727 = vpop.f32.mrb[0].mxu0
    %v1728 = vpop.f32.mrb[0].mxu0
    %1729 = vdwg.mxu0
    %v1730 = vpack.c.bf16 %v1315, %v1315
    %v1731 = vpack.c.bf16 %v1317, %v1317
    %v1732 = vpack.c.bf16 %v1356, %v1356
    %v1733 = vpack.c.bf16 %v1724, %v1724
    %v1734 = vpack.c.bf16 %v1726, %v1726
    %v1831 = vunpack.c.l.b16 %v446
    %v1832 = vunpack.c.h.b16 %v446
    %v1833 = vunpack.c.l.b16 %v447
    %v1834 = vunpack.c.h.b16 %v447
    %v1835 = vunpack.c.l.b16 %v448
    %v1836 = vunpack.c.l.b16 %v449
    %v1837 = vunpack.c.h.b16 %v449
    %v1838 = vunpack.c.l.b16 %v450
    %v1839 = vunpack.c.h.b16 %v450
    %v1840 = vunpack.c.l.b16 %v451
    %v1841 = vunpack.c.l.b16 %v452
    %v1842 = vunpack.c.h.b16 %v452
    %v1843 = vunpack.c.l.b16 %v453
    %v1844 = vunpack.c.h.b16 %v453
    %v1845 = vunpack.c.l.b16 %v454
    %v1846 = vunpack.c.l.b16 %v455
    %v1847 = vunpack.c.h.b16 %v455
    %v1848 = vunpack.c.l.b16 %v456
    %v1849 = vunpack.c.h.b16 %v456
    %v1850 = vunpack.c.l.b16 %v457
    %v1851 = vunpack.c.l.b16 %v458
    %v1852 = vunpack.c.h.b16 %v458
    %v1853 = vunpack.c.l.b16 %v459
    %v1854 = vunpack.c.h.b16 %v459
    %v1855 = vunpack.c.l.b16 %v460
    %v1856 = vunpack.c.l.b16 %v461
    %v1857 = vunpack.c.h.b16 %v461
    %v1858 = vunpack.c.l.b16 %v462
    %v1859 = vunpack.c.h.b16 %v462
    %v1860 = vunpack.c.l.b16 %v463
    %v1861 = vunpack.c.l.b16 %v464
    %v1862 = vunpack.c.h.b16 %v464
    %v1863 = vunpack.c.l.b16 %v465
    %v1864 = vunpack.c.h.b16 %v465
    %v1865 = vunpack.c.l.b16 %v466
    %v1866 = vunpack.c.l.b16 %v467
    %v1867 = vunpack.c.h.b16 %v467
    %v1868 = vunpack.c.l.b16 %v468
    %v1869 = vunpack.c.h.b16 %v468
    %v1870 = vunpack.c.l.b16 %v469
    %v1871 = vunpack.c.l.b16 %v470
    %v1872 = vunpack.c.h.b16 %v470
    %v1873 = vunpack.c.l.b16 %v471
    %v1874 = vunpack.c.h.b16 %v471
    %v1875 = vunpack.c.l.b16 %v472
    %v1876 = vunpack.c.l.b16 %v473
    %v1877 = vunpack.c.h.b16 %v473
    %v1878 = vunpack.c.l.b16 %v474
    %v1879 = vunpack.c.h.b16 %v474
    %v1880 = vunpack.c.l.b16 %v475
    %v1881 = vunpack.c.l.b16 %v476
    %v1882 = vunpack.c.h.b16 %v476
    %v1883 = vunpack.c.l.b16 %v477
    %v1884 = vunpack.c.h.b16 %v477
    %v1885 = vunpack.c.l.b16 %v478
    %v1886 = vunpack.c.l.b16 %v479
    %v1887 = vunpack.c.h.b16 %v479
    %v1888 = vunpack.c.l.b16 %v480
    %v1889 = vunpack.c.h.b16 %v480
    %v1890 = vunpack.c.l.b16 %v481
    %v1891 = vunpack.c.l.b16 %v482
    %v1892 = vunpack.c.h.b16 %v482
    %v1893 = vunpack.c.l.b16 %v483
    %v1894 = vunpack.c.h.b16 %v483
    %v1895 = vunpack.c.l.b16 %v484
    %v1896 = vunpack.c.l.b16 %v485
    %v1897 = vunpack.c.h.b16 %v485
    %v1898 = vunpack.c.l.b16 %v486
    %v1899 = vunpack.c.h.b16 %v486
    %v1900 = vunpack.c.l.b16 %v487
    %v1901 = vunpack.c.l.b16 %v488
    %v1902 = vunpack.c.h.b16 %v488
    %v1903 = vunpack.c.l.b16 %v489
    %v1904 = vunpack.c.h.b16 %v489
    %v1905 = vunpack.c.l.b16 %v490
    %v1906 = vunpack.c.l.b16 %v491
    %v1907 = vunpack.c.h.b16 %v491
    %v1908 = vunpack.c.l.b16 %v492
    %v1909 = vunpack.c.h.b16 %v492
    %v1910 = vunpack.c.l.b16 %v493
    %v1911 = vunpack.c.l.b16 %v494
    %v1912 = vunpack.c.h.b16 %v494
    %v1913 = vunpack.c.l.b16 %v495
    %v1914 = vunpack.c.h.b16 %v495
    %v1915 = vunpack.c.l.b16 %v496
    %v1916 = vunpack.c.l.b16 %v497
    %v1917 = vunpack.c.h.b16 %v497
    %v1918 = vunpack.c.l.b16 %v498
    %v1919 = vunpack.c.h.b16 %v498
    %v1920 = vunpack.c.l.b16 %v499
    %v1921 = vunpack.c.l.b16 %v500
    %v1922 = vunpack.c.h.b16 %v500
    %v1923 = vunpack.c.l.b16 %v501
    %v1924 = vunpack.c.h.b16 %v501
    %v1925 = vunpack.c.l.b16 %v502
    %v1926 = vunpack.c.l.b16 %v503
    %v1927 = vunpack.c.h.b16 %v503
    %v1928 = vunpack.c.l.b16 %v504
    %v1929 = vunpack.c.h.b16 %v504
    %v1930 = vunpack.c.l.b16 %v505
    %v1931 = vunpack.c.l.b16 %v506
    %v1932 = vunpack.c.h.b16 %v506
    %v1933 = vunpack.c.l.b16 %v507
    %v1934 = vunpack.c.h.b16 %v507
    %v1935 = vunpack.c.l.b16 %v508
    %v1936 = vunpack.c.l.b16 %v509
    %v1937 = vunpack.c.h.b16 %v509
    %v1938 = vunpack.c.l.b16 %v510
    %v1939 = vunpack.c.h.b16 %v510
    %v1940 = vunpack.c.l.b16 %v511
    %v1941 = vunpack.c.l.b16 %v512
    %v1942 = vunpack.c.h.b16 %v512
    %v1943 = vunpack.c.l.b16 %v513
    %v1944 = vunpack.c.h.b16 %v513
    %v1945 = vunpack.c.l.b16 %v514
    %v1946 = vunpack.c.l.b16 %v515
    %v1947 = vunpack.c.h.b16 %v515
    %v1948 = vunpack.c.l.b16 %v516
    %v1949 = vunpack.c.h.b16 %v516
    %v1950 = vunpack.c.l.b16 %v517
    %v1951 = vunpack.c.l.b16 %v518
    %v1952 = vunpack.c.h.b16 %v518
    %v1953 = vunpack.c.l.b16 %v519
    %v1954 = vunpack.c.h.b16 %v519
    %v1955 = vunpack.c.l.b16 %v520
    %v1956 = vunpack.c.l.b16 %v521
    %v1957 = vunpack.c.h.b16 %v521
    %v1958 = vunpack.c.l.b16 %v522
    %v1959 = vunpack.c.h.b16 %v522
    %v1960 = vunpack.c.l.b16 %v523
    %v1961 = vunpack.c.l.b16 %v524
    %v1962 = vunpack.c.h.b16 %v524
    %v1963 = vunpack.c.l.b16 %v525
    %v1964 = vunpack.c.h.b16 %v525
    %v1965 = vunpack.c.l.b16 %v526
    %v1966 = vunpack.c.l.b16 %v527
    %v1967 = vunpack.c.h.b16 %v527
    %v1968 = vunpack.c.l.b16 %v528
    %v1969 = vunpack.c.h.b16 %v528
    %v1970 = vunpack.c.l.b16 %v529
    %v1971 = vunpack.c.l.b16 %v530
    %v1972 = vunpack.c.h.b16 %v530
    %v1973 = vunpack.c.l.b16 %v531
    %v1974 = vunpack.c.h.b16 %v531
    %v1975 = vunpack.c.l.b16 %v532
    %v1976 = vunpack.c.l.b16 %v533
    %v1977 = vunpack.c.h.b16 %v533
    %v1978 = vunpack.c.l.b16 %v534
    %v1979 = vunpack.c.h.b16 %v534
    %v1980 = vunpack.c.l.b16 %v535
    %v1981 = vunpack.c.l.b16 %v536
    %v1982 = vunpack.c.h.b16 %v536
    %v1983 = vunpack.c.l.b16 %v537
    %v1984 = vunpack.c.h.b16 %v537
    %v1985 = vunpack.c.l.b16 %v538
    %v1986 = vunpack.c.l.b16 %v539
    %v1987 = vunpack.c.h.b16 %v539
    %v1988 = vunpack.c.l.b16 %v540
    %v1989 = vunpack.c.h.b16 %v540
    %v1990 = vunpack.c.l.b16 %v541
    %v1991 = vpack.c.b16 %v1836, %v1831
    %v1992 = vpack.c.b16 %v1837, %v1832
    %v1993 = vpack.c.b16 %v1838, %v1833
    %v1994 = vpack.c.b16 %v1839, %v1834
    %v1995 = vpack.c.b16 %v1840, %v1835
    %v1996 = vpack.c.b16 %v1846, %v1841
    %v1997 = vpack.c.b16 %v1847, %v1842
    %v1998 = vpack.c.b16 %v1848, %v1843
    %v1999 = vpack.c.b16 %v1849, %v1844
    %v2000 = vpack.c.b16 %v1850, %v1845
    %v2001 = vpack.c.b16 %v1856, %v1851
    %v2002 = vpack.c.b16 %v1857, %v1852
    %v2003 = vpack.c.b16 %v1858, %v1853
    %v2004 = vpack.c.b16 %v1859, %v1854
    %v2005 = vpack.c.b16 %v1860, %v1855
    %v2006 = vpack.c.b16 %v1866, %v1861
    %v2007 = vpack.c.b16 %v1867, %v1862
    %v2008 = vpack.c.b16 %v1868, %v1863
    %v2009 = vpack.c.b16 %v1869, %v1864
    %v2010 = vpack.c.b16 %v1870, %v1865
    %v2011 = vpack.c.b16 %v1876, %v1871
    %v2012 = vpack.c.b16 %v1877, %v1872
    %v2013 = vpack.c.b16 %v1878, %v1873
    %v2014 = vpack.c.b16 %v1879, %v1874
    %v2015 = vpack.c.b16 %v1880, %v1875
    %v2016 = vpack.c.b16 %v1886, %v1881
    %v2017 = vpack.c.b16 %v1887, %v1882
    %v2018 = vpack.c.b16 %v1888, %v1883
    %v2019 = vpack.c.b16 %v1889, %v1884
    %v2020 = vpack.c.b16 %v1890, %v1885
    %v2021 = vpack.c.b16 %v1896, %v1891
    %v2022 = vpack.c.b16 %v1897, %v1892
    %v2023 = vpack.c.b16 %v1898, %v1893
    %v2024 = vpack.c.b16 %v1899, %v1894
    %v2025 = vpack.c.b16 %v1900, %v1895
    %v2026 = vpack.c.b16 %v1906, %v1901
    %v2027 = vpack.c.b16 %v1907, %v1902
    %v2028 = vpack.c.b16 %v1908, %v1903
    %v2029 = vpack.c.b16 %v1909, %v1904
    %v2030 = vpack.c.b16 %v1910, %v1905
    %v2031 = vpack.c.b16 %v1916, %v1911
    %v2032 = vpack.c.b16 %v1917, %v1912
    %v2033 = vpack.c.b16 %v1918, %v1913
    %v2034 = vpack.c.b16 %v1919, %v1914
    %v2035 = vpack.c.b16 %v1920, %v1915
    %v2036 = vpack.c.b16 %v1926, %v1921
    %v2037 = vpack.c.b16 %v1927, %v1922
    %v2038 = vpack.c.b16 %v1928, %v1923
    %v2039 = vpack.c.b16 %v1929, %v1924
    %v2040 = vpack.c.b16 %v1930, %v1925
    %v2041 = vpack.c.b16 %v1936, %v1931
    %v2042 = vpack.c.b16 %v1937, %v1932
    %v2043 = vpack.c.b16 %v1938, %v1933
    %v2044 = vpack.c.b16 %v1939, %v1934
    %v2045 = vpack.c.b16 %v1940, %v1935
    %v2046 = vpack.c.b16 %v1946, %v1941
    %v2047 = vpack.c.b16 %v1947, %v1942
    %v2048 = vpack.c.b16 %v1948, %v1943
    %v2049 = vpack.c.b16 %v1949, %v1944
    %v2050 = vpack.c.b16 %v1950, %v1945
    %v2051 = vpack.c.b16 %v1956, %v1951
    %v2052 = vpack.c.b16 %v1957, %v1952
    %v2053 = vpack.c.b16 %v1958, %v1953
    %v2054 = vpack.c.b16 %v1959, %v1954
    %v2055 = vpack.c.b16 %v1960, %v1955
    %v2056 = vpack.c.b16 %v1966, %v1961
    %v2057 = vpack.c.b16 %v1967, %v1962
    %v2058 = vpack.c.b16 %v1968, %v1963
    %v2059 = vpack.c.b16 %v1969, %v1964
    %v2060 = vpack.c.b16 %v1970, %v1965
    %v2061 = vpack.c.b16 %v1976, %v1971
    %v2062 = vpack.c.b16 %v1977, %v1972
    %v2063 = vpack.c.b16 %v1978, %v1973
    %v2064 = vpack.c.b16 %v1979, %v1974
    %v2065 = vpack.c.b16 %v1980, %v1975
    %v2066 = vpack.c.b16 %v1986, %v1981
    %v2067 = vpack.c.b16 %v1987, %v1982
    %v2068 = vpack.c.b16 %v1988, %v1983
    %v2069 = vpack.c.b16 %v1989, %v1984
    %v2070 = vpack.c.b16 %v1990, %v1985
    %2151 = vmatprep.subr.bf16.mxu0 %v1992
    %2152 = vmatpush1.bf16.msra.mxu0 %v1991
    %2153 = vmatprep.subr.bf16.mxu0 %v1997
    %2154 = vmatpush1.bf16.msra.mxu0 %v1996
    %2155 = vmatprep.subr.bf16.mxu0 %v2002
    %2156 = vmatpush1.bf16.msra.mxu0 %v2001
    %2157 = vmatprep.subr.bf16.mxu0 %v2007
    %2158 = vmatpush1.bf16.msra.mxu0 %v2006
    %2159 = vmatprep.subr.bf16.mxu0 %v2012
    %2160 = vmatpush1.bf16.msra.mxu0 %v2011
    %2161 = vmatprep.subr.bf16.mxu0 %v2017
    %2162 = vmatpush1.bf16.msra.mxu0 %v2016
    %2163 = vmatprep.subr.bf16.mxu0 %v2022
    %2164 = vmatpush1.bf16.msra.mxu0 %v2021
    %2165 = vmatprep.subr.bf16.mxu0 %v2027
    %2166 = vmatpush1.bf16.msra.mxu0 %v2026
    %2167 = vmatprep.subr.bf16.mxu0 %v2032
    %2168 = vmatpush1.bf16.msra.mxu0 %v2031
    %2169 = vmatprep.subr.bf16.mxu0 %v2037
    %2170 = vmatpush1.bf16.msra.mxu0 %v2036
    %2171 = vmatprep.subr.bf16.mxu0 %v2042
    %2172 = vmatpush1.bf16.msra.mxu0 %v2041
    %2173 = vmatprep.subr.bf16.mxu0 %v2047
    %2174 = vmatpush1.bf16.msra.mxu0 %v2046
    %2175 = vmatprep.subr.bf16.mxu0 %v2052
    %2176 = vmatpush1.bf16.msra.mxu0 %v2051
    %2177 = vmatprep.subr.bf16.mxu0 %v2057
    %2178 = vmatpush1.bf16.msra.mxu0 %v2056
    %2179 = vmatprep.subr.bf16.mxu0 %v2062
    %2180 = vmatpush1.bf16.msra.mxu0 %v2061
    %2181 = vmatprep.subr.bf16.mxu0 %v2067
    %2182 = vmatpush1.bf16.msra.mxu0 %v2066
    %2183 = vmatprep.mubr.bf16.mxu0 %v1734
    %2184 = vmatmul.mubr.bf16.gmra.mrb[0].mxu0 %v1733
    %v2185 = vpop.f32.mrb[0].mxu0
    %v2186 = vadd.f32 0.0, %v2185
    %v2187 = vpop.f32.mrb[0].mxu0
    %v2188 = vadd.f32 0.0, %v2187
    %v2189 = vpop.f32.mrb[0].mxu0
    %v2190 = vpop.f32.mrb[0].mxu0
    %2191 = vdwg.mxu0
    %2192 = vmatprep.subr.bf16.mxu0 %v1994
    %2193 = vmatpush1.bf16.msra.mxu0 %v1993
    %2194 = vmatprep.subr.bf16.mxu0 %v1999
    %2195 = vmatpush1.bf16.msra.mxu0 %v1998
    %2196 = vmatprep.subr.bf16.mxu0 %v2004
    %2197 = vmatpush1.bf16.msra.mxu0 %v2003
    %2198 = vmatprep.subr.bf16.mxu0 %v2009
    %2199 = vmatpush1.bf16.msra.mxu0 %v2008
    %2200 = vmatprep.subr.bf16.mxu0 %v2014
    %2201 = vmatpush1.bf16.msra.mxu0 %v2013
    %2202 = vmatprep.subr.bf16.mxu0 %v2019
    %2203 = vmatpush1.bf16.msra.mxu0 %v2018
    %2204 = vmatprep.subr.bf16.mxu0 %v2024
    %2205 = vmatpush1.bf16.msra.mxu0 %v2023
    %2206 = vmatprep.subr.bf16.mxu0 %v2029
    %2207 = vmatpush1.bf16.msra.mxu0 %v2028
    %2208 = vmatprep.subr.bf16.mxu0 %v2034
    %2209 = vmatpush1.bf16.msra.mxu0 %v2033
    %2210 = vmatprep.subr.bf16.mxu0 %v2039
    %2211 = vmatpush1.bf16.msra.mxu0 %v2038
    %2212 = vmatprep.subr.bf16.mxu0 %v2044
    %2213 = vmatpush1.bf16.msra.mxu0 %v2043
    %2214 = vmatprep.subr.bf16.mxu0 %v2049
    %2215 = vmatpush1.bf16.msra.mxu0 %v2048
    %2216 = vmatprep.subr.bf16.mxu0 %v2054
    %2217 = vmatpush1.bf16.msra.mxu0 %v2053
    %2218 = vmatprep.subr.bf16.mxu0 %v2059
    %2219 = vmatpush1.bf16.msra.mxu0 %v2058
    %2220 = vmatprep.subr.bf16.mxu0 %v2064
    %2221 = vmatpush1.bf16.msra.mxu0 %v2063
    %2222 = vmatprep.subr.bf16.mxu0 %v2069
    %2223 = vmatpush1.bf16.msra.mxu0 %v2068
    %2224 = vmatprep.mubr.bf16.mxu0 %v1734
    %2225 = vmatmul.mubr.bf16.gmra.mrb[0].mxu0 %v1733
    %v2226 = vpop.f32.mrb[0].mxu0
    %v2227 = vadd.f32 0.0, %v2226
    %v2228 = vpop.f32.mrb[0].mxu0
    %v2229 = vadd.f32 0.0, %v2228
    %v2230 = vpop.f32.mrb[0].mxu0
    %v2231 = vpop.f32.mrb[0].mxu0
    %2232 = vdwg.mxu0
    %2233 = vmatprep.subr.bf16.mxu0 0
    %2234 = vmatpush1.bf16.msra.mxu0 %v1995
    %2235 = vmatprep.subr.bf16.mxu0 0
    %2236 = vmatpush1.bf16.msra.mxu0 %v2000
    %2237 = vmatprep.subr.bf16.mxu0 0
    %2238 = vmatpush1.bf16.msra.mxu0 %v2005
    %2239 = vmatprep.subr.bf16.mxu0 0
    %2240 = vmatpush1.bf16.msra.mxu0 %v2010
    %2241 = vmatprep.subr.bf16.mxu0 0
    %2242 = vmatpush1.bf16.msra.mxu0 %v2015
    %2243 = vmatprep.subr.bf16.mxu0 0
    %2244 = vmatpush1.bf16.msra.mxu0 %v2020
    %2245 = vmatprep.subr.bf16.mxu0 0
    %2246 = vmatpush1.bf16.msra.mxu0 %v2025
    %2247 = vmatprep.subr.bf16.mxu0 0
    %2248 = vmatpush1.bf16.msra.mxu0 %v2030
    %2249 = vmatprep.subr.bf16.mxu0 0
    %2250 = vmatpush1.bf16.msra.mxu0 %v2035
    %2251 = vmatprep.subr.bf16.mxu0 0
    %2252 = vmatpush1.bf16.msra.mxu0 %v2040
    %2253 = vmatprep.subr.bf16.mxu0 0
    %2254 = vmatpush1.bf16.msra.mxu0 %v2045
    %2255 = vmatprep.subr.bf16.mxu0 0
    %2256 = vmatpush1.bf16.msra.mxu0 %v2050
    %2257 = vmatprep.subr.bf16.mxu0 0
    %2258 = vmatpush1.bf16.msra.mxu0 %v2055
    %2259 = vmatprep.subr.bf16.mxu0 0
    %2260 = vmatpush1.bf16.msra.mxu0 %v2060
    %2261 = vmatprep.subr.bf16.mxu0 0
    %2262 = vmatpush1.bf16.msra.mxu0 %v2065
    %2263 = vmatprep.subr.bf16.mxu0 0
    %2264 = vmatpush1.bf16.msra.mxu0 %v2070
    %2265 = vmatprep.mubr.bf16.mxu0 %v1734
    %2266 = vmatmul.mubr.bf16.gmra.mrb[0].mxu0 %v1733
    %v2267 = vpop.f32.mrb[0].mxu0
    %v2268 = vadd.f32 0.0, %v2267
    %v2269 = vpop.f32.mrb[0].mxu0
    %v2270 = vpop.f32.mrb[0].mxu0
    %v2271 = vpop.f32.mrb[0].mxu0
    %2272 = vdwg.mxu0
    %v2417 = vunpack.c.l.b16 %v302
    %v2418 = vunpack.c.h.b16 %v302
    %v2419 = vunpack.c.l.b16 %v303
    %v2420 = vunpack.c.h.b16 %v303
    %v2421 = vunpack.c.l.b16 %v304
    %v2422 = vunpack.c.l.b16 %v305
    %v2423 = vunpack.c.h.b16 %v305
    %v2424 = vunpack.c.l.b16 %v306
    %v2425 = vunpack.c.h.b16 %v306
    %v2426 = vunpack.c.l.b16 %v307
    %v2427 = vunpack.c.l.b16 %v308
    %v2428 = vunpack.c.h.b16 %v308
    %v2429 = vunpack.c.l.b16 %v309
    %v2430 = vunpack.c.h.b16 %v309
    %v2431 = vunpack.c.l.b16 %v310
    %v2432 = vunpack.c.l.b16 %v311
    %v2433 = vunpack.c.h.b16 %v311
    %v2434 = vunpack.c.l.b16 %v312
    %v2435 = vunpack.c.h.b16 %v312
    %v2436 = vunpack.c.l.b16 %v313
    %v2437 = vunpack.c.l.b16 %v314
    %v2438 = vunpack.c.h.b16 %v314
    %v2439 = vunpack.c.l.b16 %v315
    %v2440 = vunpack.c.h.b16 %v315
    %v2441 = vunpack.c.l.b16 %v316
    %v2442 = vunpack.c.l.b16 %v317
    %v2443 = vunpack.c.h.b16 %v317
    %v2444 = vunpack.c.l.b16 %v318
    %v2445 = vunpack.c.h.b16 %v318
    %v2446 = vunpack.c.l.b16 %v319
    %v2447 = vunpack.c.l.b16 %v320
    %v2448 = vunpack.c.h.b16 %v320
    %v2449 = vunpack.c.l.b16 %v321
    %v2450 = vunpack.c.h.b16 %v321
    %v2451 = vunpack.c.l.b16 %v322
    %v2452 = vunpack.c.l.b16 %v323
    %v2453 = vunpack.c.h.b16 %v323
    %v2454 = vunpack.c.l.b16 %v324
    %v2455 = vunpack.c.h.b16 %v324
    %v2456 = vunpack.c.l.b16 %v325
    %v2457 = vunpack.c.l.b16 %v326
    %v2458 = vunpack.c.h.b16 %v326
    %v2459 = vunpack.c.l.b16 %v327
    %v2460 = vunpack.c.h.b16 %v327
    %v2461 = vunpack.c.l.b16 %v328
    %v2462 = vunpack.c.l.b16 %v329
    %v2463 = vunpack.c.h.b16 %v329
    %v2464 = vunpack.c.l.b16 %v330
    %v2465 = vunpack.c.h.b16 %v330
    %v2466 = vunpack.c.l.b16 %v331
    %v2467 = vunpack.c.l.b16 %v332
    %v2468 = vunpack.c.h.b16 %v332
    %v2469 = vunpack.c.l.b16 %v333
    %v2470 = vunpack.c.h.b16 %v333
    %v2471 = vunpack.c.l.b16 %v334
    %v2472 = vunpack.c.l.b16 %v335
    %v2473 = vunpack.c.h.b16 %v335
    %v2474 = vunpack.c.l.b16 %v336
    %v2475 = vunpack.c.h.b16 %v336
    %v2476 = vunpack.c.l.b16 %v337
    %v2477 = vunpack.c.l.b16 %v338
    %v2478 = vunpack.c.h.b16 %v338
    %v2479 = vunpack.c.l.b16 %v339
    %v2480 = vunpack.c.h.b16 %v339
    %v2481 = vunpack.c.l.b16 %v340
    %v2482 = vunpack.c.l.b16 %v341
    %v2483 = vunpack.c.h.b16 %v341
    %v2484 = vunpack.c.l.b16 %v342
    %v2485 = vunpack.c.h.b16 %v342
    %v2486 = vunpack.c.l.b16 %v343
    %v2487 = vunpack.c.l.b16 %v344
    %v2488 = vunpack.c.h.b16 %v344
    %v2489 = vunpack.c.l.b16 %v345
    %v2490 = vunpack.c.h.b16 %v345
    %v2491 = vunpack.c.l.b16 %v346
    %v2492 = vunpack.c.l.b16 %v347
    %v2493 = vunpack.c.h.b16 %v347
    %v2494 = vunpack.c.l.b16 %v348
    %v2495 = vunpack.c.h.b16 %v348
    %v2496 = vunpack.c.l.b16 %v349
    %v2497 = vunpack.c.l.b16 %v350
    %v2498 = vunpack.c.h.b16 %v350
    %v2499 = vunpack.c.l.b16 %v351
    %v2500 = vunpack.c.h.b16 %v351
    %v2501 = vunpack.c.l.b16 %v352
    %v2502 = vunpack.c.l.b16 %v353
    %v2503 = vunpack.c.h.b16 %v353
    %v2504 = vunpack.c.l.b16 %v354
    %v2505 = vunpack.c.h.b16 %v354
    %v2506 = vunpack.c.l.b16 %v355
    %v2507 = vunpack.c.l.b16 %v356
    %v2508 = vunpack.c.h.b16 %v356
    %v2509 = vunpack.c.l.b16 %v357
    %v2510 = vunpack.c.h.b16 %v357
    %v2511 = vunpack.c.l.b16 %v358
    %v2512 = vunpack.c.l.b16 %v359
    %v2513 = vunpack.c.h.b16 %v359
    %v2514 = vunpack.c.l.b16 %v360
    %v2515 = vunpack.c.h.b16 %v360
    %v2516 = vunpack.c.l.b16 %v361
    %v2517 = vunpack.c.l.b16 %v362
    %v2518 = vunpack.c.h.b16 %v362
    %v2519 = vunpack.c.l.b16 %v363
    %v2520 = vunpack.c.h.b16 %v363
    %v2521 = vunpack.c.l.b16 %v364
    %v2522 = vunpack.c.l.b16 %v365
    %v2523 = vunpack.c.h.b16 %v365
    %v2524 = vunpack.c.l.b16 %v366
    %v2525 = vunpack.c.h.b16 %v366
    %v2526 = vunpack.c.l.b16 %v367
    %v2527 = vunpack.c.l.b16 %v368
    %v2528 = vunpack.c.h.b16 %v368
    %v2529 = vunpack.c.l.b16 %v369
    %v2530 = vunpack.c.h.b16 %v369
    %v2531 = vunpack.c.l.b16 %v370
    %v2532 = vunpack.c.l.b16 %v371
    %v2533 = vunpack.c.h.b16 %v371
    %v2534 = vunpack.c.l.b16 %v372
    %v2535 = vunpack.c.h.b16 %v372
    %v2536 = vunpack.c.l.b16 %v373
    %v2537 = vunpack.c.l.b16 %v374
    %v2538 = vunpack.c.h.b16 %v374
    %v2539 = vunpack.c.l.b16 %v375
    %v2540 = vunpack.c.h.b16 %v375
    %v2541 = vunpack.c.l.b16 %v376
    %v2542 = vunpack.c.l.b16 %v377
    %v2543 = vunpack.c.h.b16 %v377
    %v2544 = vunpack.c.l.b16 %v378
    %v2545 = vunpack.c.h.b16 %v378
    %v2546 = vunpack.c.l.b16 %v379
    %v2547 = vunpack.c.l.b16 %v380
    %v2548 = vunpack.c.h.b16 %v380
    %v2549 = vunpack.c.l.b16 %v381
    %v2550 = vunpack.c.h.b16 %v381
    %v2551 = vunpack.c.l.b16 %v382
    %v2552 = vunpack.c.l.b16 %v383
    %v2553 = vunpack.c.h.b16 %v383
    %v2554 = vunpack.c.l.b16 %v384
    %v2555 = vunpack.c.h.b16 %v384
    %v2556 = vunpack.c.l.b16 %v385
    %v2557 = vunpack.c.l.b16 %v386
    %v2558 = vunpack.c.h.b16 %v386
    %v2559 = vunpack.c.l.b16 %v387
    %v2560 = vunpack.c.h.b16 %v387
    %v2561 = vunpack.c.l.b16 %v388
    %v2562 = vunpack.c.l.b16 %v389
    %v2563 = vunpack.c.h.b16 %v389
    %v2564 = vunpack.c.l.b16 %v390
    %v2565 = vunpack.c.h.b16 %v390
    %v2566 = vunpack.c.l.b16 %v391
    %v2567 = vunpack.c.l.b16 %v392
    %v2568 = vunpack.c.h.b16 %v392
    %v2569 = vunpack.c.l.b16 %v393
    %v2570 = vunpack.c.h.b16 %v393
    %v2571 = vunpack.c.l.b16 %v394
    %v2572 = vunpack.c.l.b16 %v395
    %v2573 = vunpack.c.h.b16 %v395
    %v2574 = vunpack.c.l.b16 %v396
    %v2575 = vunpack.c.h.b16 %v396
    %v2576 = vunpack.c.l.b16 %v397
    %v2577 = vunpack.c.l.b16 %v398
    %v2578 = vunpack.c.h.b16 %v398
    %v2579 = vunpack.c.l.b16 %v399
    %v2580 = vunpack.c.h.b16 %v399
    %v2581 = vunpack.c.l.b16 %v400
    %v2582 = vunpack.c.l.b16 %v401
    %v2583 = vunpack.c.h.b16 %v401
    %v2584 = vunpack.c.l.b16 %v402
    %v2585 = vunpack.c.h.b16 %v402
    %v2586 = vunpack.c.l.b16 %v403
    %v2587 = vunpack.c.l.b16 %v404
    %v2588 = vunpack.c.h.b16 %v404
    %v2589 = vunpack.c.l.b16 %v405
    %v2590 = vunpack.c.h.b16 %v405
    %v2591 = vunpack.c.l.b16 %v406
    %v2592 = vunpack.c.l.b16 %v407
    %v2593 = vunpack.c.h.b16 %v407
    %v2594 = vunpack.c.l.b16 %v408
    %v2595 = vunpack.c.h.b16 %v408
    %v2596 = vunpack.c.l.b16 %v409
    %v2597 = vunpack.c.l.b16 %v410
    %v2598 = vunpack.c.h.b16 %v410
    %v2599 = vunpack.c.l.b16 %v411
    %v2600 = vunpack.c.h.b16 %v411
    %v2601 = vunpack.c.l.b16 %v412
    %v2602 = vunpack.c.l.b16 %v413
    %v2603 = vunpack.c.h.b16 %v413
    %v2604 = vunpack.c.l.b16 %v414
    %v2605 = vunpack.c.h.b16 %v414
    %v2606 = vunpack.c.l.b16 %v415
    %v2607 = vunpack.c.l.b16 %v416
    %v2608 = vunpack.c.h.b16 %v416
    %v2609 = vunpack.c.l.b16 %v417
    %v2610 = vunpack.c.h.b16 %v417
    %v2611 = vunpack.c.l.b16 %v418
    %v2612 = vunpack.c.l.b16 %v419
    %v2613 = vunpack.c.h.b16 %v419
    %v2614 = vunpack.c.l.b16 %v420
    %v2615 = vunpack.c.h.b16 %v420
    %v2616 = vunpack.c.l.b16 %v421
    %v2617 = vunpack.c.l.b16 %v422
    %v2618 = vunpack.c.h.b16 %v422
    %v2619 = vunpack.c.l.b16 %v423
    %v2620 = vunpack.c.h.b16 %v423
    %v2621 = vunpack.c.l.b16 %v424
    %v2622 = vunpack.c.l.b16 %v425
    %v2623 = vunpack.c.h.b16 %v425
    %v2624 = vunpack.c.l.b16 %v426
    %v2625 = vunpack.c.h.b16 %v426
    %v2626 = vunpack.c.l.b16 %v427
    %v2627 = vunpack.c.l.b16 %v428
    %v2628 = vunpack.c.h.b16 %v428
    %v2629 = vunpack.c.l.b16 %v429
    %v2630 = vunpack.c.h.b16 %v429
    %v2631 = vunpack.c.l.b16 %v430
    %v2632 = vunpack.c.l.b16 %v431
    %v2633 = vunpack.c.h.b16 %v431
    %v2634 = vunpack.c.l.b16 %v432
    %v2635 = vunpack.c.h.b16 %v432
    %v2636 = vunpack.c.l.b16 %v433
    %v2637 = vunpack.c.l.b16 %v434
    %v2638 = vunpack.c.h.b16 %v434
    %v2639 = vunpack.c.l.b16 %v435
    %v2640 = vunpack.c.h.b16 %v435
    %v2641 = vunpack.c.l.b16 %v436
    %v2642 = vunpack.c.l.b16 %v437
    %v2643 = vunpack.c.h.b16 %v437
    %v2644 = vunpack.c.l.b16 %v438
    %v2645 = vunpack.c.h.b16 %v438
    %v2646 = vunpack.c.l.b16 %v439
    %v2647 = vunpack.c.l.b16 %v440
    %v2648 = vunpack.c.h.b16 %v440
    %v2649 = vunpack.c.l.b16 %v441
    %v2650 = vunpack.c.h.b16 %v441
    %v2651 = vunpack.c.l.b16 %v442
    %v2652 = vunpack.c.l.b16 %v443
    %v2653 = vunpack.c.h.b16 %v443
    %v2654 = vunpack.c.l.b16 %v444
    %v2655 = vunpack.c.h.b16 %v444
    %v2656 = vunpack.c.l.b16 %v445
    %v2657 = vpack.c.b16 %v2422, %v2417
    %v2658 = vpack.c.b16 %v2423, %v2418
    %v2659 = vpack.c.b16 %v2424, %v2419
    %v2660 = vpack.c.b16 %v2425, %v2420
    %v2661 = vpack.c.b16 %v2426, %v2421
    %v2662 = vpack.c.b16 %v2432, %v2427
    %v2663 = vpack.c.b16 %v2433, %v2428
    %v2664 = vpack.c.b16 %v2434, %v2429
    %v2665 = vpack.c.b16 %v2435, %v2430
    %v2666 = vpack.c.b16 %v2436, %v2431
    %v2667 = vpack.c.b16 %v2442, %v2437
    %v2668 = vpack.c.b16 %v2443, %v2438
    %v2669 = vpack.c.b16 %v2444, %v2439
    %v2670 = vpack.c.b16 %v2445, %v2440
    %v2671 = vpack.c.b16 %v2446, %v2441
    %v2672 = vpack.c.b16 %v2452, %v2447
    %v2673 = vpack.c.b16 %v2453, %v2448
    %v2674 = vpack.c.b16 %v2454, %v2449
    %v2675 = vpack.c.b16 %v2455, %v2450
    %v2676 = vpack.c.b16 %v2456, %v2451
    %v2677 = vpack.c.b16 %v2462, %v2457
    %v2678 = vpack.c.b16 %v2463, %v2458
    %v2679 = vpack.c.b16 %v2464, %v2459
    %v2680 = vpack.c.b16 %v2465, %v2460
    %v2681 = vpack.c.b16 %v2466, %v2461
    %v2682 = vpack.c.b16 %v2472, %v2467
    %v2683 = vpack.c.b16 %v2473, %v2468
    %v2684 = vpack.c.b16 %v2474, %v2469
    %v2685 = vpack.c.b16 %v2475, %v2470
    %v2686 = vpack.c.b16 %v2476, %v2471
    %v2687 = vpack.c.b16 %v2482, %v2477
    %v2688 = vpack.c.b16 %v2483, %v2478
    %v2689 = vpack.c.b16 %v2484, %v2479
    %v2690 = vpack.c.b16 %v2485, %v2480
    %v2691 = vpack.c.b16 %v2486, %v2481
    %v2692 = vpack.c.b16 %v2492, %v2487
    %v2693 = vpack.c.b16 %v2493, %v2488
    %v2694 = vpack.c.b16 %v2494, %v2489
    %v2695 = vpack.c.b16 %v2495, %v2490
    %v2696 = vpack.c.b16 %v2496, %v2491
    %v2697 = vpack.c.b16 %v2502, %v2497
    %v2698 = vpack.c.b16 %v2503, %v2498
    %v2699 = vpack.c.b16 %v2504, %v2499
    %v2700 = vpack.c.b16 %v2505, %v2500
    %v2701 = vpack.c.b16 %v2506, %v2501
    %v2702 = vpack.c.b16 %v2512, %v2507
    %v2703 = vpack.c.b16 %v2513, %v2508
    %v2704 = vpack.c.b16 %v2514, %v2509
    %v2705 = vpack.c.b16 %v2515, %v2510
    %v2706 = vpack.c.b16 %v2516, %v2511
    %v2707 = vpack.c.b16 %v2522, %v2517
    %v2708 = vpack.c.b16 %v2523, %v2518
    %v2709 = vpack.c.b16 %v2524, %v2519
    %v2710 = vpack.c.b16 %v2525, %v2520
    %v2711 = vpack.c.b16 %v2526, %v2521
    %v2712 = vpack.c.b16 %v2532, %v2527
    %v2713 = vpack.c.b16 %v2533, %v2528
    %v2714 = vpack.c.b16 %v2534, %v2529
    %v2715 = vpack.c.b16 %v2535, %v2530
    %v2716 = vpack.c.b16 %v2536, %v2531
    %v2717 = vpack.c.b16 %v2542, %v2537
    %v2718 = vpack.c.b16 %v2543, %v2538
    %v2719 = vpack.c.b16 %v2544, %v2539
    %v2720 = vpack.c.b16 %v2545, %v2540
    %v2721 = vpack.c.b16 %v2546, %v2541
    %v2722 = vpack.c.b16 %v2552, %v2547
    %v2723 = vpack.c.b16 %v2553, %v2548
    %v2724 = vpack.c.b16 %v2554, %v2549
    %v2725 = vpack.c.b16 %v2555, %v2550
    %v2726 = vpack.c.b16 %v2556, %v2551
    %v2727 = vpack.c.b16 %v2562, %v2557
    %v2728 = vpack.c.b16 %v2563, %v2558
    %v2729 = vpack.c.b16 %v2564, %v2559
    %v2730 = vpack.c.b16 %v2565, %v2560
    %v2731 = vpack.c.b16 %v2566, %v2561
    %v2732 = vpack.c.b16 %v2572, %v2567
    %v2733 = vpack.c.b16 %v2573, %v2568
    %v2734 = vpack.c.b16 %v2574, %v2569
    %v2735 = vpack.c.b16 %v2575, %v2570
    %v2736 = vpack.c.b16 %v2576, %v2571
    %v2737 = vpack.c.b16 %v2582, %v2577
    %v2738 = vpack.c.b16 %v2583, %v2578
    %v2739 = vpack.c.b16 %v2584, %v2579
    %v2740 = vpack.c.b16 %v2585, %v2580
    %v2741 = vpack.c.b16 %v2586, %v2581
    %v2742 = vpack.c.b16 %v2592, %v2587
    %v2743 = vpack.c.b16 %v2593, %v2588
    %v2744 = vpack.c.b16 %v2594, %v2589
    %v2745 = vpack.c.b16 %v2595, %v2590
    %v2746 = vpack.c.b16 %v2596, %v2591
    %v2747 = vpack.c.b16 %v2602, %v2597
    %v2748 = vpack.c.b16 %v2603, %v2598
    %v2749 = vpack.c.b16 %v2604, %v2599
    %v2750 = vpack.c.b16 %v2605, %v2600
    %v2751 = vpack.c.b16 %v2606, %v2601
    %v2752 = vpack.c.b16 %v2612, %v2607
    %v2753 = vpack.c.b16 %v2613, %v2608
    %v2754 = vpack.c.b16 %v2614, %v2609
    %v2755 = vpack.c.b16 %v2615, %v2610
    %v2756 = vpack.c.b16 %v2616, %v2611
    %v2757 = vpack.c.b16 %v2622, %v2617
    %v2758 = vpack.c.b16 %v2623, %v2618
    %v2759 = vpack.c.b16 %v2624, %v2619
    %v2760 = vpack.c.b16 %v2625, %v2620
    %v2761 = vpack.c.b16 %v2626, %v2621
    %v2762 = vpack.c.b16 %v2632, %v2627
    %v2763 = vpack.c.b16 %v2633, %v2628
    %v2764 = vpack.c.b16 %v2634, %v2629
    %v2765 = vpack.c.b16 %v2635, %v2630
    %v2766 = vpack.c.b16 %v2636, %v2631
    %v2767 = vpack.c.b16 %v2642, %v2637
    %v2768 = vpack.c.b16 %v2643, %v2638
    %v2769 = vpack.c.b16 %v2644, %v2639
    %v2770 = vpack.c.b16 %v2645, %v2640
    %v2771 = vpack.c.b16 %v2646, %v2641
    %v2772 = vpack.c.b16 %v2652, %v2647
    %v2773 = vpack.c.b16 %v2653, %v2648
    %v2774 = vpack.c.b16 %v2654, %v2649
    %v2775 = vpack.c.b16 %v2655, %v2650
    %v2776 = vpack.c.b16 %v2656, %v2651
    %2897 = vmatprep.subr.bf16.mxu0 %v2658
    %2898 = vmatpush1.bf16.msra.mxu0 %v2657
    %2899 = vmatprep.subr.bf16.mxu0 %v2663
    %2900 = vmatpush1.bf16.msra.mxu0 %v2662
    %2901 = vmatprep.subr.bf16.mxu0 %v2668
    %2902 = vmatpush1.bf16.msra.mxu0 %v2667
    %2903 = vmatprep.subr.bf16.mxu0 %v2673
    %2904 = vmatpush1.bf16.msra.mxu0 %v2672
    %2905 = vmatprep.subr.bf16.mxu0 %v2678
    %2906 = vmatpush1.bf16.msra.mxu0 %v2677
    %2907 = vmatprep.subr.bf16.mxu0 %v2683
    %2908 = vmatpush1.bf16.msra.mxu0 %v2682
    %2909 = vmatprep.subr.bf16.mxu0 %v2688
    %2910 = vmatpush1.bf16.msra.mxu0 %v2687
    %2911 = vmatprep.subr.bf16.mxu0 %v2693
    %2912 = vmatpush1.bf16.msra.mxu0 %v2692
    %2913 = vmatprep.subr.bf16.mxu0 %v2698
    %2914 = vmatpush1.bf16.msra.mxu0 %v2697
    %2915 = vmatprep.subr.bf16.mxu0 %v2703
    %2916 = vmatpush1.bf16.msra.mxu0 %v2702
    %2917 = vmatprep.subr.bf16.mxu0 %v2708
    %2918 = vmatpush1.bf16.msra.mxu0 %v2707
    %2919 = vmatprep.subr.bf16.mxu0 %v2713
    %2920 = vmatpush1.bf16.msra.mxu0 %v2712
    %2921 = vmatprep.subr.bf16.mxu0 %v2718
    %2922 = vmatpush1.bf16.msra.mxu0 %v2717
    %2923 = vmatprep.subr.bf16.mxu0 %v2723
    %2924 = vmatpush1.bf16.msra.mxu0 %v2722
    %2925 = vmatprep.subr.bf16.mxu0 %v2728
    %2926 = vmatpush1.bf16.msra.mxu0 %v2727
    %2927 = vmatprep.subr.bf16.mxu0 %v2733
    %2928 = vmatpush1.bf16.msra.mxu0 %v2732
    %2929 = vmatprep.mubr.bf16.mxu0 %v1731
    %2930 = vmatmul.mubr.bf16.gmra.mrb[0].mxu0 %v1730
    %v2931 = vpop.f32.mrb[0].mxu0
    %v2932 = vadd.f32 %v2186, %v2931
    %v2933 = vpop.f32.mrb[0].mxu0
    %v2934 = vadd.f32 %v2188, %v2933
    %v2935 = vpop.f32.mrb[0].mxu0
    %v2936 = vpop.f32.mrb[0].mxu0
    %2937 = vdwg.mxu0
    %2938 = vmatprep.subr.bf16.mxu0 %v2738
    %2939 = vmatpush1.bf16.msra.mxu0 %v2737
    %2940 = vmatprep.subr.bf16.mxu0 %v2743
    %2941 = vmatpush1.bf16.msra.mxu0 %v2742
    %2942 = vmatprep.subr.bf16.mxu0 %v2748
    %2943 = vmatpush1.bf16.msra.mxu0 %v2747
    %2944 = vmatprep.subr.bf16.mxu0 %v2753
    %2945 = vmatpush1.bf16.msra.mxu0 %v2752
    %2946 = vmatprep.subr.bf16.mxu0 %v2758
    %2947 = vmatpush1.bf16.msra.mxu0 %v2757
    %2948 = vmatprep.subr.bf16.mxu0 %v2763
    %2949 = vmatpush1.bf16.msra.mxu0 %v2762
    %2950 = vmatprep.subr.bf16.mxu0 %v2768
    %2951 = vmatpush1.bf16.msra.mxu0 %v2767
    %2952 = vmatprep.subr.bf16.mxu0 %v2773
    %2953 = vmatpush1.bf16.msra.mxu0 %v2772
    %2954 = vmatprep.subr.bf16.mxu0 0
    %2955 = vmatpush1.bf16.msra.mxu0 0
    %2956 = vmatprep.subr.bf16.mxu0 0
    %2957 = vmatpush1.bf16.msra.mxu0 0
    %2958 = vmatprep.subr.bf16.mxu0 0
    %2959 = vmatpush1.bf16.msra.mxu0 0
    %2960 = vmatprep.subr.bf16.mxu0 0
    %2961 = vmatpush1.bf16.msra.mxu0 0
    %2962 = vmatprep.subr.bf16.mxu0 0
    %2963 = vmatpush1.bf16.msra.mxu0 0
    %2964 = vmatprep.subr.bf16.mxu0 0
    %2965 = vmatpush1.bf16.msra.mxu0 0
    %2966 = vmatprep.subr.bf16.mxu0 0
    %2967 = vmatpush1.bf16.msra.mxu0 0
    %2968 = vmatprep.subr.bf16.mxu0 0
    %2969 = vmatpush1.bf16.msra.mxu0 0
    %2970 = vmatprep.mubr.bf16.mxu0 0
    %2971 = vmatmul.mubr.bf16.gmra.mrb[0].mxu0 %v1732
    %v2972 = vpop.f32.mrb[0].mxu0
    %v2973 = vadd.f32 %v2932, %v2972
    %v2974 = vpop.f32.mrb[0].mxu0
    %v2975 = vadd.f32 %v2934, %v2974
    %v2976 = vpop.f32.mrb[0].mxu0
    %v2977 = vpop.f32.mrb[0].mxu0
    %2978 = vdwg.mxu0
    %2979 = vmatprep.subr.bf16.mxu0 %v2660
    %2980 = vmatpush1.bf16.msra.mxu0 %v2659
    %2981 = vmatprep.subr.bf16.mxu0 %v2665
    %2982 = vmatpush1.bf16.msra.mxu0 %v2664
    %2983 = vmatprep.subr.bf16.mxu0 %v2670
    %2984 = vmatpush1.bf16.msra.mxu0 %v2669
    %2985 = vmatprep.subr.bf16.mxu0 %v2675
    %2986 = vmatpush1.bf16.msra.mxu0 %v2674
    %2987 = vmatprep.subr.bf16.mxu0 %v2680
    %2988 = vmatpush1.bf16.msra.mxu0 %v2679
    %2989 = vmatprep.subr.bf16.mxu0 %v2685
    %2990 = vmatpush1.bf16.msra.mxu0 %v2684
    %2991 = vmatprep.subr.bf16.mxu0 %v2690
    %2992 = vmatpush1.bf16.msra.mxu0 %v2689
    %2993 = vmatprep.subr.bf16.mxu0 %v2695
    %2994 = vmatpush1.bf16.msra.mxu0 %v2694
    %2995 = vmatprep.subr.bf16.mxu0 %v2700
    %2996 = vmatpush1.bf16.msra.mxu0 %v2699
    %2997 = vmatprep.subr.bf16.mxu0 %v2705
    %2998 = vmatpush1.bf16.msra.mxu0 %v2704
    %2999 = vmatprep.subr.bf16.mxu0 %v2710
    %3000 = vmatpush1.bf16.msra.mxu0 %v2709
    %3001 = vmatprep.subr.bf16.mxu0 %v2715
    %3002 = vmatpush1.bf16.msra.mxu0 %v2714
    %3003 = vmatprep.subr.bf16.mxu0 %v2720
    %3004 = vmatpush1.bf16.msra.mxu0 %v2719
    %3005 = vmatprep.subr.bf16.mxu0 %v2725
    %3006 = vmatpush1.bf16.msra.mxu0 %v2724
    %3007 = vmatprep.subr.bf16.mxu0 %v2730
    %3008 = vmatpush1.bf16.msra.mxu0 %v2729
    %3009 = vmatprep.subr.bf16.mxu0 %v2735
    %3010 = vmatpush1.bf16.msra.mxu0 %v2734
    %3011 = vmatprep.mubr.bf16.mxu0 %v1731
    %3012 = vmatmul.mubr.bf16.gmra.mrb[0].mxu0 %v1730
    %v3013 = vpop.f32.mrb[0].mxu0
    %v3014 = vadd.f32 %v2227, %v3013
    %v3015 = vpop.f32.mrb[0].mxu0
    %v3016 = vadd.f32 %v2229, %v3015
    %v3017 = vpop.f32.mrb[0].mxu0
    %v3018 = vpop.f32.mrb[0].mxu0
    %3019 = vdwg.mxu0
    %3020 = vmatprep.subr.bf16.mxu0 %v2740
    %3021 = vmatpush1.bf16.msra.mxu0 %v2739
    %3022 = vmatprep.subr.bf16.mxu0 %v2745
    %3023 = vmatpush1.bf16.msra.mxu0 %v2744
    %3024 = vmatprep.subr.bf16.mxu0 %v2750
    %3025 = vmatpush1.bf16.msra.mxu0 %v2749
    %3026 = vmatprep.subr.bf16.mxu0 %v2755
    %3027 = vmatpush1.bf16.msra.mxu0 %v2754
    %3028 = vmatprep.subr.bf16.mxu0 %v2760
    %3029 = vmatpush1.bf16.msra.mxu0 %v2759
    %3030 = vmatprep.subr.bf16.mxu0 %v2765
    %3031 = vmatpush1.bf16.msra.mxu0 %v2764
    %3032 = vmatprep.subr.bf16.mxu0 %v2770
    %3033 = vmatpush1.bf16.msra.mxu0 %v2769
    %3034 = vmatprep.subr.bf16.mxu0 %v2775
    %3035 = vmatpush1.bf16.msra.mxu0 %v2774
    %3036 = vmatprep.subr.bf16.mxu0 0
    %3037 = vmatpush1.bf16.msra.mxu0 0
    %3038 = vmatprep.subr.bf16.mxu0 0
    %3039 = vmatpush1.bf16.msra.mxu0 0
    %3040 = vmatprep.subr.bf16.mxu0 0
    %3041 = vmatpush1.bf16.msra.mxu0 0
    %3042 = vmatprep.subr.bf16.mxu0 0
    %3043 = vmatpush1.bf16.msra.mxu0 0
    %3044 = vmatprep.subr.bf16.mxu0 0
    %3045 = vmatpush1.bf16.msra.mxu0 0
    %3046 = vmatprep.subr.bf16.mxu0 0
    %3047 = vmatpush1.bf16.msra.mxu0 0
    %3048 = vmatprep.subr.bf16.mxu0 0
    %3049 = vmatpush1.bf16.msra.mxu0 0
    %3050 = vmatprep.subr.bf16.mxu0 0
    %3051 = vmatpush1.bf16.msra.mxu0 0
    %3052 = vmatprep.mubr.bf16.mxu0 0
    %3053 = vmatmul.mubr.bf16.gmra.mrb[0].mxu0 %v1732
    %v3054 = vpop.f32.mrb[0].mxu0
    %v3055 = vadd.f32 %v3014, %v3054
    %v3056 = vpop.f32.mrb[0].mxu0
    %v3057 = vadd.f32 %v3016, %v3056
    %v3058 = vpop.f32.mrb[0].mxu0
    %v3059 = vpop.f32.mrb[0].mxu0
    %3060 = vdwg.mxu0
    %3061 = vmatprep.subr.bf16.mxu0 0
    %3062 = vmatpush1.bf16.msra.mxu0 %v2661
    %3063 = vmatprep.subr.bf16.mxu0 0
    %3064 = vmatpush1.bf16.msra.mxu0 %v2666
    %3065 = vmatprep.subr.bf16.mxu0 0
    %3066 = vmatpush1.bf16.msra.mxu0 %v2671
    %3067 = vmatprep.subr.bf16.mxu0 0
    %3068 = vmatpush1.bf16.msra.mxu0 %v2676
    %3069 = vmatprep.subr.bf16.mxu0 0
    %3070 = vmatpush1.bf16.msra.mxu0 %v2681
    %3071 = vmatprep.subr.bf16.mxu0 0
    %3072 = vmatpush1.bf16.msra.mxu0 %v2686
    %3073 = vmatprep.subr.bf16.mxu0 0
    %3074 = vmatpush1.bf16.msra.mxu0 %v2691
    %3075 = vmatprep.subr.bf16.mxu0 0
    %3076 = vmatpush1.bf16.msra.mxu0 %v2696
    %3077 = vmatprep.subr.bf16.mxu0 0
    %3078 = vmatpush1.bf16.msra.mxu0 %v2701
    %3079 = vmatprep.subr.bf16.mxu0 0
    %3080 = vmatpush1.bf16.msra.mxu0 %v2706
    %3081 = vmatprep.subr.bf16.mxu0 0
    %3082 = vmatpush1.bf16.msra.mxu0 %v2711
    %3083 = vmatprep.subr.bf16.mxu0 0
    %3084 = vmatpush1.bf16.msra.mxu0 %v2716
    %3085 = vmatprep.subr.bf16.mxu0 0
    %3086 = vmatpush1.bf16.msra.mxu0 %v2721
    %3087 = vmatprep.subr.bf16.mxu0 0
    %3088 = vmatpush1.bf16.msra.mxu0 %v2726
    %3089 = vmatprep.subr.bf16.mxu0 0
    %3090 = vmatpush1.bf16.msra.mxu0 %v2731
    %3091 = vmatprep.subr.bf16.mxu0 0
    %3092 = vmatpush1.bf16.msra.mxu0 %v2736
    %3093 = vmatprep.mubr.bf16.mxu0 %v1731
    %3094 = vmatmul.mubr.bf16.gmra.mrb[0].mxu0 %v1730
    %v3095 = vpop.f32.mrb[0].mxu0
    %v3096 = vadd.f32 %v2268, %v3095
    %v3097 = vpop.f32.mrb[0].mxu0
    %v3098 = vpop.f32.mrb[0].mxu0
    %v3099 = vpop.f32.mrb[0].mxu0
    %3100 = vdwg.mxu0
    %3101 = vmatprep.subr.bf16.mxu0 0
    %3102 = vmatpush1.bf16.msra.mxu0 %v2741
    %3103 = vmatprep.subr.bf16.mxu0 0
    %3104 = vmatpush1.bf16.msra.mxu0 %v2746
    %3105 = vmatprep.subr.bf16.mxu0 0
    %3106 = vmatpush1.bf16.msra.mxu0 %v2751
    %3107 = vmatprep.subr.bf16.mxu0 0
    %3108 = vmatpush1.bf16.msra.mxu0 %v2756
    %3109 = vmatprep.subr.bf16.mxu0 0
    %3110 = vmatpush1.bf16.msra.mxu0 %v2761
    %3111 = vmatprep.subr.bf16.mxu0 0
    %3112 = vmatpush1.bf16.msra.mxu0 %v2766
    %3113 = vmatprep.subr.bf16.mxu0 0
    %3114 = vmatpush1.bf16.msra.mxu0 %v2771
    %3115 = vmatprep.subr.bf16.mxu0 0
    %3116 = vmatpush1.bf16.msra.mxu0 %v2776
    %3117 = vmatprep.subr.bf16.mxu0 0
    %3118 = vmatpush1.bf16.msra.mxu0 0
    %3119 = vmatprep.subr.bf16.mxu0 0
    %3120 = vmatpush1.bf16.msra.mxu0 0
    %3121 = vmatprep.subr.bf16.mxu0 0
    %3122 = vmatpush1.bf16.msra.mxu0 0
    %3123 = vmatprep.subr.bf16.mxu0 0
    %3124 = vmatpush1.bf16.msra.mxu0 0
    %3125 = vmatprep.subr.bf16.mxu0 0
    %3126 = vmatpush1.bf16.msra.mxu0 0
    %3127 = vmatprep.subr.bf16.mxu0 0
    %3128 = vmatpush1.bf16.msra.mxu0 0
    %3129 = vmatprep.subr.bf16.mxu0 0
    %3130 = vmatpush1.bf16.msra.mxu0 0
    %3131 = vmatprep.subr.bf16.mxu0 0
    %3132 = vmatpush1.bf16.msra.mxu0 0
    %3133 = vmatprep.mubr.bf16.mxu0 0
    %3134 = vmatmul.mubr.bf16.gmra.mrb[0].mxu0 %v1732
    %v3135 = vpop.f32.mrb[0].mxu0
    %v3136 = vadd.f32 %v3096, %v3135
    %v3137 = vpop.f32.mrb[0].mxu0
    %v3138 = vpop.f32.mrb[0].mxu0
    %v3139 = vpop.f32.mrb[0].mxu0
    %3140 = vdwg.mxu0
    %v3142 = vlaneseq
    %v3143 = vshrl.u32 %v3142, 7
    %v3144 = vsub.s32 0, %v3143
    %v3145 = vrot.slane %v634, %v3144
    %v3146 = vlaneseq
    %v3147 = vshrl.u32 %v3146, 7
    %v3148 = vsub.s32 1, %v3147
    %v3149 = vrot.slane %v634, %v3148
    %v3150 = vlaneseq
    %v3151 = vshrl.u32 %v3150, 7
    %v3152 = vsub.s32 2, %v3151
    %v3153 = vrot.slane %v634, %v3152
    %v3154 = vlaneseq
    %v3155 = vshrl.u32 %v3154, 7
    %v3156 = vsub.s32 3, %v3155
    %v3157 = vrot.slane %v634, %v3156
    %v3158 = vlaneseq
    %v3159 = vshrl.u32 %v3158, 7
    %v3160 = vsub.s32 4, %v3159
    %v3161 = vrot.slane %v634, %v3160
    %v3167 = vadd.f32 %v2973, %v3145
    %v3168 = vadd.f32 %v2975, %v3149
    %v3169 = vadd.f32 %v3055, %v3153
    %v3170 = vadd.f32 %v3057, %v3157
    %v3171 = vadd.f32 %v3136, %v3161
    %v3172 = vpack.c.bf16 %v3167, %v3167
    %v3173 = vpack.c.bf16 %v3168, %v3168
    %v3174 = vpack.c.bf16 %v3169, %v3169
    %v3175 = vpack.c.bf16 %v3170, %v3170
    %v3176 = vpack.c.bf16 %v3171, %v3171
    %v3257 = vunpack.c.l.b16 %v542
    %v3258 = vunpack.c.l.b16 %v543
    %v3259 = vunpack.c.l.b16 %v544
    %v3260 = vunpack.c.l.b16 %v545
    %v3261 = vunpack.c.l.b16 %v546
    %v3262 = vunpack.c.l.b16 %v547
    %v3263 = vunpack.c.l.b16 %v548
    %v3264 = vunpack.c.l.b16 %v549
    %v3265 = vunpack.c.l.b16 %v550
    %v3266 = vunpack.c.l.b16 %v551
    %v3267 = vunpack.c.l.b16 %v552
    %v3268 = vunpack.c.l.b16 %v553
    %v3269 = vunpack.c.l.b16 %v554
    %v3270 = vunpack.c.l.b16 %v555
    %v3271 = vunpack.c.l.b16 %v556
    %v3272 = vunpack.c.l.b16 %v557
    %v3273 = vunpack.c.l.b16 %v558
    %v3274 = vunpack.c.l.b16 %v559
    %v3275 = vunpack.c.l.b16 %v560
    %v3276 = vunpack.c.l.b16 %v561
    %v3277 = vunpack.c.l.b16 %v562
    %v3278 = vunpack.c.l.b16 %v563
    %v3279 = vunpack.c.l.b16 %v564
    %v3280 = vunpack.c.l.b16 %v565
    %v3281 = vunpack.c.l.b16 %v566
    %v3282 = vunpack.c.l.b16 %v567
    %v3283 = vunpack.c.l.b16 %v568
    %v3284 = vunpack.c.l.b16 %v569
    %v3285 = vunpack.c.l.b16 %v570
    %v3286 = vunpack.c.l.b16 %v571
    %v3287 = vunpack.c.l.b16 %v572
    %v3288 = vunpack.c.l.b16 %v573
    %v3289 = vunpack.c.l.b16 %v574
    %v3290 = vunpack.c.l.b16 %v575
    %v3291 = vunpack.c.l.b16 %v576
    %v3292 = vunpack.c.l.b16 %v577
    %v3293 = vunpack.c.l.b16 %v578
    %v3294 = vunpack.c.l.b16 %v579
    %v3295 = vunpack.c.l.b16 %v580
    %v3296 = vunpack.c.l.b16 %v581
    %v3297 = vunpack.c.l.b16 %v582
    %v3298 = vunpack.c.l.b16 %v583
    %v3299 = vunpack.c.l.b16 %v584
    %v3300 = vunpack.c.l.b16 %v585
    %v3301 = vunpack.c.l.b16 %v586
    %v3302 = vunpack.c.l.b16 %v587
    %v3303 = vunpack.c.l.b16 %v588
    %v3304 = vunpack.c.l.b16 %v589
    %v3305 = vunpack.c.l.b16 %v590
    %v3306 = vunpack.c.l.b16 %v591
    %v3307 = vunpack.c.l.b16 %v592
    %v3308 = vunpack.c.l.b16 %v593
    %v3309 = vunpack.c.l.b16 %v594
    %v3310 = vunpack.c.l.b16 %v595
    %v3311 = vunpack.c.l.b16 %v596
    %v3312 = vunpack.c.l.b16 %v597
    %v3313 = vunpack.c.l.b16 %v598
    %v3314 = vunpack.c.l.b16 %v599
    %v3315 = vunpack.c.l.b16 %v600
    %v3316 = vunpack.c.l.b16 %v601
    %v3317 = vunpack.c.l.b16 %v602
    %v3318 = vunpack.c.l.b16 %v603
    %v3319 = vunpack.c.l.b16 %v604
    %v3320 = vunpack.c.l.b16 %v605
    %v3321 = vunpack.c.l.b16 %v606
    %v3322 = vunpack.c.l.b16 %v607
    %v3323 = vunpack.c.l.b16 %v608
    %v3324 = vunpack.c.l.b16 %v609
    %v3325 = vunpack.c.l.b16 %v610
    %v3326 = vunpack.c.l.b16 %v611
    %v3327 = vunpack.c.l.b16 %v612
    %v3328 = vunpack.c.l.b16 %v613
    %v3329 = vunpack.c.l.b16 %v614
    %v3330 = vunpack.c.l.b16 %v615
    %v3331 = vunpack.c.l.b16 %v616
    %v3332 = vunpack.c.l.b16 %v617
    %v3333 = vunpack.c.l.b16 %v618
    %v3334 = vunpack.c.l.b16 %v619
    %v3335 = vunpack.c.l.b16 %v620
    %v3336 = vunpack.c.l.b16 %v621
    %v3337 = vpack.c.b16 %v3258, %v3257
    %v3338 = vpack.c.b16 %v3260, %v3259
    %v3339 = vpack.c.b16 %v3262, %v3261
    %v3340 = vpack.c.b16 %v3264, %v3263
    %v3341 = vpack.c.b16 %v3266, %v3265
    %v3342 = vpack.c.b16 %v3268, %v3267
    %v3343 = vpack.c.b16 %v3270, %v3269
    %v3344 = vpack.c.b16 %v3272, %v3271
    %v3345 = vpack.c.b16 %v3274, %v3273
    %v3346 = vpack.c.b16 %v3276, %v3275
    %v3347 = vpack.c.b16 %v3278, %v3277
    %v3348 = vpack.c.b16 %v3280, %v3279
    %v3349 = vpack.c.b16 %v3282, %v3281
    %v3350 = vpack.c.b16 %v3284, %v3283
    %v3351 = vpack.c.b16 %v3286, %v3285
    %v3352 = vpack.c.b16 %v3288, %v3287
    %v3353 = vpack.c.b16 %v3290, %v3289
    %v3354 = vpack.c.b16 %v3292, %v3291
    %v3355 = vpack.c.b16 %v3294, %v3293
    %v3356 = vpack.c.b16 %v3296, %v3295
    %v3357 = vpack.c.b16 %v3298, %v3297
    %v3358 = vpack.c.b16 %v3300, %v3299
    %v3359 = vpack.c.b16 %v3302, %v3301
    %v3360 = vpack.c.b16 %v3304, %v3303
    %v3361 = vpack.c.b16 %v3306, %v3305
    %v3362 = vpack.c.b16 %v3308, %v3307
    %v3363 = vpack.c.b16 %v3310, %v3309
    %v3364 = vpack.c.b16 %v3312, %v3311
    %v3365 = vpack.c.b16 %v3314, %v3313
    %v3366 = vpack.c.b16 %v3316, %v3315
    %v3367 = vpack.c.b16 %v3318, %v3317
    %v3368 = vpack.c.b16 %v3320, %v3319
    %v3369 = vpack.c.b16 %v3322, %v3321
    %v3370 = vpack.c.b16 %v3324, %v3323
    %v3371 = vpack.c.b16 %v3326, %v3325
    %v3372 = vpack.c.b16 %v3328, %v3327
    %v3373 = vpack.c.b16 %v3330, %v3329
    %v3374 = vpack.c.b16 %v3332, %v3331
    %v3375 = vpack.c.b16 %v3334, %v3333
    %v3376 = vpack.c.b16 %v3336, %v3335
    %3417 = vmatprep.subr.bf16.mxu0 0
    %3418 = vmatpush1.bf16.msra.mxu0 %v3337
    %3419 = vmatprep.subr.bf16.mxu0 0
    %3420 = vmatpush1.bf16.msra.mxu0 %v3338
    %3421 = vmatprep.subr.bf16.mxu0 0
    %3422 = vmatpush1.bf16.msra.mxu0 %v3339
    %3423 = vmatprep.subr.bf16.mxu0 0
    %3424 = vmatpush1.bf16.msra.mxu0 %v3340
    %3425 = vmatprep.subr.bf16.mxu0 0
    %3426 = vmatpush1.bf16.msra.mxu0 %v3341
    %3427 = vmatprep.subr.bf16.mxu0 0
    %3428 = vmatpush1.bf16.msra.mxu0 %v3342
    %3429 = vmatprep.subr.bf16.mxu0 0
    %3430 = vmatpush1.bf16.msra.mxu0 %v3343
    %3431 = vmatprep.subr.bf16.mxu0 0
    %3432 = vmatpush1.bf16.msra.mxu0 %v3344
    %3433 = vmatprep.subr.bf16.mxu0 0
    %3434 = vmatpush1.bf16.msra.mxu0 %v3345
    %3435 = vmatprep.subr.bf16.mxu0 0
    %3436 = vmatpush1.bf16.msra.mxu0 %v3346
    %3437 = vmatprep.subr.bf16.mxu0 0
    %3438 = vmatpush1.bf16.msra.mxu0 %v3347
    %3439 = vmatprep.subr.bf16.mxu0 0
    %3440 = vmatpush1.bf16.msra.mxu0 %v3348
    %3441 = vmatprep.subr.bf16.mxu0 0
    %3442 = vmatpush1.bf16.msra.mxu0 %v3349
    %3443 = vmatprep.subr.bf16.mxu0 0
    %3444 = vmatpush1.bf16.msra.mxu0 %v3350
    %3445 = vmatprep.subr.bf16.mxu0 0
    %3446 = vmatpush1.bf16.msra.mxu0 %v3351
    %3447 = vmatprep.subr.bf16.mxu0 0
    %3448 = vmatpush1.bf16.msra.mxu0 %v3352
    %3449 = vmatprep.mubr.bf16.mxu0 %v3173
    %3450 = vmatmul.mubr.bf16.gmra.mrb[0].mxu0 %v3172
    %v3451 = vpop.f32.mrb[0].mxu0
    %v3452 = vadd.f32 0.0, %v3451
    %v3453 = vpop.f32.mrb[0].mxu0
    %v3454 = vpop.f32.mrb[0].mxu0
    %v3455 = vpop.f32.mrb[0].mxu0
    %3456 = vdwg.mxu0
    %3457 = vmatprep.subr.bf16.mxu0 0
    %3458 = vmatpush1.bf16.msra.mxu0 %v3353
    %3459 = vmatprep.subr.bf16.mxu0 0
    %3460 = vmatpush1.bf16.msra.mxu0 %v3354
    %3461 = vmatprep.subr.bf16.mxu0 0
    %3462 = vmatpush1.bf16.msra.mxu0 %v3355
    %3463 = vmatprep.subr.bf16.mxu0 0
    %3464 = vmatpush1.bf16.msra.mxu0 %v3356
    %3465 = vmatprep.subr.bf16.mxu0 0
    %3466 = vmatpush1.bf16.msra.mxu0 %v3357
    %3467 = vmatprep.subr.bf16.mxu0 0
    %3468 = vmatpush1.bf16.msra.mxu0 %v3358
    %3469 = vmatprep.subr.bf16.mxu0 0
    %3470 = vmatpush1.bf16.msra.mxu0 %v3359
    %3471 = vmatprep.subr.bf16.mxu0 0
    %3472 = vmatpush1.bf16.msra.mxu0 %v3360
    %3473 = vmatprep.subr.bf16.mxu0 0
    %3474 = vmatpush1.bf16.msra.mxu0 %v3361
    %3475 = vmatprep.subr.bf16.mxu0 0
    %3476 = vmatpush1.bf16.msra.mxu0 %v3362
    %3477 = vmatprep.subr.bf16.mxu0 0
    %3478 = vmatpush1.bf16.msra.mxu0 %v3363
    %3479 = vmatprep.subr.bf16.mxu0 0
    %3480 = vmatpush1.bf16.msra.mxu0 %v3364
    %3481 = vmatprep.subr.bf16.mxu0 0
    %3482 = vmatpush1.bf16.msra.mxu0 %v3365
    %3483 = vmatprep.subr.bf16.mxu0 0
    %3484 = vmatpush1.bf16.msra.mxu0 %v3366
    %3485 = vmatprep.subr.bf16.mxu0 0
    %3486 = vmatpush1.bf16.msra.mxu0 %v3367
    %3487 = vmatprep.subr.bf16.mxu0 0
    %3488 = vmatpush1.bf16.msra.mxu0 %v3368
    %3489 = vmatprep.mubr.bf16.mxu0 %v3175
    %3490 = vmatmul.mubr.bf16.gmra.mrb[0].mxu0 %v3174
    %v3491 = vpop.f32.mrb[0].mxu0
    %v3492 = vadd.f32 %v3452, %v3491
    %v3493 = vpop.f32.mrb[0].mxu0
    %v3494 = vpop.f32.mrb[0].mxu0
    %v3495 = vpop.f32.mrb[0].mxu0
    %3496 = vdwg.mxu0
    %3497 = vmatprep.subr.bf16.mxu0 0
    %3498 = vmatpush1.bf16.msra.mxu0 %v3369
    %3499 = vmatprep.subr.bf16.mxu0 0
    %3500 = vmatpush1.bf16.msra.mxu0 %v3370
    %3501 = vmatprep.subr.bf16.mxu0 0
    %3502 = vmatpush1.bf16.msra.mxu0 %v3371
    %3503 = vmatprep.subr.bf16.mxu0 0
    %3504 = vmatpush1.bf16.msra.mxu0 %v3372
    %3505 = vmatprep.subr.bf16.mxu0 0
    %3506 = vmatpush1.bf16.msra.mxu0 %v3373
    %3507 = vmatprep.subr.bf16.mxu0 0
    %3508 = vmatpush1.bf16.msra.mxu0 %v3374
    %3509 = vmatprep.subr.bf16.mxu0 0
    %3510 = vmatpush1.bf16.msra.mxu0 %v3375
    %3511 = vmatprep.subr.bf16.mxu0 0
    %3512 = vmatpush1.bf16.msra.mxu0 %v3376
    %3513 = vmatprep.subr.bf16.mxu0 0
    %3514 = vmatpush1.bf16.msra.mxu0 0
    %3515 = vmatprep.subr.bf16.mxu0 0
    %3516 = vmatpush1.bf16.msra.mxu0 0
    %3517 = vmatprep.subr.bf16.mxu0 0
    %3518 = vmatpush1.bf16.msra.mxu0 0
    %3519 = vmatprep.subr.bf16.mxu0 0
    %3520 = vmatpush1.bf16.msra.mxu0 0
    %3521 = vmatprep.subr.bf16.mxu0 0
    %3522 = vmatpush1.bf16.msra.mxu0 0
    %3523 = vmatprep.subr.bf16.mxu0 0
    %3524 = vmatpush1.bf16.msra.mxu0 0
    %3525 = vmatprep.subr.bf16.mxu0 0
    %3526 = vmatpush1.bf16.msra.mxu0 0
    %3527 = vmatprep.subr.bf16.mxu0 0
    %3528 = vmatpush1.bf16.msra.mxu0 0
    %3529 = vmatprep.mubr.bf16.mxu0 0
    %3530 = vmatmul.mubr.bf16.gmra.mrb[0].mxu0 %v3176
    %v3531 = vpop.f32.mrb[0].mxu0
    %v3532 = vadd.f32 %v3492, %v3531
    %v3533 = vpop.f32.mrb[0].mxu0
    %v3534 = vpop.f32.mrb[0].mxu0
    %v3535 = vpop.f32.mrb[0].mxu0
    %3536 = vdwg.mxu0
    %v3537 = vadd.f32 %v3532, %v635
    %v3538 = vxor.u32 %v3537, 2147483648
    %v3539 = vmul.f32 %v3538, 1.442695
    %v3540 = vpow.pop %v3539
    %v3541 = vadd.f32 %v3540, 1.0
    %v3542 = vrcp.pop %v3541
    %v3543 = vmul.f32 1.0, %v3542
    %vm3544 = vcmask 0
    %3545 = vst.msk [vmem:[#allocation13] sm:$0x1] %vm3544, %v3543
    // Predicated region
    $region54: #{tpu_custom_call.1} parent=1 // pred_check
      _
    $region55: #{tpu_custom_call.1} parent=1 // pred_check_branch
      %3547 = sbr.rel (0) target = $region57
    $region56: #{tpu_custom_call.1} parent=1 // pred_region
      %s3549 = ssub.s32 16, 16
      %3550 = vsyncadd [#allocation4], %s3549
      %s3552 = sshll.u32 [#allocation13], 4
      %s3553 = int_to_ptr.vmem [resolvable:$true] %s3552
      %3555 = dma.vmem_to_hbm [thread:$0]  %s3553, 16, %s7, [#allocation4]
    $region57: #{tpu_custom_call.1} parent=1 // pred_fallthru
      _
    // Predicated region
    $region58: #{tpu_custom_call.1} parent=1 // pred_check
      _
    $region59: #{tpu_custom_call.1} parent=1 // pred_check_branch
      %3557 = sbr.rel (0) target = $region61
    $region60: #{tpu_custom_call.1} parent=1 // pred_region
      %3558 = dma.done [#allocation4], 16
    $region61: #{tpu_custom_call.1} parent=1 // pred_fallthru
      _
    %3559 = vsyncpa [#allocation3], 1
    %3560 = vsyncpa [#allocation6], 1
    %3561 = vsyncpa [#allocation9], 1
    %3562 = vsyncpa [#allocation12], 1
    %3563 = vsyncpa [#allocation4], 1

</llo_original>
